<compile_context>
chip_gen: v7x
topology: tpu7x:2x2x1
jax: 0.10.0
libtpu: 0.0.40
codegen_flags: <defaults>
</compile_context>

<pallas_src>
import functools

import jax
import jax.numpy as jnp
from jax.experimental import pallas as pl
from jax.experimental.pallas import tpu as pltpu


# ----------------------------------------------------------------------------
# Shared compiler-params helper: explicit scoped-VMEM budget per kernel,
# capped so the same budget fits v5e/v6e (128 MiB) and v7x (64 MiB) physical VMEM.
# At production sizes, re-derive the time chunk / M tile from this budget per generation.
# ----------------------------------------------------------------------------
def _mosaic_params(dim_sems, est_bytes):
    limit = int(min(max(2 * est_bytes + (8 << 20), 16 << 20), 48 << 20))
    return pltpu.CompilerParams(dimension_semantics=dim_sems, vmem_limit_bytes=limit)


# ----------------------------------------------------------------------------
# Kernel 1: hoisted, tiled input projection.
#   gx_f = sum_i x_i @ W_f_i + b_f ;  gx_b = sum_i x_i @ W_b_i + b_b
# x_i: (M, K_i) with M = T*B (one segment for layer 0 = embeddings, two segments (h_f, h_b) for
# deeper layers -> no (T, B, 2H) concat materialization).  Gridded over M ("parallel"), weights
# and biases use a constant block index (resident).  K / N are left untiled (Din, 4H fit VMEM at
# the sizes of interest); tile K with an f32 accumulator if Din grows.
# ----------------------------------------------------------------------------
def _make_in_proj_kernel(n_inputs):
    def kernel(*refs):
        xs = refs[:n_inputs]
        wfs = refs[n_inputs:2 * n_inputs]
        wbs = refs[2 * n_inputs:3 * n_inputs]
        bf_ref, bb_ref, gf_ref, gb_ref = refs[3 * n_inputs:]
        acc_f = bf_ref[...].astype(jnp.float32)
        acc_b = bb_ref[...].astype(jnp.float32)
        for x_ref, wf_ref, wb_ref in zip(xs, wfs, wbs):
            x = x_ref[...]
            acc_f = acc_f + jnp.dot(x, wf_ref[...], preferred_element_type=jnp.float32)
            acc_b = acc_b + jnp.dot(x, wb_ref[...], preferred_element_type=jnp.float32)
        gf_ref[...] = acc_f.astype(gf_ref.dtype)
        gb_ref[...] = acc_b.astype(gb_ref.dtype)
    return kernel


def input_projection(xs, wfs, wbs, b_f, b_b, *, tile_m=256):
    """xs: tuple of (M, K_i); wfs/wbs: tuple of (K_i, 4H); b_*: (1, 4H) -> (gx_f, gx_b) (M, 4H)."""
    n = len(xs)
    M = xs[0].shape[0]
    G = wfs[0].shape[1]                       # 4H
    if tile_m >= M:
        tm = M
    else:
        assert M % tile_m == 0 and tile_m % 8 == 0, "tile_m must divide T*B and be a multiple of 8"
        tm = tile_m
    grid = (M // tm,)

    in_specs = (
        [pl.BlockSpec((tm, x.shape[1]), lambda m: (m, 0)) for x in xs]
        + [pl.BlockSpec(w.shape, lambda m: (0, 0)) for w in wfs]
        + [pl.BlockSpec(w.shape, lambda m: (0, 0)) for w in wbs]
        + [pl.BlockSpec((1, G), lambda m: (0, 0)),
           pl.BlockSpec((1, G), lambda m: (0, 0))]
    )
    out_specs = [pl.BlockSpec((tm, G), lambda m: (m, 0)),
                 pl.BlockSpec((tm, G), lambda m: (m, 0))]
    out_shape = (jax.ShapeDtypeStruct((M, G), xs[0].dtype),
                 jax.ShapeDtypeStruct((M, G), xs[0].dtype))

    est = 0
    for x in xs:
        est += 2 * tm * x.shape[1] * x.dtype.itemsize            # double-buffered x tiles
    for w in list(wfs) + list(wbs):
        est += 2 * int(w.size) * w.dtype.itemsize                 # resident weights (2 bufs)
    est += 2 * 2 * tm * G * 4                                      # output tiles (f32 bound)

    return pl.pallas_call(
        _make_in_proj_kernel(n),
        out_shape=out_shape,
        grid_spec=pltpu.PrefetchScalarGridSpec(
            num_scalar_prefetch=0, grid=grid,
            in_specs=in_specs, out_specs=out_specs),
        compiler_params=_mosaic_params(("parallel",), est),
    )(*xs, *wfs, *wbs, b_f, b_b)


# ----------------------------------------------------------------------------
# Kernel 2: fused bidirectional LSTM recurrence for one layer.
# grid=(C,) over time chunks, strictly sequential ("arbitrary").
# At grid step c: forward advances over global times [c*Tc, (c+1)*Tc); backward advances over
# chunk C-1-c walked back-to-front.  State lives in fori_loop carries (vregs); VMEM scratch only
# carries (h, c) across chunks.  Recurrent weights are manually DMA'd once into a single-buffered
# VMEM scratch.  Outputs are per-direction (Tc, B, H) blocks.
# ----------------------------------------------------------------------------
def _bilstm_layer_kernel(gxf_ref, gxb_ref, whh_hbm, of_ref, ob_ref,
                         whh_scr, hf_scr, cf_scr, hb_scr, cb_scr, dma_sem):
    Tc, B, G = gxf_ref.shape          # G = 4H (gates for one direction)
    H = G // 4
    chunk = pl.program_id(0)

    @pl.when(chunk == 0)
    def _():
        # Weights DMA'd once; single-buffered residency for the whole grid.
        cp = pltpu.make_async_copy(whh_hbm, whh_scr, dma_sem)
        cp.start()
        cp.wait()
        hf_scr[...] = jnp.zeros_like(hf_scr)
        cf_scr[...] = jnp.zeros_like(cf_scr)
        hb_scr[...] = jnp.zeros_like(hb_scr)
        cb_scr[...] = jnp.zeros_like(cb_scr)

    whh_f = whh_scr[0]                # (H, 4H)
    whh_b = whh_scr[1]

    def cell(gx, h_prev, c_prev, w):
        # Only the (B, H) @ (H, 4H) recurrent matmul is on the per-step critical path.
        gates = gx.astype(jnp.float32) + jnp.dot(
            h_prev.astype(w.dtype), w, preferred_element_type=jnp.float32)
        sig = jax.nn.sigmoid(gates[:, :3 * H])   # one EUP dispatch for (i, f, o)
        g_g = jnp.tanh(gates[:, 3 * H:])         # one EUP dispatch for g
        i_g = sig[:, :H]
        f_g = sig[:, H:2 * H]
        o_g = sig[:, 2 * H:]
        c_new = f_g * c_prev + i_g * g_g
        h_new = o_g * jnp.tanh(c_new)
        return h_new, c_new

    def step(s, carry):
        h_f, c_f, h_b, c_b = carry
        l = Tc - 1 - s                # bwd walks its chunk back-to-front
        # Decoupled direction chains: independent matmuls / nonlinearities per direction.
        h_f, c_f = cell(gxf_ref[s], h_f, c_f, whh_f)
        h_b, c_b = cell(gxb_ref[l], h_b, c_b, whh_b)
        of_ref[pl.ds(s, 1), :, :] = h_f[None].astype(of_ref.dtype)
        ob_ref[pl.ds(l, 1), :, :] = h_b[None].astype(ob_ref.dtype)
        return (h_f, c_f, h_b, c_b)

    carry0 = (hf_scr[...], cf_scr[...], hb_scr[...], cb_scr[...])   # read once per chunk
    h_f, c_f, h_b, c_b = jax.lax.fori_loop(0, Tc, step, carry0, unroll=True)

    # Cross-chunk state carry written once per chunk.
    hf_scr[...] = h_f
    cf_scr[...] = c_f
    hb_scr[...] = h_b
    cb_scr[...] = c_b


def bilstm_layer(gx_f, gx_b, whh, *, time_chunk=None):
    """gx_f/gx_b: (T, B, 4H) per-direction input gates (i,f,o,g); whh: (2, H, 4H).
    Returns (out_f, out_b), each (T, B, H)."""
    T, B, G = gx_f.shape
    H = G // 4
    assert G % 128 == 0, "need 4*H to be a multiple of 128 lanes (H % 32 == 0)"
    if time_chunk is None:
        Tc = min(T, 8)                 # cap unroll depth / per-chunk VMEM (perf review)
        while T % Tc:
            Tc -= 1
    else:
        Tc = min(time_chunk, T)
        assert T % Tc == 0, "time_chunk must divide T"
    C = T // Tc

    itemsize = gx_f.dtype.itemsize
    est = (2 * 2 * Tc * B * G * itemsize        # double-buffered fwd/bwd gate input chunks
           + 2 * 2 * Tc * B * H * itemsize      # double-buffered fwd/bwd output chunks
           + 2 * H * G * whh.dtype.itemsize     # single-buffered resident recurrent weights
           + 4 * B * H * 4)                     # f32 h/c cross-chunk state scratch

    # NOTE: with B this small every matmul M-dim and sublane slice is masked; batch (or pad) B to
    # >= 8 (f32) / 16 (bf16), ideally 64-128, to get the recurrence off the latency floor.
    return pl.pallas_call(
        _bilstm_layer_kernel,
        out_shape=(jax.ShapeDtypeStruct((T, B, H), gx_f.dtype),
                   jax.ShapeDtypeStruct((T, B, H), gx_f.dtype)),
        grid_spec=pltpu.PrefetchScalarGridSpec(
            num_scalar_prefetch=0,
            grid=(C,),
            in_specs=[
                pl.BlockSpec((Tc, B, G), lambda c: (c, 0, 0)),
                pl.BlockSpec((Tc, B, G), lambda c: (C - 1 - c, 0, 0)),
                pl.BlockSpec(memory_space=pl.ANY),      # weights: manual single-buffered DMA
            ],
            out_specs=[
                pl.BlockSpec((Tc, B, H), lambda c: (c, 0, 0)),
                pl.BlockSpec((Tc, B, H), lambda c: (C - 1 - c, 0, 0)),
            ],
            scratch_shapes=[
                pltpu.VMEM((2, H, G), whh.dtype),        # resident recurrent weights (fwd, bwd)
                pltpu.VMEM((B, H), jnp.float32),         # h fwd (cross-chunk carry)
                pltpu.VMEM((B, H), jnp.float32),         # c fwd
                pltpu.VMEM((B, H), jnp.float32),         # h bwd
                pltpu.VMEM((B, H), jnp.float32),         # c bwd
                pltpu.SemaphoreType.DMA,
            ],
        ),
        compiler_params=_mosaic_params(("arbitrary",), est),  # time recurrence -> sequential
    )(gx_f, gx_b, whh)


# ----------------------------------------------------------------------------
# BiRNN forward (glue in JAX, hot path in Pallas)
# ----------------------------------------------------------------------------
def birnn_forward(fused, inputs, *, time_chunk=None, proj_tile_m=256):
    """inputs: (B, T) int32 token ids -> logits (B, 2)."""
    # inputs.permute(1, 0) then embedding lookup -> (T, B, E).
    # TODO(synk): embedding lookup is a data-dependent row gather; kept in plain jnp.take.
    x = jnp.take(fused["embedding"], inputs.T, axis=0)           # (T, B, E)
    T, B, E = x.shape

    xs = (x.reshape(T * B, E),)
    h_f = h_b = None
    for layer in fused["layers"]:
        H = layer["whh"].shape[1]
        # Hoisted, tiled input projection (all timesteps, both directions, contiguous outputs).
        gx_f, gx_b = input_projection(xs, layer["wih_f"], layer["wih_b"],
                                      layer["b_f"], layer["b_b"], tile_m=proj_tile_m)
        gx_f = gx_f.reshape(T, B, 4 * H)
        gx_b = gx_b.reshape(T, B, 4 * H)
        # Fused bidirectional recurrence; per-direction time-blocked outputs.
        h_f, h_b = bilstm_layer(gx_f, gx_b, layer["whh"], time_chunk=time_chunk)
        xs = (h_f.reshape(T * B, H), h_b.reshape(T * B, H))      # fed straight into next layer

    # encoding = cat(outputs[0], outputs[-1], -1) with outputs[t] = cat(h_f[t], h_b[t]).
    encoding = jnp.concatenate(
        [h_f[0], h_b[0], h_f[-1], h_b[-1]], axis=-1).astype(jnp.float32)   # (B, 4H)
    # TODO(synk): 2-wide decoder GEMM intentionally left to XLA (lane width 2 -> fully masked
    # store; launch overhead exceeds the work).
    return encoding @ fused["dec_w_t"] + fused["dec_b"]


# ----------------------------------------------------------------------------
# Parameter handling: PyTorch-faithful storage + fused/reordered kernel layout
# ----------------------------------------------------------------------------
def init_params(key, vocab_size, embed_size, num_hiddens, num_layers):
    """Parameters in PyTorch-native layout (weight_ih (4H,Din), gate order i,f,g,o, two biases)."""
    H = num_hiddens
    keys = iter(jax.random.split(key, 1 + num_layers * 2 * 4 + 2))

    def unif(k, shape, scale):
        return jax.random.uniform(k, shape, jnp.float32, -scale, scale)

    params = {"num_hiddens": H}
    params["embedding"] = jax.random.normal(next(keys), (vocab_size, embed_size), jnp.float32)

    k_lstm = 1.0 / float(H) ** 0.5
    layers = []
    for layer in range(num_layers):
        din = embed_size if layer == 0 else 2 * H
        dirs = []
        for _direction in range(2):   # 0 = forward, 1 = reverse
            w_ih = unif(next(keys), (4 * H, din), k_lstm)
            w_hh = unif(next(keys), (4 * H, H), k_lstm)
            b_ih = unif(next(keys), (4 * H,), k_lstm)
            b_hh = unif(next(keys), (4 * H,), k_lstm)
            dirs.append((w_ih, w_hh, b_ih, b_hh))
        layers.append(tuple(dirs))
    params["lstm"] = tuple(layers)

    k_dec = 1.0 / float(4 * H) ** 0.5
    params["dec_w"] = unif(next(keys), (2, 4 * H), k_dec)    # PyTorch Linear weight (out, in)
    params["dec_b"] = unif(next(keys), (2,), k_dec)
    return params


def _reorder_ifgo_to_ifog(w, axis=0):
    """PyTorch gate order (i, f, g, o) -> kernel order (i, f, o, g) along `axis`."""
    i, f, g, o = jnp.split(w, 4, axis=axis)
    return jnp.concatenate([i, f, o, g], axis=axis)


def prepare_fused_params(params, compute_dtype=jnp.bfloat16):
    """Repack PyTorch-layout parameters into the per-direction, pre-transposed kernel layout.

    Use compute_dtype=jnp.float32 on v5e (no bf16 VPU/EUP -> skip per-step casts)."""
    layers = []
    for li, layer in enumerate(params["lstm"]):
        wih_dirs, whh_dirs, b_dirs = [], [], []
        for (w_ih, w_hh, b_ih, b_hh) in layer:
            wih_dirs.append(_reorder_ifgo_to_ifog(w_ih).T.astype(compute_dtype))   # (Din, 4H)
            whh_dirs.append(_reorder_ifgo_to_ifog(w_hh).T.astype(compute_dtype))   # (H, 4H)
            b_dirs.append(_reorder_ifgo_to_ifog(b_ih + b_hh)[None, :].astype(jnp.float32))
        H = whh_dirs[0].shape[0]
        if li == 0:
            wih_f = (wih_dirs[0],)
            wih_b = (wih_dirs[1],)
        else:
            # Deeper layers consume (h_f, h_b) separately: split Din = 2H rows into two segments.
            wih_f = (wih_dirs[0][:H], wih_dirs[0][H:])
            wih_b = (wih_dirs[1][:H], wih_dirs[1][H:])
        layers.append(dict(
            wih_f=wih_f, wih_b=wih_b,
            b_f=b_dirs[0], b_b=b_dirs[1],                      # (1, 4H), folded b_ih + b_hh
            whh=jnp.stack(whh_dirs, axis=0),                   # (2, H, 4H): [fwd, bwd]
        ))
    return dict(
        embedding=params["embedding"].astype(compute_dtype),
        layers=layers,
        dec_w_t=params["dec_w"].T.astype(jnp.float32),         # (4H, 2)
        dec_b=params["dec_b"].astype(jnp.float32),             # (2,)
    )


# ----------------------------------------------------------------------------
# Pure-JAX reference (PyTorch LSTM semantics) for correctness checks
# ----------------------------------------------------------------------------
def _lstm_dir_ref(x, w_ih, w_hh, b_ih, b_hh):
    T, B, _ = x.shape
    H = w_hh.shape[1]

    def step(carry, x_t):
        h, c = carry
        gates = x_t @ w_ih.T + b_ih + h @ w_hh.T + b_hh
        i, f, g, o = jnp.split(gates, 4, axis=-1)
        c = jax.nn.sigmoid(f) * c + jax.nn.sigmoid(i) * jnp.tanh(g)
        h = jax.nn.sigmoid(o) * jnp.tanh(c)
        return (h, c), h

    zeros = jnp.zeros((B, H), jnp.float32)
    _, hs = jax.lax.scan(step, (zeros, zeros), x)
    return hs


def birnn_reference(params, inputs):
    x = jnp.take(params["embedding"], inputs.T, axis=0)
    for layer in params["lstm"]:
        fwd_p, bwd_p = layer
        h_fwd = _lstm_dir_ref(x, *fwd_p)
        h_bwd = _lstm_dir_ref(x[::-1], *bwd_p)[::-1]
        x = jnp.concatenate([h_fwd, h_bwd], axis=-1)
    encoding = jnp.concatenate([x[0], x[-1]], axis=-1)
    return encoding @ params["dec_w"].T + params["dec_b"]


# ----------------------------------------------------------------------------
if __name__ == "__main__":
    VOCAB_SIZE = 100
    EMBED_SIZE = 32
    NUM_HIDDENS = 32
    NUM_LAYERS = 2
    BATCH = 2
    SEQ_LEN = 8
    TIME_CHUNK = 4     # 2 grid steps per layer -> exercises the chunked state carry
    PROJ_TILE_M = 8    # M = T*B = 16 -> 2 grid steps in the input projection

    key = jax.random.PRNGKey(0)
    k_param, k_data = jax.random.split(key)
    params = init_params(k_param, VOCAB_SIZE, EMBED_SIZE, NUM_HIDDENS, NUM_LAYERS)
    inputs = jax.random.randint(k_data, (BATCH, SEQ_LEN), 0, VOCAB_SIZE, dtype=jnp.int32)

    ref = birnn_reference(params, inputs)
    fwd = jax.jit(functools.partial(birnn_forward, time_chunk=TIME_CHUNK,
                                    proj_tile_m=PROJ_TILE_M))

    # f32 compute path (v5e recommendation): tight check against the pure-JAX reference.
    out_f32 = fwd(prepare_fused_params(params, jnp.float32), inputs)
    jax.block_until_ready(out_f32)
    assert out_f32.shape == (BATCH, 2), out_f32.shape
    assert jnp.allclose(out_f32, ref, rtol=1e-3, atol=1e-3), (out_f32, ref)

    # bf16 compute path (MXU-native on v6e/v7x): looser tolerance vs the f32 reference.
    out_bf16 = fwd(prepare_fused_params(params, jnp.bfloat16), inputs)
    jax.block_until_ready(out_bf16)
    assert out_bf16.shape == (BATCH, 2), out_bf16.shape
    assert jnp.allclose(out_bf16.astype(jnp.float32), ref, rtol=5e-2, atol=5e-2), (out_bf16, ref)

    print("KERNEL_OK")
</pallas_src>

<mosaic_0001>
module attributes {stable_mosaic.version = 11 : i64} {
  func.func @kernel(%arg0: i32, %arg1: memref<8x32xf32, #tpu.memory_space<vmem>>, %arg2: memref<32x128xf32, #tpu.memory_space<vmem>>, %arg3: memref<32x128xf32, #tpu.memory_space<vmem>>, %arg4: memref<1x128xf32, #tpu.memory_space<vmem>>, %arg5: memref<1x128xf32, #tpu.memory_space<vmem>>, %arg6: memref<8x128xf32, #tpu.memory_space<vmem>>, %arg7: memref<8x128xf32, #tpu.memory_space<vmem>>) attributes {dimension_semantics = [#tpu.dimension_semantics<parallel>], iteration_bounds = array<i64: 2>, scalar_prefetch = 0 : i64, scratch_operands = 0 : i64, tpu.core_type = #tpu.core_type<tc>, window_params = [{transform_indices = @transform_0, window_bounds = array<i64: 8, 32>}, {pipeline_mode = #tpu.pipeline_mode<synchronous>, transform_indices = @transform_1, window_bounds = array<i64: 32, 128>}, {pipeline_mode = #tpu.pipeline_mode<synchronous>, transform_indices = @transform_2, window_bounds = array<i64: 32, 128>}, {pipeline_mode = #tpu.pipeline_mode<synchronous>, transform_indices = @transform_3, window_bounds = array<i64: 1, 128>}, {pipeline_mode = #tpu.pipeline_mode<synchronous>, transform_indices = @transform_4, window_bounds = array<i64: 1, 128>}, {transform_indices = @transform_5, window_bounds = array<i64: 8, 128>}, {transform_indices = @transform_6, window_bounds = array<i64: 8, 128>}]} {
    %c0 = arith.constant 0 : index
    %c0_0 = arith.constant 0 : index
    %0 = vector.load %arg4[%c0, %c0_0] : memref<1x128xf32, #tpu.memory_space<vmem>>, vector<1x128xf32>
    %c0_1 = arith.constant 0 : index
    %c0_2 = arith.constant 0 : index
    %1 = vector.load %arg5[%c0_1, %c0_2] : memref<1x128xf32, #tpu.memory_space<vmem>>, vector<1x128xf32>
    %c0_3 = arith.constant 0 : index
    %c0_4 = arith.constant 0 : index
    %2 = vector.load %arg1[%c0_3, %c0_4] : memref<8x32xf32, #tpu.memory_space<vmem>>, vector<8x32xf32>
    %c0_5 = arith.constant 0 : index
    %c0_6 = arith.constant 0 : index
    %3 = vector.load %arg2[%c0_5, %c0_6] : memref<32x128xf32, #tpu.memory_space<vmem>>, vector<32x128xf32>
    %cst = arith.constant dense<0.000000e+00> : vector<8x128xf32>
    %4 = tpu.matmul %2, %3, %cst {dimension_numbers = #tpu.dot_dimension_numbers<[1], [0], [0], [1], [0, 0, 1, 1], [], []>} : vector<8x32xf32>, vector<32x128xf32>, vector<8x128xf32> -> vector<8x128xf32>
    %5 = vector.broadcast %0 : vector<1x128xf32> to vector<8x128xf32>
    %6 = arith.addf %5, %4 : vector<8x128xf32>
    %c0_7 = arith.constant 0 : index
    %c0_8 = arith.constant 0 : index
    %7 = vector.load %arg3[%c0_7, %c0_8] : memref<32x128xf32, #tpu.memory_space<vmem>>, vector<32x128xf32>
    %cst_9 = arith.constant dense<0.000000e+00> : vector<8x128xf32>
    %8 = tpu.matmul %2, %7, %cst_9 {dimension_numbers = #tpu.dot_dimension_numbers<[1], [0], [0], [1], [0, 0, 1, 1], [], []>} : vector<8x32xf32>, vector<32x128xf32>, vector<8x128xf32> -> vector<8x128xf32>
    %9 = vector.broadcast %1 : vector<1x128xf32> to vector<8x128xf32>
    %10 = arith.addf %9, %8 : vector<8x128xf32>
    %c0_10 = arith.constant 0 : index
    %c0_11 = arith.constant 0 : index
    %11 = vector.load %arg6[%c0_10, %c0_11] : memref<8x128xf32, #tpu.memory_space<vmem>>, vector<8x128xf32>
    tpu.vector_store %arg6[%c0_10, %c0_11], %6 {strides = array<i32>} : memref<8x128xf32, #tpu.memory_space<vmem>>, vector<8x128xf32>,
    %c0_12 = arith.constant 0 : index
    %c0_13 = arith.constant 0 : index
    %12 = vector.load %arg7[%c0_12, %c0_13] : memref<8x128xf32, #tpu.memory_space<vmem>>, vector<8x128xf32>
    tpu.vector_store %arg7[%c0_12, %c0_13], %10 {strides = array<i32>} : memref<8x128xf32, #tpu.memory_space<vmem>>, vector<8x128xf32>,
    return
  }
  func.func @transform_0(%arg0: i32) -> (i32, i32) {
    %c0_i32 = arith.constant 0 : i32
    %c0_i32_0 = arith.constant 0 : i32
    return %arg0, %c0_i32 : i32, i32
  }
  func.func @transform_1(%arg0: i32) -> (i32, i32) {
    %c0_i32 = arith.constant 0 : i32
    %c0_i32_0 = arith.constant 0 : i32
    %c0_i32_1 = arith.constant 0 : i32
    return %c0_i32, %c0_i32_0 : i32, i32
  }
  func.func @transform_2(%arg0: i32) -> (i32, i32) {
    %c0_i32 = arith.constant 0 : i32
    %c0_i32_0 = arith.constant 0 : i32
    %c0_i32_1 = arith.constant 0 : i32
    return %c0_i32, %c0_i32_0 : i32, i32
  }
  func.func @transform_3(%arg0: i32) -> (i32, i32) {
    %c0_i32 = arith.constant 0 : i32
    %c0_i32_0 = arith.constant 0 : i32
    %c0_i32_1 = arith.constant 0 : i32
    return %c0_i32, %c0_i32_0 : i32, i32
  }
  func.func @transform_4(%arg0: i32) -> (i32, i32) {
    %c0_i32 = arith.constant 0 : i32
    %c0_i32_0 = arith.constant 0 : i32
    %c0_i32_1 = arith.constant 0 : i32
    return %c0_i32, %c0_i32_0 : i32, i32
  }
  func.func @transform_5(%arg0: i32) -> (i32, i32) {
    %c0_i32 = arith.constant 0 : i32
    %c0_i32_0 = arith.constant 0 : i32
    return %arg0, %c0_i32 : i32, i32
  }
  func.func @transform_6(%arg0: i32) -> (i32, i32) {
    %c0_i32 = arith.constant 0 : i32
    %c0_i32_0 = arith.constant 0 : i32
    return %arg0, %c0_i32 : i32, i32
  }
}

module attributes {stable_mosaic.version = 11 : i64} {
  func.func @kernel(%arg0: i32, %arg1: memref<8x32xf32, #tpu.memory_space<vmem>>, %arg2: memref<8x32xf32, #tpu.memory_space<vmem>>, %arg3: memref<32x128xf32, #tpu.memory_space<vmem>>, %arg4: memref<32x128xf32, #tpu.memory_space<vmem>>, %arg5: memref<32x128xf32, #tpu.memory_space<vmem>>, %arg6: memref<32x128xf32, #tpu.memory_space<vmem>>, %arg7: memref<1x128xf32, #tpu.memory_space<vmem>>, %arg8: memref<1x128xf32, #tpu.memory_space<vmem>>, %arg9: memref<8x128xf32, #tpu.memory_space<vmem>>, %arg10: memref<8x128xf32, #tpu.memory_space<vmem>>) attributes {dimension_semantics = [#tpu.dimension_semantics<parallel>], iteration_bounds = array<i64: 2>, scalar_prefetch = 0 : i64, scratch_operands = 0 : i64, tpu.core_type = #tpu.core_type<tc>, window_params = [{transform_indices = @transform_0, window_bounds = array<i64: 8, 32>}, {transform_indices = @transform_1, window_bounds = array<i64: 8, 32>}, {pipeline_mode = #tpu.pipeline_mode<synchronous>, transform_indices = @transform_2, window_bounds = array<i64: 32, 128>}, {pipeline_mode = #tpu.pipeline_mode<synchronous>, transform_indices = @transform_3, window_bounds = array<i64: 32, 128>}, {pipeline_mode = #tpu.pipeline_mode<synchronous>, transform_indices = @transform_4, window_bounds = array<i64: 32, 128>}, {pipeline_mode = #tpu.pipeline_mode<synchronous>, transform_indices = @transform_5, window_bounds = array<i64: 32, 128>}, {pipeline_mode = #tpu.pipeline_mode<synchronous>, transform_indices = @transform_6, window_bounds = array<i64: 1, 128>}, {pipeline_mode = #tpu.pipeline_mode<synchronous>, transform_indices = @transform_7, window_bounds = array<i64: 1, 128>}, {transform_indices = @transform_8, window_bounds = array<i64: 8, 128>}, {transform_indices = @transform_9, window_bounds = array<i64: 8, 128>}]} {
    %c0 = arith.constant 0 : index
    %c0_0 = arith.constant 0 : index
    %0 = vector.load %arg7[%c0, %c0_0] : memref<1x128xf32, #tpu.memory_space<vmem>>, vector<1x128xf32>
    %c0_1 = arith.constant 0 : index
    %c0_2 = arith.constant 0 : index
    %1 = vector.load %arg8[%c0_1, %c0_2] : memref<1x128xf32, #tpu.memory_space<vmem>>, vector<1x128xf32>
    %c0_3 = arith.constant 0 : index
    %c0_4 = arith.constant 0 : index
    %2 = vector.load %arg1[%c0_3, %c0_4] : memref<8x32xf32, #tpu.memory_space<vmem>>, vector<8x32xf32>
    %c0_5 = arith.constant 0 : index
    %c0_6 = arith.constant 0 : index
    %3 = vector.load %arg3[%c0_5, %c0_6] : memref<32x128xf32, #tpu.memory_space<vmem>>, vector<32x128xf32>
    %cst = arith.constant dense<0.000000e+00> : vector<8x128xf32>
    %4 = tpu.matmul %2, %3, %cst {dimension_numbers = #tpu.dot_dimension_numbers<[1], [0], [0], [1], [0, 0, 1, 1], [], []>} : vector<8x32xf32>, vector<32x128xf32>, vector<8x128xf32> -> vector<8x128xf32>
    %5 = vector.broadcast %0 : vector<1x128xf32> to vector<8x128xf32>
    %6 = arith.addf %5, %4 : vector<8x128xf32>
    %c0_7 = arith.constant 0 : index
    %c0_8 = arith.constant 0 : index
    %7 = vector.load %arg5[%c0_7, %c0_8] : memref<32x128xf32, #tpu.memory_space<vmem>>, vector<32x128xf32>
    %cst_9 = arith.constant dense<0.000000e+00> : vector<8x128xf32>
    %8 = tpu.matmul %2, %7, %cst_9 {dimension_numbers = #tpu.dot_dimension_numbers<[1], [0], [0], [1], [0, 0, 1, 1], [], []>} : vector<8x32xf32>, vector<32x128xf32>, vector<8x128xf32> -> vector<8x128xf32>
    %9 = vector.broadcast %1 : vector<1x128xf32> to vector<8x128xf32>
    %10 = arith.addf %9, %8 : vector<8x128xf32>
    %c0_10 = arith.constant 0 : index
    %c0_11 = arith.constant 0 : index
    %11 = vector.load %arg2[%c0_10, %c0_11] : memref<8x32xf32, #tpu.memory_space<vmem>>, vector<8x32xf32>
    %c0_12 = arith.constant 0 : index
    %c0_13 = arith.constant 0 : index
    %12 = vector.load %arg4[%c0_12, %c0_13] : memref<32x128xf32, #tpu.memory_space<vmem>>, vector<32x128xf32>
    %cst_14 = arith.constant dense<0.000000e+00> : vector<8x128xf32>
    %13 = tpu.matmul %11, %12, %cst_14 {dimension_numbers = #tpu.dot_dimension_numbers<[1], [0], [0], [1], [0, 0, 1, 1], [], []>} : vector<8x32xf32>, vector<32x128xf32>, vector<8x128xf32> -> vector<8x128xf32>
    %14 = arith.addf %6, %13 : vector<8x128xf32>
    %c0_15 = arith.constant 0 : index
    %c0_16 = arith.constant 0 : index
    %15 = vector.load %arg6[%c0_15, %c0_16] : memref<32x128xf32, #tpu.memory_space<vmem>>, vector<32x128xf32>
    %cst_17 = arith.constant dense<0.000000e+00> : vector<8x128xf32>
    %16 = tpu.matmul %11, %15, %cst_17 {dimension_numbers = #tpu.dot_dimension_numbers<[1], [0], [0], [1], [0, 0, 1, 1], [], []>} : vector<8x32xf32>, vector<32x128xf32>, vector<8x128xf32> -> vector<8x128xf32>
    %17 = arith.addf %10, %16 : vector<8x128xf32>
    %c0_18 = arith.constant 0 : index
    %c0_19 = arith.constant 0 : index
    %18 = vector.load %arg9[%c0_18, %c0_19] : memref<8x128xf32, #tpu.memory_space<vmem>>, vector<8x128xf32>
    tpu.vector_store %arg9[%c0_18, %c0_19], %14 {strides = array<i32>} : memref<8x128xf32, #tpu.memory_space<vmem>>, vector<8x128xf32>,
    %c0_20 = arith.constant 0 : index
    %c0_21 = arith.constant 0 : index
    %19 = vector.load %arg10[%c0_20, %c0_21] : memref<8x128xf32, #tpu.memory_space<vmem>>, vector<8x128xf32>
    tpu.vector_store %arg10[%c0_20, %c0_21], %17 {strides = array<i32>} : memref<8x128xf32, #tpu.memory_space<vmem>>, vector<8x128xf32>,
    return
  }
  func.func @transform_0(%arg0: i32) -> (i32, i32) {
    %c0_i32 = arith.constant 0 : i32
    %c0_i32_0 = arith.constant 0 : i32
    return %arg0, %c0_i32 : i32, i32
  }
  func.func @transform_1(%arg0: i32) -> (i32, i32) {
    %c0_i32 = arith.constant 0 : i32
    %c0_i32_0 = arith.constant 0 : i32
    return %arg0, %c0_i32 : i32, i32
  }
  func.func @transform_2(%arg0: i32) -> (i32, i32) {
    %c0_i32 = arith.constant 0 : i32
    %c0_i32_0 = arith.constant 0 : i32
    %c0_i32_1 = arith.constant 0 : i32
    return %c0_i32, %c0_i32_0 : i32, i32
  }
  func.func @transform_3(%arg0: i32) -> (i32, i32) {
    %c0_i32 = arith.constant 0 : i32
    %c0_i32_0 = arith.constant 0 : i32
    %c0_i32_1 = arith.constant 0 : i32
    return %c0_i32, %c0_i32_0 : i32, i32
  }
  func.func @transform_4(%arg0: i32) -> (i32, i32) {
    %c0_i32 = arith.constant 0 : i32
    %c0_i32_0 = arith.constant 0 : i32
    %c0_i32_1 = arith.constant 0 : i32
    return %c0_i32, %c0_i32_0 : i32, i32
  }
  func.func @transform_5(%arg0: i32) -> (i32, i32) {
    %c0_i32 = arith.constant 0 : i32
    %c0_i32_0 = arith.constant 0 : i32
    %c0_i32_1 = arith.constant 0 : i32
    return %c0_i32, %c0_i32_0 : i32, i32
  }
  func.func @transform_6(%arg0: i32) -> (i32, i32) {
    %c0_i32 = arith.constant 0 : i32
    %c0_i32_0 = arith.constant 0 : i32
    %c0_i32_1 = arith.constant 0 : i32
    return %c0_i32, %c0_i32_0 : i32, i32
  }
  func.func @transform_7(%arg0: i32) -> (i32, i32) {
    %c0_i32 = arith.constant 0 : i32
    %c0_i32_0 = arith.constant 0 : i32
    %c0_i32_1 = arith.constant 0 : i32
    return %c0_i32, %c0_i32_0 : i32, i32
  }
  func.func @transform_8(%arg0: i32) -> (i32, i32) {
    %c0_i32 = arith.constant 0 : i32
    %c0_i32_0 = arith.constant 0 : i32
    return %arg0, %c0_i32 : i32, i32
  }
  func.func @transform_9(%arg0: i32) -> (i32, i32) {
    %c0_i32 = arith.constant 0 : i32
    %c0_i32_0 = arith.constant 0 : i32
    return %arg0, %c0_i32 : i32, i32
  }
}

module attributes {stable_mosaic.version = 11 : i64} {
  func.func @_bilstm_layer_kernel(%arg0: i32, %arg1: memref<4x2x128xf32, #tpu.memory_space<vmem>>, %arg2: memref<4x2x128xf32, #tpu.memory_space<vmem>>, %arg3: memref<2x32x128xf32, #tpu.memory_space<any>>, %arg4: memref<4x2x32xf32, #tpu.memory_space<vmem>>, %arg5: memref<4x2x32xf32, #tpu.memory_space<vmem>>, %arg6: memref<2x32x128xf32, #tpu.memory_space<vmem>>, %arg7: memref<2x32xf32, #tpu.memory_space<vmem>>, %arg8: memref<2x32xf32, #tpu.memory_space<vmem>>, %arg9: memref<2x32xf32, #tpu.memory_space<vmem>>, %arg10: memref<2x32xf32, #tpu.memory_space<vmem>>, %arg11: memref<!tpu.dma_semaphore, #tpu.memory_space<semaphore_mem>>) attributes {dimension_semantics = [#tpu.dimension_semantics<arbitrary>], iteration_bounds = array<i64: 2>, scalar_prefetch = 0 : i64, scratch_operands = 6 : i64, tpu.core_type = #tpu.core_type<tc>, window_params = [{transform_indices = @transform_0, window_bounds = array<i64: 4, 2, 128>}, {transform_indices = @transform_1, window_bounds = array<i64: 4, 2, 128>}, {}, {transform_indices = @transform_3, window_bounds = array<i64: 4, 2, 32>}, {transform_indices = @transform_4, window_bounds = array<i64: 4, 2, 32>}]} {
    %c0_i32 = arith.constant 0 : i32
    %0 = arith.cmpi eq, %arg0, %c0_i32 : i32
    %1 = arith.extui %0 : i1 to i32
    %c0_i32_0 = arith.constant 0 : i32
    %2 = arith.cmpi ne, %1, %c0_i32_0 : i32
    scf.if %2 {
      tpu.enqueue_dma source(%arg3 : memref<2x32x128xf32, #tpu.memory_space<any>>) target(%arg6 : memref<2x32x128xf32, #tpu.memory_space<vmem>>) target_semaphore(%arg11 : memref<!tpu.dma_semaphore, #tpu.memory_space<semaphore_mem>>)
      tpu.wait_dma2 semaphore(%arg11 : memref<!tpu.dma_semaphore, #tpu.memory_space<semaphore_mem>>) src(%arg3 : memref<2x32x128xf32, #tpu.memory_space<any>>) dst(%arg6 : memref<2x32x128xf32, #tpu.memory_space<vmem>>)
      %cst_73 = arith.constant 0.000000e+00 : f32
      %211 = vector.broadcast %cst_73 : f32 to vector<2x32xf32>
      %c0_74 = arith.constant 0 : index
      %c0_75 = arith.constant 0 : index
      %212 = vector.load %arg7[%c0_74, %c0_75] : memref<2x32xf32, #tpu.memory_space<vmem>>, vector<2x32xf32>
      tpu.vector_store %arg7[%c0_74, %c0_75], %211 {strides = array<i32>} : memref<2x32xf32, #tpu.memory_space<vmem>>, vector<2x32xf32>,
      %cst_76 = arith.constant 0.000000e+00 : f32
      %213 = vector.broadcast %cst_76 : f32 to vector<2x32xf32>
      %c0_77 = arith.constant 0 : index
      %c0_78 = arith.constant 0 : index
      %214 = vector.load %arg8[%c0_77, %c0_78] : memref<2x32xf32, #tpu.memory_space<vmem>>, vector<2x32xf32>
      tpu.vector_store %arg8[%c0_77, %c0_78], %213 {strides = array<i32>} : memref<2x32xf32, #tpu.memory_space<vmem>>, vector<2x32xf32>,
      %cst_79 = arith.constant 0.000000e+00 : f32
      %215 = vector.broadcast %cst_79 : f32 to vector<2x32xf32>
      %c0_80 = arith.constant 0 : index
      %c0_81 = arith.constant 0 : index
      %216 = vector.load %arg9[%c0_80, %c0_81] : memref<2x32xf32, #tpu.memory_space<vmem>>, vector<2x32xf32>
      tpu.vector_store %arg9[%c0_80, %c0_81], %215 {strides = array<i32>} : memref<2x32xf32, #tpu.memory_space<vmem>>, vector<2x32xf32>,
      %cst_82 = arith.constant 0.000000e+00 : f32
      %217 = vector.broadcast %cst_82 : f32 to vector<2x32xf32>
      %c0_83 = arith.constant 0 : index
      %c0_84 = arith.constant 0 : index
      %218 = vector.load %arg10[%c0_83, %c0_84] : memref<2x32xf32, #tpu.memory_space<vmem>>, vector<2x32xf32>
      tpu.vector_store %arg10[%c0_83, %c0_84], %217 {strides = array<i32>} : memref<2x32xf32, #tpu.memory_space<vmem>>, vector<2x32xf32>,
    } else {
    }
    %c0 = arith.constant 0 : index
    %c0_1 = arith.constant 0 : index
    %c0_2 = arith.constant 0 : index
    %3 = vector.load %arg6[%c0, %c0_1, %c0_2] : memref<2x32x128xf32, #tpu.memory_space<vmem>>, vector<1x32x128xf32>
    %4 = vector.shape_cast %3 : vector<1x32x128xf32> to vector<32x128xf32>
    %c1 = arith.constant 1 : index
    %c0_3 = arith.constant 0 : index
    %c0_4 = arith.constant 0 : index
    %5 = vector.load %arg6[%c1, %c0_3, %c0_4] : memref<2x32x128xf32, #tpu.memory_space<vmem>>, vector<1x32x128xf32>
    %6 = vector.shape_cast %5 : vector<1x32x128xf32> to vector<32x128xf32>
    %c0_5 = arith.constant 0 : index
    %c0_6 = arith.constant 0 : index
    %7 = vector.load %arg7[%c0_5, %c0_6] : memref<2x32xf32, #tpu.memory_space<vmem>>, vector<2x32xf32>
    %c0_7 = arith.constant 0 : index
    %c0_8 = arith.constant 0 : index
    %8 = vector.load %arg8[%c0_7, %c0_8] : memref<2x32xf32, #tpu.memory_space<vmem>>, vector<2x32xf32>
    %c0_9 = arith.constant 0 : index
    %c0_10 = arith.constant 0 : index
    %9 = vector.load %arg9[%c0_9, %c0_10] : memref<2x32xf32, #tpu.memory_space<vmem>>, vector<2x32xf32>
    %c0_11 = arith.constant 0 : index
    %c0_12 = arith.constant 0 : index
    %10 = vector.load %arg10[%c0_11, %c0_12] : memref<2x32xf32, #tpu.memory_space<vmem>>, vector<2x32xf32>
    %c0_i32_13 = arith.constant 0 : i32
    %c3_i32 = arith.constant 3 : i32
    %11 = arith.subi %c3_i32, %c0_i32_13 : i32
    %12 = arith.index_cast %c0_i32_13 : i32 to index
    %c0_14 = arith.constant 0 : index
    %c0_15 = arith.constant 0 : index
    %13 = vector.load %arg1[%12, %c0_14, %c0_15] : memref<4x2x128xf32, #tpu.memory_space<vmem>>, vector<1x2x128xf32>
    %14 = vector.shape_cast %13 : vector<1x2x128xf32> to vector<2x128xf32>
    %cst = arith.constant dense<0.000000e+00> : vector<2x128xf32>
    %15 = tpu.matmul %7, %4, %cst {dimension_numbers = #tpu.dot_dimension_numbers<[1], [0], [0], [1], [0, 0, 1, 1], [], []>} : vector<2x32xf32>, vector<32x128xf32>, vector<2x128xf32> -> vector<2x128xf32>
    %16 = arith.addf %14, %15 : vector<2x128xf32>
    %17 = vector.extract_strided_slice %16 {offsets = [0, 0], sizes = [2, 96], strides = [1, 1]} : vector<2x128xf32> to vector<2x96xf32>
    %18 = arith.negf %17 : vector<2x96xf32>
    %19 = math.exp %18 : vector<2x96xf32>
    %cst_16 = arith.constant 1.000000e+00 : f32
    %20 = vector.broadcast %cst_16 : f32 to vector<2x96xf32>
    %21 = arith.addf %20, %19 : vector<2x96xf32>
    %22 = arith.divf %20, %21 : vector<2x96xf32>
    %23 = vector.extract_strided_slice %16 {offsets = [0, 96], sizes = [2, 32], strides = [1, 1]} : vector<2x128xf32> to vector<2x32xf32>
    %24 = math.tanh %23 : vector<2x32xf32>
    %25 = vector.extract_strided_slice %22 {offsets = [0, 0], sizes = [2, 32], strides = [1, 1]} : vector<2x96xf32> to vector<2x32xf32>
    %26 = vector.extract_strided_slice %22 {offsets = [0, 32], sizes = [2, 32], strides = [1, 1]} : vector<2x96xf32> to vector<2x32xf32>
    %27 = vector.extract_strided_slice %22 {offsets = [0, 64], sizes = [2, 32], strides = [1, 1]} : vector<2x96xf32> to vector<2x32xf32>
    %28 = arith.mulf %26, %8 : vector<2x32xf32>
    %29 = arith.mulf %25, %24 : vector<2x32xf32>
    %30 = arith.addf %28, %29 : vector<2x32xf32>
    %31 = math.tanh %30 : vector<2x32xf32>
    %32 = arith.mulf %27, %31 : vector<2x32xf32>
    %33 = arith.index_cast %11 : i32 to index
    %c0_17 = arith.constant 0 : index
    %c0_18 = arith.constant 0 : index
    %34 = vector.load %arg2[%33, %c0_17, %c0_18] : memref<4x2x128xf32, #tpu.memory_space<vmem>>, vector<1x2x128xf32>
    %35 = vector.shape_cast %34 : vector<1x2x128xf32> to vector<2x128xf32>
    %cst_19 = arith.constant dense<0.000000e+00> : vector<2x128xf32>
    %36 = tpu.matmul %9, %6, %cst_19 {dimension_numbers = #tpu.dot_dimension_numbers<[1], [0], [0], [1], [0, 0, 1, 1], [], []>} : vector<2x32xf32>, vector<32x128xf32>, vector<2x128xf32> -> vector<2x128xf32>
    %37 = arith.addf %35, %36 : vector<2x128xf32>
    %38 = vector.extract_strided_slice %37 {offsets = [0, 0], sizes = [2, 96], strides = [1, 1]} : vector<2x128xf32> to vector<2x96xf32>
    %39 = arith.negf %38 : vector<2x96xf32>
    %40 = math.exp %39 : vector<2x96xf32>
    %cst_20 = arith.constant 1.000000e+00 : f32
    %41 = vector.broadcast %cst_20 : f32 to vector<2x96xf32>
    %42 = arith.addf %41, %40 : vector<2x96xf32>
    %43 = arith.divf %41, %42 : vector<2x96xf32>
    %44 = vector.extract_strided_slice %37 {offsets = [0, 96], sizes = [2, 32], strides = [1, 1]} : vector<2x128xf32> to vector<2x32xf32>
    %45 = math.tanh %44 : vector<2x32xf32>
    %46 = vector.extract_strided_slice %43 {offsets = [0, 0], sizes = [2, 32], strides = [1, 1]} : vector<2x96xf32> to vector<2x32xf32>
    %47 = vector.extract_strided_slice %43 {offsets = [0, 32], sizes = [2, 32], strides = [1, 1]} : vector<2x96xf32> to vector<2x32xf32>
    %48 = vector.extract_strided_slice %43 {offsets = [0, 64], sizes = [2, 32], strides = [1, 1]} : vector<2x96xf32> to vector<2x32xf32>
    %49 = arith.mulf %47, %10 : vector<2x32xf32>
    %50 = arith.mulf %46, %45 : vector<2x32xf32>
    %51 = arith.addf %49, %50 : vector<2x32xf32>
    %52 = math.tanh %51 : vector<2x32xf32>
    %53 = arith.mulf %48, %52 : vector<2x32xf32>
    %54 = vector.shape_cast %32 : vector<2x32xf32> to vector<1x2x32xf32>
    %55 = arith.index_cast %c0_i32_13 : i32 to index
    %c0_21 = arith.constant 0 : index
    %c0_22 = arith.constant 0 : index
    %56 = vector.load %arg4[%55, %c0_21, %c0_22] : memref<4x2x32xf32, #tpu.memory_space<vmem>>, vector<1x2x32xf32>
    tpu.vector_store %arg4[%55, %c0_21, %c0_22], %54 {strides = array<i32>} : memref<4x2x32xf32, #tpu.memory_space<vmem>>, vector<1x2x32xf32>,
    %57 = vector.shape_cast %53 : vector<2x32xf32> to vector<1x2x32xf32>
    %58 = arith.index_cast %11 : i32 to index
    %c0_23 = arith.constant 0 : index
    %c0_24 = arith.constant 0 : index
    %59 = vector.load %arg5[%58, %c0_23, %c0_24] : memref<4x2x32xf32, #tpu.memory_space<vmem>>, vector<1x2x32xf32>
    tpu.vector_store %arg5[%58, %c0_23, %c0_24], %57 {strides = array<i32>} : memref<4x2x32xf32, #tpu.memory_space<vmem>>, vector<1x2x32xf32>,
    %c1_i32 = arith.constant 1 : i32
    %c3_i32_25 = arith.constant 3 : i32
    %60 = arith.subi %c3_i32_25, %c1_i32 : i32
    %61 = arith.index_cast %c1_i32 : i32 to index
    %c0_26 = arith.constant 0 : index
    %c0_27 = arith.constant 0 : index
    %62 = vector.load %arg1[%61, %c0_26, %c0_27] : memref<4x2x128xf32, #tpu.memory_space<vmem>>, vector<1x2x128xf32>
    %63 = vector.shape_cast %62 : vector<1x2x128xf32> to vector<2x128xf32>
    %cst_28 = arith.constant dense<0.000000e+00> : vector<2x128xf32>
    %64 = tpu.matmul %32, %4, %cst_28 {dimension_numbers = #tpu.dot_dimension_numbers<[1], [0], [0], [1], [0, 0, 1, 1], [], []>} : vector<2x32xf32>, vector<32x128xf32>, vector<2x128xf32> -> vector<2x128xf32>
    %65 = arith.addf %63, %64 : vector<2x128xf32>
    %66 = vector.extract_strided_slice %65 {offsets = [0, 0], sizes = [2, 96], strides = [1, 1]} : vector<2x128xf32> to vector<2x96xf32>
    %67 = arith.negf %66 : vector<2x96xf32>
    %68 = math.exp %67 : vector<2x96xf32>
    %cst_29 = arith.constant 1.000000e+00 : f32
    %69 = vector.broadcast %cst_29 : f32 to vector<2x96xf32>
    %70 = arith.addf %69, %68 : vector<2x96xf32>
    %71 = arith.divf %69, %70 : vector<2x96xf32>
    %72 = vector.extract_strided_slice %65 {offsets = [0, 96], sizes = [2, 32], strides = [1, 1]} : vector<2x128xf32> to vector<2x32xf32>
    %73 = math.tanh %72 : vector<2x32xf32>
    %74 = vector.extract_strided_slice %71 {offsets = [0, 0], sizes = [2, 32], strides = [1, 1]} : vector<2x96xf32> to vector<2x32xf32>
    %75 = vector.extract_strided_slice %71 {offsets = [0, 32], sizes = [2, 32], strides = [1, 1]} : vector<2x96xf32> to vector<2x32xf32>
    %76 = vector.extract_strided_slice %71 {offsets = [0, 64], sizes = [2, 32], strides = [1, 1]} : vector<2x96xf32> to vector<2x32xf32>
    %77 = arith.mulf %75, %30 : vector<2x32xf32>
    %78 = arith.mulf %74, %73 : vector<2x32xf32>
    %79 = arith.addf %77, %78 : vector<2x32xf32>
    %80 = math.tanh %79 : vector<2x32xf32>
    %81 = arith.mulf %76, %80 : vector<2x32xf32>
    %82 = arith.index_cast %60 : i32 to index
    %c0_30 = arith.constant 0 : index
    %c0_31 = arith.constant 0 : index
    %83 = vector.load %arg2[%82, %c0_30, %c0_31] : memref<4x2x128xf32, #tpu.memory_space<vmem>>, vector<1x2x128xf32>
    %84 = vector.shape_cast %83 : vector<1x2x128xf32> to vector<2x128xf32>
    %cst_32 = arith.constant dense<0.000000e+00> : vector<2x128xf32>
    %85 = tpu.matmul %53, %6, %cst_32 {dimension_numbers = #tpu.dot_dimension_numbers<[1], [0], [0], [1], [0, 0, 1, 1], [], []>} : vector<2x32xf32>, vector<32x128xf32>, vector<2x128xf32> -> vector<2x128xf32>
    %86 = arith.addf %84, %85 : vector<2x128xf32>
    %87 = vector.extract_strided_slice %86 {offsets = [0, 0], sizes = [2, 96], strides = [1, 1]} : vector<2x128xf32> to vector<2x96xf32>
    %88 = arith.negf %87 : vector<2x96xf32>
    %89 = math.exp %88 : vector<2x96xf32>
    %cst_33 = arith.constant 1.000000e+00 : f32
    %90 = vector.broadcast %cst_33 : f32 to vector<2x96xf32>
    %91 = arith.addf %90, %89 : vector<2x96xf32>
    %92 = arith.divf %90, %91 : vector<2x96xf32>
    %93 = vector.extract_strided_slice %86 {offsets = [0, 96], sizes = [2, 32], strides = [1, 1]} : vector<2x128xf32> to vector<2x32xf32>
    %94 = math.tanh %93 : vector<2x32xf32>
    %95 = vector.extract_strided_slice %92 {offsets = [0, 0], sizes = [2, 32], strides = [1, 1]} : vector<2x96xf32> to vector<2x32xf32>
    %96 = vector.extract_strided_slice %92 {offsets = [0, 32], sizes = [2, 32], strides = [1, 1]} : vector<2x96xf32> to vector<2x32xf32>
    %97 = vector.extract_strided_slice %92 {offsets = [0, 64], sizes = [2, 32], strides = [1, 1]} : vector<2x96xf32> to vector<2x32xf32>
    %98 = arith.mulf %96, %51 : vector<2x32xf32>
    %99 = arith.mulf %95, %94 : vector<2x32xf32>
    %100 = arith.addf %98, %99 : vector<2x32xf32>
    %101 = math.tanh %100 : vector<2x32xf32>
    %102 = arith.mulf %97, %101 : vector<2x32xf32>
    %103 = vector.shape_cast %81 : vector<2x32xf32> to vector<1x2x32xf32>
    %104 = arith.index_cast %c1_i32 : i32 to index
    %c0_34 = arith.constant 0 : index
    %c0_35 = arith.constant 0 : index
    %105 = vector.load %arg4[%104, %c0_34, %c0_35] : memref<4x2x32xf32, #tpu.memory_space<vmem>>, vector<1x2x32xf32>
    tpu.vector_store %arg4[%104, %c0_34, %c0_35], %103 {strides = array<i32>} : memref<4x2x32xf32, #tpu.memory_space<vmem>>, vector<1x2x32xf32>,
    %106 = vector.shape_cast %102 : vector<2x32xf32> to vector<1x2x32xf32>
    %107 = arith.index_cast %60 : i32 to index
    %c0_36 = arith.constant 0 : index
    %c0_37 = arith.constant 0 : index
    %108 = vector.load %arg5[%107, %c0_36, %c0_37] : memref<4x2x32xf32, #tpu.memory_space<vmem>>, vector<1x2x32xf32>
    tpu.vector_store %arg5[%107, %c0_36, %c0_37], %106 {strides = array<i32>} : memref<4x2x32xf32, #tpu.memory_space<vmem>>, vector<1x2x32xf32>,
    %c2_i32 = arith.constant 2 : i32
    %c3_i32_38 = arith.constant 3 : i32
    %109 = arith.subi %c3_i32_38, %c2_i32 : i32
    %110 = arith.index_cast %c2_i32 : i32 to index
    %c0_39 = arith.constant 0 : index
    %c0_40 = arith.constant 0 : index
    %111 = vector.load %arg1[%110, %c0_39, %c0_40] : memref<4x2x128xf32, #tpu.memory_space<vmem>>, vector<1x2x128xf32>
    %112 = vector.shape_cast %111 : vector<1x2x128xf32> to vector<2x128xf32>
    %cst_41 = arith.constant dense<0.000000e+00> : vector<2x128xf32>
    %113 = tpu.matmul %81, %4, %cst_41 {dimension_numbers = #tpu.dot_dimension_numbers<[1], [0], [0], [1], [0, 0, 1, 1], [], []>} : vector<2x32xf32>, vector<32x128xf32>, vector<2x128xf32> -> vector<2x128xf32>
    %114 = arith.addf %112, %113 : vector<2x128xf32>
    %115 = vector.extract_strided_slice %114 {offsets = [0, 0], sizes = [2, 96], strides = [1, 1]} : vector<2x128xf32> to vector<2x96xf32>
    %116 = arith.negf %115 : vector<2x96xf32>
    %117 = math.exp %116 : vector<2x96xf32>
    %cst_42 = arith.constant 1.000000e+00 : f32
    %118 = vector.broadcast %cst_42 : f32 to vector<2x96xf32>
    %119 = arith.addf %118, %117 : vector<2x96xf32>
    %120 = arith.divf %118, %119 : vector<2x96xf32>
    %121 = vector.extract_strided_slice %114 {offsets = [0, 96], sizes = [2, 32], strides = [1, 1]} : vector<2x128xf32> to vector<2x32xf32>
    %122 = math.tanh %121 : vector<2x32xf32>
    %123 = vector.extract_strided_slice %120 {offsets = [0, 0], sizes = [2, 32], strides = [1, 1]} : vector<2x96xf32> to vector<2x32xf32>
    %124 = vector.extract_strided_slice %120 {offsets = [0, 32], sizes = [2, 32], strides = [1, 1]} : vector<2x96xf32> to vector<2x32xf32>
    %125 = vector.extract_strided_slice %120 {offsets = [0, 64], sizes = [2, 32], strides = [1, 1]} : vector<2x96xf32> to vector<2x32xf32>
    %126 = arith.mulf %124, %79 : vector<2x32xf32>
    %127 = arith.mulf %123, %122 : vector<2x32xf32>
    %128 = arith.addf %126, %127 : vector<2x32xf32>
    %129 = math.tanh %128 : vector<2x32xf32>
    %130 = arith.mulf %125, %129 : vector<2x32xf32>
    %131 = arith.index_cast %109 : i32 to index
    %c0_43 = arith.constant 0 : index
    %c0_44 = arith.constant 0 : index
    %132 = vector.load %arg2[%131, %c0_43, %c0_44] : memref<4x2x128xf32, #tpu.memory_space<vmem>>, vector<1x2x128xf32>
    %133 = vector.shape_cast %132 : vector<1x2x128xf32> to vector<2x128xf32>
    %cst_45 = arith.constant dense<0.000000e+00> : vector<2x128xf32>
    %134 = tpu.matmul %102, %6, %cst_45 {dimension_numbers = #tpu.dot_dimension_numbers<[1], [0], [0], [1], [0, 0, 1, 1], [], []>} : vector<2x32xf32>, vector<32x128xf32>, vector<2x128xf32> -> vector<2x128xf32>
    %135 = arith.addf %133, %134 : vector<2x128xf32>
    %136 = vector.extract_strided_slice %135 {offsets = [0, 0], sizes = [2, 96], strides = [1, 1]} : vector<2x128xf32> to vector<2x96xf32>
    %137 = arith.negf %136 : vector<2x96xf32>
    %138 = math.exp %137 : vector<2x96xf32>
    %cst_46 = arith.constant 1.000000e+00 : f32
    %139 = vector.broadcast %cst_46 : f32 to vector<2x96xf32>
    %140 = arith.addf %139, %138 : vector<2x96xf32>
    %141 = arith.divf %139, %140 : vector<2x96xf32>
    %142 = vector.extract_strided_slice %135 {offsets = [0, 96], sizes = [2, 32], strides = [1, 1]} : vector<2x128xf32> to vector<2x32xf32>
    %143 = math.tanh %142 : vector<2x32xf32>
    %144 = vector.extract_strided_slice %141 {offsets = [0, 0], sizes = [2, 32], strides = [1, 1]} : vector<2x96xf32> to vector<2x32xf32>
    %145 = vector.extract_strided_slice %141 {offsets = [0, 32], sizes = [2, 32], strides = [1, 1]} : vector<2x96xf32> to vector<2x32xf32>
    %146 = vector.extract_strided_slice %141 {offsets = [0, 64], sizes = [2, 32], strides = [1, 1]} : vector<2x96xf32> to vector<2x32xf32>
    %147 = arith.mulf %145, %100 : vector<2x32xf32>
    %148 = arith.mulf %144, %143 : vector<2x32xf32>
    %149 = arith.addf %147, %148 : vector<2x32xf32>
    %150 = math.tanh %149 : vector<2x32xf32>
    %151 = arith.mulf %146, %150 : vector<2x32xf32>
    %152 = vector.shape_cast %130 : vector<2x32xf32> to vector<1x2x32xf32>
    %153 = arith.index_cast %c2_i32 : i32 to index
    %c0_47 = arith.constant 0 : index
    %c0_48 = arith.constant 0 : index
    %154 = vector.load %arg4[%153, %c0_47, %c0_48] : memref<4x2x32xf32, #tpu.memory_space<vmem>>, vector<1x2x32xf32>
    tpu.vector_store %arg4[%153, %c0_47, %c0_48], %152 {strides = array<i32>} : memref<4x2x32xf32, #tpu.memory_space<vmem>>, vector<1x2x32xf32>,
    %155 = vector.shape_cast %151 : vector<2x32xf32> to vector<1x2x32xf32>
    %156 = arith.index_cast %109 : i32 to index
    %c0_49 = arith.constant 0 : index
    %c0_50 = arith.constant 0 : index
    %157 = vector.load %arg5[%156, %c0_49, %c0_50] : memref<4x2x32xf32, #tpu.memory_space<vmem>>, vector<1x2x32xf32>
    tpu.vector_store %arg5[%156, %c0_49, %c0_50], %155 {strides = array<i32>} : memref<4x2x32xf32, #tpu.memory_space<vmem>>, vector<1x2x32xf32>,
    %c3_i32_51 = arith.constant 3 : i32
    %c3_i32_52 = arith.constant 3 : i32
    %158 = arith.subi %c3_i32_52, %c3_i32_51 : i32
    %159 = arith.index_cast %c3_i32_51 : i32 to index
    %c0_53 = arith.constant 0 : index
    %c0_54 = arith.constant 0 : index
    %160 = vector.load %arg1[%159, %c0_53, %c0_54] : memref<4x2x128xf32, #tpu.memory_space<vmem>>, vector<1x2x128xf32>
    %161 = vector.shape_cast %160 : vector<1x2x128xf32> to vector<2x128xf32>
    %cst_55 = arith.constant dense<0.000000e+00> : vector<2x128xf32>
    %162 = tpu.matmul %130, %4, %cst_55 {dimension_numbers = #tpu.dot_dimension_numbers<[1], [0], [0], [1], [0, 0, 1, 1], [], []>} : vector<2x32xf32>, vector<32x128xf32>, vector<2x128xf32> -> vector<2x128xf32>
    %163 = arith.addf %161, %162 : vector<2x128xf32>
    %164 = vector.extract_strided_slice %163 {offsets = [0, 0], sizes = [2, 96], strides = [1, 1]} : vector<2x128xf32> to vector<2x96xf32>
    %165 = arith.negf %164 : vector<2x96xf32>
    %166 = math.exp %165 : vector<2x96xf32>
    %cst_56 = arith.constant 1.000000e+00 : f32
    %167 = vector.broadcast %cst_56 : f32 to vector<2x96xf32>
    %168 = arith.addf %167, %166 : vector<2x96xf32>
    %169 = arith.divf %167, %168 : vector<2x96xf32>
    %170 = vector.extract_strided_slice %163 {offsets = [0, 96], sizes = [2, 32], strides = [1, 1]} : vector<2x128xf32> to vector<2x32xf32>
    %171 = math.tanh %170 : vector<2x32xf32>
    %172 = vector.extract_strided_slice %169 {offsets = [0, 0], sizes = [2, 32], strides = [1, 1]} : vector<2x96xf32> to vector<2x32xf32>
    %173 = vector.extract_strided_slice %169 {offsets = [0, 32], sizes = [2, 32], strides = [1, 1]} : vector<2x96xf32> to vector<2x32xf32>
    %174 = vector.extract_strided_slice %169 {offsets = [0, 64], sizes = [2, 32], strides = [1, 1]} : vector<2x96xf32> to vector<2x32xf32>
    %175 = arith.mulf %173, %128 : vector<2x32xf32>
    %176 = arith.mulf %172, %171 : vector<2x32xf32>
    %177 = arith.addf %175, %176 : vector<2x32xf32>
    %178 = math.tanh %177 : vector<2x32xf32>
    %179 = arith.mulf %174, %178 : vector<2x32xf32>
    %180 = arith.index_cast %158 : i32 to index
    %c0_57 = arith.constant 0 : index
    %c0_58 = arith.constant 0 : index
    %181 = vector.load %arg2[%180, %c0_57, %c0_58] : memref<4x2x128xf32, #tpu.memory_space<vmem>>, vector<1x2x128xf32>
    %182 = vector.shape_cast %181 : vector<1x2x128xf32> to vector<2x128xf32>
    %cst_59 = arith.constant dense<0.000000e+00> : vector<2x128xf32>
    %183 = tpu.matmul %151, %6, %cst_59 {dimension_numbers = #tpu.dot_dimension_numbers<[1], [0], [0], [1], [0, 0, 1, 1], [], []>} : vector<2x32xf32>, vector<32x128xf32>, vector<2x128xf32> -> vector<2x128xf32>
    %184 = arith.addf %182, %183 : vector<2x128xf32>
    %185 = vector.extract_strided_slice %184 {offsets = [0, 0], sizes = [2, 96], strides = [1, 1]} : vector<2x128xf32> to vector<2x96xf32>
    %186 = arith.negf %185 : vector<2x96xf32>
    %187 = math.exp %186 : vector<2x96xf32>
    %cst_60 = arith.constant 1.000000e+00 : f32
    %188 = vector.broadcast %cst_60 : f32 to vector<2x96xf32>
    %189 = arith.addf %188, %187 : vector<2x96xf32>
    %190 = arith.divf %188, %189 : vector<2x96xf32>
    %191 = vector.extract_strided_slice %184 {offsets = [0, 96], sizes = [2, 32], strides = [1, 1]} : vector<2x128xf32> to vector<2x32xf32>
    %192 = math.tanh %191 : vector<2x32xf32>
    %193 = vector.extract_strided_slice %190 {offsets = [0, 0], sizes = [2, 32], strides = [1, 1]} : vector<2x96xf32> to vector<2x32xf32>
    %194 = vector.extract_strided_slice %190 {offsets = [0, 32], sizes = [2, 32], strides = [1, 1]} : vector<2x96xf32> to vector<2x32xf32>
    %195 = vector.extract_strided_slice %190 {offsets = [0, 64], sizes = [2, 32], strides = [1, 1]} : vector<2x96xf32> to vector<2x32xf32>
    %196 = arith.mulf %194, %149 : vector<2x32xf32>
    %197 = arith.mulf %193, %192 : vector<2x32xf32>
    %198 = arith.addf %196, %197 : vector<2x32xf32>
    %199 = math.tanh %198 : vector<2x32xf32>
    %200 = arith.mulf %195, %199 : vector<2x32xf32>
    %201 = vector.shape_cast %179 : vector<2x32xf32> to vector<1x2x32xf32>
    %202 = arith.index_cast %c3_i32_51 : i32 to index
    %c0_61 = arith.constant 0 : index
    %c0_62 = arith.constant 0 : index
    %203 = vector.load %arg4[%202, %c0_61, %c0_62] : memref<4x2x32xf32, #tpu.memory_space<vmem>>, vector<1x2x32xf32>
    tpu.vector_store %arg4[%202, %c0_61, %c0_62], %201 {strides = array<i32>} : memref<4x2x32xf32, #tpu.memory_space<vmem>>, vector<1x2x32xf32>,
    %204 = vector.shape_cast %200 : vector<2x32xf32> to vector<1x2x32xf32>
    %205 = arith.index_cast %158 : i32 to index
    %c0_63 = arith.constant 0 : index
    %c0_64 = arith.constant 0 : index
    %206 = vector.load %arg5[%205, %c0_63, %c0_64] : memref<4x2x32xf32, #tpu.memory_space<vmem>>, vector<1x2x32xf32>
    tpu.vector_store %arg5[%205, %c0_63, %c0_64], %204 {strides = array<i32>} : memref<4x2x32xf32, #tpu.memory_space<vmem>>, vector<1x2x32xf32>,
    %c4_i32 = arith.constant 4 : i32
    %c0_65 = arith.constant 0 : index
    %c0_66 = arith.constant 0 : index
    %207 = vector.load %arg7[%c0_65, %c0_66] : memref<2x32xf32, #tpu.memory_space<vmem>>, vector<2x32xf32>
    tpu.vector_store %arg7[%c0_65, %c0_66], %179 {strides = array<i32>} : memref<2x32xf32, #tpu.memory_space<vmem>>, vector<2x32xf32>,
    %c0_67 = arith.constant 0 : index
    %c0_68 = arith.constant 0 : index
    %208 = vector.load %arg8[%c0_67, %c0_68] : memref<2x32xf32, #tpu.memory_space<vmem>>, vector<2x32xf32>
    tpu.vector_store %arg8[%c0_67, %c0_68], %177 {strides = array<i32>} : memref<2x32xf32, #tpu.memory_space<vmem>>, vector<2x32xf32>,
    %c0_69 = arith.constant 0 : index
    %c0_70 = arith.constant 0 : index
    %209 = vector.load %arg9[%c0_69, %c0_70] : memref<2x32xf32, #tpu.memory_space<vmem>>, vector<2x32xf32>
    tpu.vector_store %arg9[%c0_69, %c0_70], %200 {strides = array<i32>} : memref<2x32xf32, #tpu.memory_space<vmem>>, vector<2x32xf32>,
    %c0_71 = arith.constant 0 : index
    %c0_72 = arith.constant 0 : index
    %210 = vector.load %arg10[%c0_71, %c0_72] : memref<2x32xf32, #tpu.memory_space<vmem>>, vector<2x32xf32>
    tpu.vector_store %arg10[%c0_71, %c0_72], %198 {strides = array<i32>} : memref<2x32xf32, #tpu.memory_space<vmem>>, vector<2x32xf32>,
    return
  }
  func.func @transform_0(%arg0: i32) -> (i32, i32, i32) {
    %c0_i32 = arith.constant 0 : i32
    %c0_i32_0 = arith.constant 0 : i32
    %c0_i32_1 = arith.constant 0 : i32
    return %arg0, %c0_i32, %c0_i32_0 : i32, i32, i32
  }
  func.func @transform_1(%arg0: i32) -> (i32, i32, i32) {
    %c1_i32 = arith.constant 1 : i32
    %0 = arith.subi %c1_i32, %arg0 : i32
    %c0_i32 = arith.constant 0 : i32
    %c0_i32_0 = arith.constant 0 : i32
    %c0_i32_1 = arith.constant 0 : i32
    return %0, %c0_i32, %c0_i32_0 : i32, i32, i32
  }
  func.func @transform_3(%arg0: i32) -> (i32, i32, i32) {
    %c0_i32 = arith.constant 0 : i32
    %c0_i32_0 = arith.constant 0 : i32
    %c0_i32_1 = arith.constant 0 : i32
    return %arg0, %c0_i32, %c0_i32_0 : i32, i32, i32
  }
  func.func @transform_4(%arg0: i32) -> (i32, i32, i32) {
    %c1_i32 = arith.constant 1 : i32
    %0 = arith.subi %c1_i32, %arg0 : i32
    %c0_i32 = arith.constant 0 : i32
    %c0_i32_0 = arith.constant 0 : i32
    %c0_i32_1 = arith.constant 0 : i32
    return %0, %c0_i32, %c0_i32_0 : i32, i32, i32
  }
}

</mosaic_0001>

<llo_original>
// kernel: birnn_forward.4
$region0: #{birnn_forward.4}
  #allocation0 [shape = 'u32[]', space=smem, size = 0x4, offset = 0x4, fixed_abs, tag = 'smem constant byte address 0x4 - core index']
  #allocation1 [shape = 'u32[144,128]{1,0:T(1,128)}', space=vmem, size = 0x12000, scoped, tag = 'internal scratch']
  %s0 = inlined_call_operand.vmem [shape: f32[16,32], index: 0, kind: input, shape index: {}]
  %s1 = inlined_call_operand.vmem [shape: f32[32,128], index: 1, kind: input, shape index: {}]
  %s2 = inlined_call_operand.vmem [shape: f32[32,128], index: 2, kind: input, shape index: {}]
  %s3 = inlined_call_operand.vmem [shape: f32[1,128], index: 3, kind: input, shape index: {}]
  %s4 = inlined_call_operand.vmem [shape: f32[1,128], index: 4, kind: input, shape index: {}]
  %s5 = inlined_call_operand.vmem [shape: f32[16,128], index: 5, kind: output, shape index: {0}]
  %s6 = inlined_call_operand.vmem [shape: f32[16,128], index: 6, kind: output, shape index: {1}]
  %7 = xla_tuple %s5, %s6
  %s8 = sld [smem:[#allocation0]]
  $region61: #{birnn_forward.4} parent=0
    _
  %s10 = ssub.s32 1, %s8
  %s11 = scalar_select 0, %s10, %s8
  loop: start=0, step=1, limit=4
  $region2: #{birnn_forward.4} parent=0 // loop_pre_header
    _
  $region3: #{birnn_forward.4} parent=0 // loop_header
    %s13 = sphi 0, %s17
    %p14 = scmp.ge.s32.totalorder %s13, 4
    %s23 = sphi 0, %s25
    %s26 = sphi 0, %s23
    %s27 = sphi 0, %s26
    %s43 = sphi 0, %s27
    %s47 = sphi 0, %s47
    %s49 = sphi 0, %s47
    %s50 = sphi 0, %s49
    %s64 = sphi 0, %s50
    %s68 = sphi 0, %s68
    %s70 = sphi 0, %s68
    %s71 = sphi 0, %s70
    %s85 = sphi 0, %s71
    %s89 = sphi 0, %s89
    %s91 = sphi 0, %s89
    %s92 = sphi 0, %s91
    %s106 = sphi 0, %s92
    %s110 = sphi 0, %s110
    %s112 = sphi 0, %s110
    %s113 = sphi 0, %s112
    %s127 = sphi 0, %s113
    %s133 = sphi 0, %s135
    %s136 = sphi 0, %s133
    %s137 = sphi 0, %s136
    %s153 = sphi 0, %s137
    %s159 = sphi 0, %s161
    %s162 = sphi 0, %s159
    %s163 = sphi 0, %s162
    %s179 = sphi 0, %s163
  $region4: #{birnn_forward.4} parent=0 // loop_header_branch
    %16 = sbr.rel (%p14) target = $region8
  $region5: #{birnn_forward.4} parent=0 // loop_body
    %s18 = ssub.s32 %s13, 1
    %s19 = ssub.s32 %s13, 2
    %s20 = sadd.s32 %s13, 1
    %s21 = ssub.s32 %s13, %s20
    %p22 = scmp.eq.s32.totalorder %s21, 0
    %s24 = sadd.s32 %s23, 1
    %s25 = scalar_select %p22, %s23, %s24
    %p28 = pneg %p22
    %p29 = scmp.eq.s32.totalorder %s13, 1
    %p30 = por %p28, %p29
    %p31 = scmp.ne.s32.totalorder %s23, %s26
    %p32 = scmp.eq.s32.totalorder %s13, 0
    %p33 = por %p31, %p32
    %p34 = scmp.ne.s32.totalorder %s23, %s26
    %p35 = scmp.eq.s32.totalorder %s18, 1
    %p36 = por %p34, %p35
    %p37 = scmp.ne.s32.totalorder %s26, %s27
    %p38 = scmp.eq.s32.totalorder %s18, 0
    %p39 = por %p37, %p38
    %p40 = scmp.ne.s32.totalorder %s26, %s27
    %p41 = scmp.eq.s32.totalorder %s19, 1
    %p42 = por %p40, %p41
    %p44 = scmp.ne.s32.totalorder %s27, %s43
    %p45 = scmp.eq.s32.totalorder %s19, 0
    %p46 = por %p44, %p45
    %s48 = sadd.s32 %s47, 1
    %p51 = scmp.eq.s32.totalorder %s13, 1
    %p52 = scmp.ne.s32.totalorder %s47, %s49
    %p53 = scmp.eq.s32.totalorder %s13, 0
    %p54 = por %p52, %p53
    %p55 = scmp.ne.s32.totalorder %s47, %s49
    %p56 = scmp.eq.s32.totalorder %s18, 1
    %p57 = por %p55, %p56
    %p58 = scmp.ne.s32.totalorder %s49, %s50
    %p59 = scmp.eq.s32.totalorder %s18, 0
    %p60 = por %p58, %p59
    %p61 = scmp.ne.s32.totalorder %s49, %s50
    %p62 = scmp.eq.s32.totalorder %s19, 1
    %p63 = por %p61, %p62
    %p65 = scmp.ne.s32.totalorder %s50, %s64
    %p66 = scmp.eq.s32.totalorder %s19, 0
    %p67 = por %p65, %p66
    %s69 = sadd.s32 %s68, 1
    %p72 = scmp.eq.s32.totalorder %s13, 1
    %p73 = scmp.ne.s32.totalorder %s68, %s70
    %p74 = scmp.eq.s32.totalorder %s13, 0
    %p75 = por %p73, %p74
    %p76 = scmp.ne.s32.totalorder %s68, %s70
    %p77 = scmp.eq.s32.totalorder %s18, 1
    %p78 = por %p76, %p77
    %p79 = scmp.ne.s32.totalorder %s70, %s71
    %p80 = scmp.eq.s32.totalorder %s18, 0
    %p81 = por %p79, %p80
    %p82 = scmp.ne.s32.totalorder %s70, %s71
    %p83 = scmp.eq.s32.totalorder %s19, 1
    %p84 = por %p82, %p83
    %p86 = scmp.ne.s32.totalorder %s71, %s85
    %p87 = scmp.eq.s32.totalorder %s19, 0
    %p88 = por %p86, %p87
    %s90 = sadd.s32 %s89, 1
    %p93 = scmp.eq.s32.totalorder %s13, 1
    %p94 = scmp.ne.s32.totalorder %s89, %s91
    %p95 = scmp.eq.s32.totalorder %s13, 0
    %p96 = por %p94, %p95
    %p97 = scmp.ne.s32.totalorder %s89, %s91
    %p98 = scmp.eq.s32.totalorder %s18, 1
    %p99 = por %p97, %p98
    %p100 = scmp.ne.s32.totalorder %s91, %s92
    %p101 = scmp.eq.s32.totalorder %s18, 0
    %p102 = por %p100, %p101
    %p103 = scmp.ne.s32.totalorder %s91, %s92
    %p104 = scmp.eq.s32.totalorder %s19, 1
    %p105 = por %p103, %p104
    %p107 = scmp.ne.s32.totalorder %s92, %s106
    %p108 = scmp.eq.s32.totalorder %s19, 0
    %p109 = por %p107, %p108
    %s111 = sadd.s32 %s110, 1
    %p114 = scmp.eq.s32.totalorder %s13, 1
    %p115 = scmp.ne.s32.totalorder %s110, %s112
    %p116 = scmp.eq.s32.totalorder %s13, 0
    %p117 = por %p115, %p116
    %p118 = scmp.ne.s32.totalorder %s110, %s112
    %p119 = scmp.eq.s32.totalorder %s18, 1
    %p120 = por %p118, %p119
    %p121 = scmp.ne.s32.totalorder %s112, %s113
    %p122 = scmp.eq.s32.totalorder %s18, 0
    %p123 = por %p121, %p122
    %p124 = scmp.ne.s32.totalorder %s112, %s113
    %p125 = scmp.eq.s32.totalorder %s19, 1
    %p126 = por %p124, %p125
    %p128 = scmp.ne.s32.totalorder %s113, %s127
    %p129 = scmp.eq.s32.totalorder %s19, 0
    %p130 = por %p128, %p129
    %s131 = ssub.s32 %s13, %s20
    %p132 = scmp.eq.s32.totalorder %s131, 0
    %s134 = sadd.s32 %s133, 1
    %s135 = scalar_select %p132, %s133, %s134
    %p138 = pneg %p132
    %p139 = scmp.eq.s32.totalorder %s13, 1
    %p140 = por %p138, %p139
    %p141 = scmp.ne.s32.totalorder %s133, %s136
    %p142 = scmp.eq.s32.totalorder %s13, 0
    %p143 = por %p141, %p142
    %p144 = scmp.ne.s32.totalorder %s133, %s136
    %p145 = scmp.eq.s32.totalorder %s18, 1
    %p146 = por %p144, %p145
    %p147 = scmp.ne.s32.totalorder %s136, %s137
    %p148 = scmp.eq.s32.totalorder %s18, 0
    %p149 = por %p147, %p148
    %p150 = scmp.ne.s32.totalorder %s136, %s137
    %p151 = scmp.eq.s32.totalorder %s19, 1
    %p152 = por %p150, %p151
    %p154 = scmp.ne.s32.totalorder %s137, %s153
    %p155 = scmp.eq.s32.totalorder %s19, 0
    %p156 = por %p154, %p155
    %s157 = ssub.s32 %s13, %s20
    %p158 = scmp.eq.s32.totalorder %s157, 0
    %s160 = sadd.s32 %s159, 1
    %s161 = scalar_select %p158, %s159, %s160
    %p164 = pneg %p158
    %p165 = scmp.eq.s32.totalorder %s13, 1
    %p166 = por %p164, %p165
    %p167 = scmp.ne.s32.totalorder %s159, %s162
    %p168 = scmp.eq.s32.totalorder %s13, 0
    %p169 = por %p167, %p168
    %p170 = scmp.ne.s32.totalorder %s159, %s162
    %p171 = scmp.eq.s32.totalorder %s18, 1
    %p172 = por %p170, %p171
    %p173 = scmp.ne.s32.totalorder %s162, %s163
    %p174 = scmp.eq.s32.totalorder %s18, 0
    %p175 = por %p173, %p174
    %p176 = scmp.ne.s32.totalorder %s162, %s163
    %p177 = scmp.eq.s32.totalorder %s19, 1
    %p178 = por %p176, %p177
    %p180 = scmp.ne.s32.totalorder %s163, %s179
    %p181 = scmp.eq.s32.totalorder %s19, 0
    %p182 = por %p180, %p181
    %p183 = scmp.le.s32.totalorder 1, %s13
    %p184 = scmp.lt.s32.totalorder %s13, 3
    %p185 = pnand %p183, %p184
    %p186 = pneg %p185
    // Predicated region
    $region9: #{birnn_forward.4} parent=5 // pred_check
      _
    $region10: #{birnn_forward.4} parent=5 // pred_check_branch
      %188 = sbr.rel (%p185) target = $region12
    $region11: #{birnn_forward.4} parent=5 // pred_region
      %s189 = ssub.s32 %s13, 1
      // Predicated region
      $region13: #{birnn_forward.4} parent=11 // pred_check
        %p190 = pneg %p60
      $region14: #{birnn_forward.4} parent=11 // pred_check_branch
        %192 = sbr.rel (%p190) target = $region16
      $region15: #{birnn_forward.4} parent=11 // pred_region
        _
      $region16: #{birnn_forward.4} parent=11 // pred_fallthru
        _
      // Predicated region
      $region17: #{birnn_forward.4} parent=11 // pred_check
        %p193 = pneg %p81
      $region18: #{birnn_forward.4} parent=11 // pred_check_branch
        %195 = sbr.rel (%p193) target = $region20
      $region19: #{birnn_forward.4} parent=11 // pred_region
        _
      $region20: #{birnn_forward.4} parent=11 // pred_fallthru
        _
      // Predicated region
      $region21: #{birnn_forward.4} parent=11 // pred_check
        %p196 = pneg %p102
      $region22: #{birnn_forward.4} parent=11 // pred_check_branch
        %198 = sbr.rel (%p196) target = $region24
      $region23: #{birnn_forward.4} parent=11 // pred_region
        _
      $region24: #{birnn_forward.4} parent=11 // pred_fallthru
        _
      // Predicated region
      $region25: #{birnn_forward.4} parent=11 // pred_check
        %p199 = pneg %p123
      $region26: #{birnn_forward.4} parent=11 // pred_check_branch
        %201 = sbr.rel (%p199) target = $region28
      $region27: #{birnn_forward.4} parent=11 // pred_region
        _
      $region28: #{birnn_forward.4} parent=11 // pred_fallthru
        _
    $region12: #{birnn_forward.4} parent=5 // pred_fallthru
      _
    %p202 = scmp.lt.s32.totalorder %s13, 2
    // Predicated region
    $region29: #{birnn_forward.4} parent=5 // pred_check
      %p203 = pneg %p202
    $region30: #{birnn_forward.4} parent=5 // pred_check_branch
      %205 = sbr.rel (%p203) target = $region32
    $region31: #{birnn_forward.4} parent=5 // pred_region
      // Predicated region
      $region33: #{birnn_forward.4} parent=31 // pred_check
        %p206 = pneg %p33
      $region34: #{birnn_forward.4} parent=31 // pred_check_branch
        %208 = sbr.rel (%p206) target = $region36
      $region35: #{birnn_forward.4} parent=31 // pred_region
        %p209 = scmp.lt.s32.totalorder %s13, 1
        %s210 = scalar_select %p209, %s13, 1
        %s211 = smul.addr %s210, 8
        %s212 = scalar_lea.vmem %s0, %s211
      $region36: #{birnn_forward.4} parent=31 // pred_fallthru
        _
    $region32: #{birnn_forward.4} parent=5 // pred_fallthru
      _
    %p213 = scmp.le.s32.totalorder 1, %s13
    %p214 = scmp.lt.s32.totalorder %s13, 3
    %p215 = pnand %p213, %p214
    %p216 = pneg %p215
    // Predicated region
    $region37: #{birnn_forward.4} parent=5 // pred_check
      _
    $region38: #{birnn_forward.4} parent=5 // pred_check_branch
      %218 = sbr.rel (%p215) target = $region40
    $region39: #{birnn_forward.4} parent=5 // pred_region
      %s219 = ssub.s32 %s13, 1
      %p220 = scmp.lt.s32.totalorder %s18, 1
      %s221 = scalar_select %p220, %s18, 1
      %s222 = smul.addr %s221, 8
      %s223 = scalar_lea.vmem %s0, %s222
      %p224 = pneg %p39
      %p225 = pneg %p36
      %p226 = pneg %p60
      %p227 = pneg %p57
      %p228 = pneg %p81
      %p229 = pneg %p78
      %p230 = pneg %p102
      %p231 = pneg %p99
      %p232 = pneg %p123
      %p233 = pneg %p120
      %p234 = pneg %p149
      %p235 = pneg %p146
      %p236 = scmp.lt.s32.totalorder %s18, 1
      %s237 = scalar_select %p236, %s18, 1
      %s238 = smul.addr %s237, 8
      %s239 = scalar_lea.vmem %s5, %s238
      %p240 = pneg %p175
      %p241 = pneg %p172
      %p242 = scmp.lt.s32.totalorder %s18, 1
      %s243 = scalar_select %p242, %s18, 1
      %s244 = smul.addr %s243, 8
      %s245 = scalar_lea.vmem %s6, %s244
      %p246 = scmp.lt.s32.totalorder %s18, 1
      %s247 = scalar_select %p246, %s18, 1
      %s248 = smul.addr %s247, 8
      %s249 = scalar_lea.vmem %s0, %s248
      %p250 = scmp.lt.s32.totalorder %s18, 1
      %s251 = scalar_select %p250, %s18, 1
      %s252 = smul.addr %s251, 8
      %s253 = scalar_lea.vmem %s5, %s252
      %p254 = scmp.lt.s32.totalorder %s18, 1
      %s255 = scalar_select %p254, %s18, 1
      %s256 = smul.addr %s255, 8
      %s257 = scalar_lea.vmem %s6, %s256
      %v258 = vld [vmem:[%s3] sm:$0x1]
      %v259 = vld [vmem:[%s4] sm:$0x1]
      %v260 = vld [vmem:[%s249] sm:$0xff]
      %v261 = vld [vmem:[%s1] sm:$0xff]
      %v262 = vld [vmem:[%s1 + $0x8] sm:$0xff]
      %v263 = vld [vmem:[%s1 + $0x10] sm:$0xff]
      %v264 = vld [vmem:[%s1 + $0x18] sm:$0xff]
      %vm265 = vcmask 261120
      %v267 = vsel %vm265, %v260, 0
      %269 = vmatprep.subr.mxu0 0.0
      %270 = vmatpush1.msra.mxu0 %v261
      %271 = vmatprep.subr.mxu0 0.0
      %272 = vmatpush1.msra.mxu0 %v262
      %273 = vmatprep.subr.mxu0 0.0
      %274 = vmatpush1.msra.mxu0 %v263
      %275 = vmatprep.subr.mxu0 0.0
      %276 = vmatpush1.msra.mxu0 %v264
      %277 = vmatprep.subr.mxu0 0.0
      %278 = vmatpush1.msra.mxu0 0.0
      %279 = vmatprep.subr.mxu0 0.0
      %280 = vmatpush1.msra.mxu0 0.0
      %281 = vmatprep.subr.mxu0 0.0
      %282 = vmatpush1.msra.mxu0 0.0
      %283 = vmatprep.subr.mxu0 0.0
      %284 = vmatpush1.msra.mxu0 0.0
      %285 = vmatprep.subr.mxu0 0.0
      %286 = vmatpush1.msra.mxu0 0.0
      %287 = vmatprep.subr.mxu0 0.0
      %288 = vmatpush1.msra.mxu0 0.0
      %289 = vmatprep.subr.mxu0 0.0
      %290 = vmatpush1.msra.mxu0 0.0
      %291 = vmatprep.subr.mxu0 0.0
      %292 = vmatpush1.msra.mxu0 0.0
      %293 = vmatprep.subr.mxu0 0.0
      %294 = vmatpush1.msra.mxu0 0.0
      %295 = vmatprep.subr.mxu0 0.0
      %296 = vmatpush1.msra.mxu0 0.0
      %297 = vmatprep.subr.mxu0 0.0
      %298 = vmatpush1.msra.mxu0 0.0
      %299 = vmatprep.subr.mxu0 0.0
      %300 = vmatpush1.msra.mxu0 0.0
      %301 = vmatprep.subr.mxu0 0.0
      %302 = vmatpush1.msra.mxu0 0.0
      %303 = vmatprep.subr.mxu0 0.0
      %304 = vmatpush1.msra.mxu0 0.0
      %305 = vmatprep.subr.mxu0 0.0
      %306 = vmatpush1.msra.mxu0 0.0
      %307 = vmatprep.subr.mxu0 0.0
      %308 = vmatpush1.msra.mxu0 0.0
      %309 = vmatprep.subr.mxu0 0.0
      %310 = vmatpush1.msra.mxu0 0.0
      %311 = vmatprep.subr.mxu0 0.0
      %312 = vmatpush1.msra.mxu0 0.0
      %313 = vmatprep.subr.mxu0 0.0
      %314 = vmatpush1.msra.mxu0 0.0
      %315 = vmatprep.subr.mxu0 0.0
      %316 = vmatpush1.msra.mxu0 0.0
      %317 = vmatprep.subr.mxu0 0.0
      %318 = vmatpush1.msra.mxu0 0.0
      %319 = vmatprep.subr.mxu0 0.0
      %320 = vmatpush1.msra.mxu0 0.0
      %321 = vmatprep.subr.mxu0 0.0
      %322 = vmatpush1.msra.mxu0 0.0
      %323 = vmatprep.subr.mxu0 0.0
      %324 = vmatpush1.msra.mxu0 0.0
      %325 = vmatprep.subr.mxu0 0.0
      %326 = vmatpush1.msra.mxu0 0.0
      %327 = vmatprep.subr.mxu0 0.0
      %328 = vmatpush1.msra.mxu0 0.0
      %329 = vmatprep.subr.mxu0 0.0
      %330 = vmatpush1.msra.mxu0 0.0
      %331 = vmatprep.subr.mxu0 0.0
      %332 = vmatpush1.msra.mxu0 0.0
      %333 = vmatprep.mubr.f32.mxu0 0.0
      %334 = vmatmul.mubr.f32.gmra.mrb[0].mxu0 %v267
      %v335 = vpop.f32.mrb[0].mxu0
      %v336 = vadd.f32 0.0, %v335
      %v337 = vpop.f32.mrb[0].mxu0
      %338 = vdwg.mxu0
      %v340 = vlaneseq
      %v341 = vshrl.u32 %v340, 7
      %v342 = vsub.s32 0, %v341
      %v343 = vrot.slane %v258, %v342
      %v345 = vadd.f32 %v343, %v336
      %v346 = vld [vmem:[%s2] sm:$0xff]
      %v347 = vld [vmem:[%s2 + $0x8] sm:$0xff]
      %v348 = vld [vmem:[%s2 + $0x10] sm:$0xff]
      %v349 = vld [vmem:[%s2 + $0x18] sm:$0xff]
      %350 = vmatprep.subr.mxu0 0.0
      %351 = vmatpush1.msra.mxu0 %v346
      %352 = vmatprep.subr.mxu0 0.0
      %353 = vmatpush1.msra.mxu0 %v347
      %354 = vmatprep.subr.mxu0 0.0
      %355 = vmatpush1.msra.mxu0 %v348
      %356 = vmatprep.subr.mxu0 0.0
      %357 = vmatpush1.msra.mxu0 %v349
      %358 = vmatprep.subr.mxu0 0.0
      %359 = vmatpush1.msra.mxu0 0.0
      %360 = vmatprep.subr.mxu0 0.0
      %361 = vmatpush1.msra.mxu0 0.0
      %362 = vmatprep.subr.mxu0 0.0
      %363 = vmatpush1.msra.mxu0 0.0
      %364 = vmatprep.subr.mxu0 0.0
      %365 = vmatpush1.msra.mxu0 0.0
      %366 = vmatprep.subr.mxu0 0.0
      %367 = vmatpush1.msra.mxu0 0.0
      %368 = vmatprep.subr.mxu0 0.0
      %369 = vmatpush1.msra.mxu0 0.0
      %370 = vmatprep.subr.mxu0 0.0
      %371 = vmatpush1.msra.mxu0 0.0
      %372 = vmatprep.subr.mxu0 0.0
      %373 = vmatpush1.msra.mxu0 0.0
      %374 = vmatprep.subr.mxu0 0.0
      %375 = vmatpush1.msra.mxu0 0.0
      %376 = vmatprep.subr.mxu0 0.0
      %377 = vmatpush1.msra.mxu0 0.0
      %378 = vmatprep.subr.mxu0 0.0
      %379 = vmatpush1.msra.mxu0 0.0
      %380 = vmatprep.subr.mxu0 0.0
      %381 = vmatpush1.msra.mxu0 0.0
      %382 = vmatprep.subr.mxu0 0.0
      %383 = vmatpush1.msra.mxu0 0.0
      %384 = vmatprep.subr.mxu0 0.0
      %385 = vmatpush1.msra.mxu0 0.0
      %386 = vmatprep.subr.mxu0 0.0
      %387 = vmatpush1.msra.mxu0 0.0
      %388 = vmatprep.subr.mxu0 0.0
      %389 = vmatpush1.msra.mxu0 0.0
      %390 = vmatprep.subr.mxu0 0.0
      %391 = vmatpush1.msra.mxu0 0.0
      %392 = vmatprep.subr.mxu0 0.0
      %393 = vmatpush1.msra.mxu0 0.0
      %394 = vmatprep.subr.mxu0 0.0
      %395 = vmatpush1.msra.mxu0 0.0
      %396 = vmatprep.subr.mxu0 0.0
      %397 = vmatpush1.msra.mxu0 0.0
      %398 = vmatprep.subr.mxu0 0.0
      %399 = vmatpush1.msra.mxu0 0.0
      %400 = vmatprep.subr.mxu0 0.0
      %401 = vmatpush1.msra.mxu0 0.0
      %402 = vmatprep.subr.mxu0 0.0
      %403 = vmatpush1.msra.mxu0 0.0
      %404 = vmatprep.subr.mxu0 0.0
      %405 = vmatpush1.msra.mxu0 0.0
      %406 = vmatprep.subr.mxu0 0.0
      %407 = vmatpush1.msra.mxu0 0.0
      %408 = vmatprep.subr.mxu0 0.0
      %409 = vmatpush1.msra.mxu0 0.0
      %410 = vmatprep.subr.mxu0 0.0
      %411 = vmatpush1.msra.mxu0 0.0
      %412 = vmatprep.subr.mxu0 0.0
      %413 = vmatpush1.msra.mxu0 0.0
      %414 = vmatprep.mubr.f32.mxu0 0.0
      %415 = vmatmul.mubr.f32.gmra.mrb[0].mxu0 %v267
      %v416 = vpop.f32.mrb[0].mxu0
      %v417 = vadd.f32 0.0, %v416
      %v418 = vpop.f32.mrb[0].mxu0
      %419 = vdwg.mxu0
      %v421 = vlaneseq
      %v422 = vshrl.u32 %v421, 7
      %v423 = vsub.s32 0, %v422
      %v424 = vrot.slane %v259, %v423
      %v426 = vadd.f32 %v424, %v417
      %427 = vst [vmem:[%s253] sm:$0xff] %v345
      %428 = vst [vmem:[%s257] sm:$0xff] %v426
      %p429 = scmp.lt.s32.totalorder %s18, 1
      %s430 = scalar_select %p429, %s18, 1
      %s431 = smul.addr %s430, 8
      %s432 = scalar_lea.vmem %s5, %s431
      %p433 = scmp.lt.s32.totalorder %s18, 1
      %s434 = scalar_select %p433, %s18, 1
      %s435 = smul.addr %s434, 8
      %s436 = scalar_lea.vmem %s6, %s435
      // Predicated region
      $region41: #{birnn_forward.4} parent=39 // pred_check
        %p437 = pneg %p146
      $region42: #{birnn_forward.4} parent=39 // pred_check_branch
        %439 = sbr.rel (%p437) target = $region44
      $region43: #{birnn_forward.4} parent=39 // pred_region
        _
      $region44: #{birnn_forward.4} parent=39 // pred_fallthru
        _
      // Predicated region
      $region45: #{birnn_forward.4} parent=39 // pred_check
        %p440 = pneg %p172
      $region46: #{birnn_forward.4} parent=39 // pred_check_branch
        %442 = sbr.rel (%p440) target = $region48
      $region47: #{birnn_forward.4} parent=39 // pred_region
        _
      $region48: #{birnn_forward.4} parent=39 // pred_fallthru
        _
    $region40: #{birnn_forward.4} parent=5 // pred_fallthru
      _
    %p443 = scmp.le.s32.totalorder 2, %s13
    // Predicated region
    $region49: #{birnn_forward.4} parent=5 // pred_check
      %p444 = pneg %p443
    $region50: #{birnn_forward.4} parent=5 // pred_check_branch
      %446 = sbr.rel (%p444) target = $region52
    $region51: #{birnn_forward.4} parent=5 // pred_region
      %s447 = ssub.s32 %s13, 2
      // Predicated region
      $region53: #{birnn_forward.4} parent=51 // pred_check
        %p448 = pneg %p152
      $region54: #{birnn_forward.4} parent=51 // pred_check_branch
        %450 = sbr.rel (%p448) target = $region56
      $region55: #{birnn_forward.4} parent=51 // pred_region
        %p451 = scmp.lt.s32.totalorder %s19, 1
        %s452 = scalar_select %p451, %s19, 1
        %s453 = smul.addr %s452, 8
        %s454 = scalar_lea.vmem %s5, %s453
      $region56: #{birnn_forward.4} parent=51 // pred_fallthru
        _
      // Predicated region
      $region57: #{birnn_forward.4} parent=51 // pred_check
        %p455 = pneg %p178
      $region58: #{birnn_forward.4} parent=51 // pred_check_branch
        %457 = sbr.rel (%p455) target = $region60
      $region59: #{birnn_forward.4} parent=51 // pred_region
        %p458 = scmp.lt.s32.totalorder %s19, 1
        %s459 = scalar_select %p458, %s19, 1
        %s460 = smul.addr %s459, 8
        %s461 = scalar_lea.vmem %s6, %s460
      $region60: #{birnn_forward.4} parent=51 // pred_fallthru
        _
    $region52: #{birnn_forward.4} parent=5 // pred_fallthru
      _
  $region6: #{birnn_forward.4} parent=0 // loop_footer
    %s17 = sadd.s32 1, %s13
  $region7: #{birnn_forward.4} parent=0 // loop_footer_branch
    %12 = sbr.rel target = $region3
  $region8: #{birnn_forward.4} parent=0 // loop_exit
    _

// kernel: birnn_forward.6
$region0: #{birnn_forward.6}
  #allocation0 [shape = 'u32[]', space=smem, size = 0x4, offset = 0x4, fixed_abs, tag = 'smem constant byte address 0x4 - core index']
  #allocation1 [shape = 'u32[144,128]{1,0:T(1,128)}', space=vmem, size = 0x12000, scoped, tag = 'internal scratch']
  %s0 = inlined_call_operand.vmem [shape: f32[16,32], index: 0, kind: input, shape index: {}]
  %s1 = inlined_call_operand.vmem [shape: f32[16,32], index: 1, kind: input, shape index: {}]
  %s2 = inlined_call_operand.vmem [shape: f32[32,128], index: 2, kind: input, shape index: {}]
  %s3 = inlined_call_operand.vmem [shape: f32[32,128], index: 3, kind: input, shape index: {}]
  %s4 = inlined_call_operand.vmem [shape: f32[32,128], index: 4, kind: input, shape index: {}]
  %s5 = inlined_call_operand.vmem [shape: f32[32,128], index: 5, kind: input, shape index: {}]
  %s6 = inlined_call_operand.vmem [shape: f32[1,128], index: 6, kind: input, shape index: {}]
  %s7 = inlined_call_operand.vmem [shape: f32[1,128], index: 7, kind: input, shape index: {}]
  %s8 = inlined_call_operand.vmem [shape: f32[16,128], index: 8, kind: output, shape index: {0}]
  %s9 = inlined_call_operand.vmem [shape: f32[16,128], index: 9, kind: output, shape index: {1}]
  %10 = xla_tuple %s8, %s9
  %s11 = sld [smem:[#allocation0]]
  $region73: #{birnn_forward.6} parent=0
    _
  %s13 = ssub.s32 1, %s11
  %s14 = scalar_select 0, %s13, %s11
  loop: start=0, step=1, limit=4
  $region2: #{birnn_forward.6} parent=0 // loop_pre_header
    _
  $region3: #{birnn_forward.6} parent=0 // loop_header
    %s16 = sphi 0, %s20
    %p17 = scmp.ge.s32.totalorder %s16, 4
    %s26 = sphi 0, %s28
    %s29 = sphi 0, %s26
    %s30 = sphi 0, %s29
    %s46 = sphi 0, %s30
    %s52 = sphi 0, %s54
    %s55 = sphi 0, %s52
    %s56 = sphi 0, %s55
    %s72 = sphi 0, %s56
    %s76 = sphi 0, %s76
    %s78 = sphi 0, %s76
    %s79 = sphi 0, %s78
    %s93 = sphi 0, %s79
    %s97 = sphi 0, %s97
    %s99 = sphi 0, %s97
    %s100 = sphi 0, %s99
    %s114 = sphi 0, %s100
    %s118 = sphi 0, %s118
    %s120 = sphi 0, %s118
    %s121 = sphi 0, %s120
    %s135 = sphi 0, %s121
    %s139 = sphi 0, %s139
    %s141 = sphi 0, %s139
    %s142 = sphi 0, %s141
    %s156 = sphi 0, %s142
    %s160 = sphi 0, %s160
    %s162 = sphi 0, %s160
    %s163 = sphi 0, %s162
    %s177 = sphi 0, %s163
    %s181 = sphi 0, %s181
    %s183 = sphi 0, %s181
    %s184 = sphi 0, %s183
    %s198 = sphi 0, %s184
    %s204 = sphi 0, %s206
    %s207 = sphi 0, %s204
    %s208 = sphi 0, %s207
    %s224 = sphi 0, %s208
    %s230 = sphi 0, %s232
    %s233 = sphi 0, %s230
    %s234 = sphi 0, %s233
    %s250 = sphi 0, %s234
  $region4: #{birnn_forward.6} parent=0 // loop_header_branch
    %19 = sbr.rel (%p17) target = $region8
  $region5: #{birnn_forward.6} parent=0 // loop_body
    %s21 = ssub.s32 %s16, 1
    %s22 = ssub.s32 %s16, 2
    %s23 = sadd.s32 %s16, 1
    %s24 = ssub.s32 %s16, %s23
    %p25 = scmp.eq.s32.totalorder %s24, 0
    %s27 = sadd.s32 %s26, 1
    %s28 = scalar_select %p25, %s26, %s27
    %p31 = pneg %p25
    %p32 = scmp.eq.s32.totalorder %s16, 1
    %p33 = por %p31, %p32
    %p34 = scmp.ne.s32.totalorder %s26, %s29
    %p35 = scmp.eq.s32.totalorder %s16, 0
    %p36 = por %p34, %p35
    %p37 = scmp.ne.s32.totalorder %s26, %s29
    %p38 = scmp.eq.s32.totalorder %s21, 1
    %p39 = por %p37, %p38
    %p40 = scmp.ne.s32.totalorder %s29, %s30
    %p41 = scmp.eq.s32.totalorder %s21, 0
    %p42 = por %p40, %p41
    %p43 = scmp.ne.s32.totalorder %s29, %s30
    %p44 = scmp.eq.s32.totalorder %s22, 1
    %p45 = por %p43, %p44
    %p47 = scmp.ne.s32.totalorder %s30, %s46
    %p48 = scmp.eq.s32.totalorder %s22, 0
    %p49 = por %p47, %p48
    %s50 = ssub.s32 %s16, %s23
    %p51 = scmp.eq.s32.totalorder %s50, 0
    %s53 = sadd.s32 %s52, 1
    %s54 = scalar_select %p51, %s52, %s53
    %p57 = pneg %p51
    %p58 = scmp.eq.s32.totalorder %s16, 1
    %p59 = por %p57, %p58
    %p60 = scmp.ne.s32.totalorder %s52, %s55
    %p61 = scmp.eq.s32.totalorder %s16, 0
    %p62 = por %p60, %p61
    %p63 = scmp.ne.s32.totalorder %s52, %s55
    %p64 = scmp.eq.s32.totalorder %s21, 1
    %p65 = por %p63, %p64
    %p66 = scmp.ne.s32.totalorder %s55, %s56
    %p67 = scmp.eq.s32.totalorder %s21, 0
    %p68 = por %p66, %p67
    %p69 = scmp.ne.s32.totalorder %s55, %s56
    %p70 = scmp.eq.s32.totalorder %s22, 1
    %p71 = por %p69, %p70
    %p73 = scmp.ne.s32.totalorder %s56, %s72
    %p74 = scmp.eq.s32.totalorder %s22, 0
    %p75 = por %p73, %p74
    %s77 = sadd.s32 %s76, 1
    %p80 = scmp.eq.s32.totalorder %s16, 1
    %p81 = scmp.ne.s32.totalorder %s76, %s78
    %p82 = scmp.eq.s32.totalorder %s16, 0
    %p83 = por %p81, %p82
    %p84 = scmp.ne.s32.totalorder %s76, %s78
    %p85 = scmp.eq.s32.totalorder %s21, 1
    %p86 = por %p84, %p85
    %p87 = scmp.ne.s32.totalorder %s78, %s79
    %p88 = scmp.eq.s32.totalorder %s21, 0
    %p89 = por %p87, %p88
    %p90 = scmp.ne.s32.totalorder %s78, %s79
    %p91 = scmp.eq.s32.totalorder %s22, 1
    %p92 = por %p90, %p91
    %p94 = scmp.ne.s32.totalorder %s79, %s93
    %p95 = scmp.eq.s32.totalorder %s22, 0
    %p96 = por %p94, %p95
    %s98 = sadd.s32 %s97, 1
    %p101 = scmp.eq.s32.totalorder %s16, 1
    %p102 = scmp.ne.s32.totalorder %s97, %s99
    %p103 = scmp.eq.s32.totalorder %s16, 0
    %p104 = por %p102, %p103
    %p105 = scmp.ne.s32.totalorder %s97, %s99
    %p106 = scmp.eq.s32.totalorder %s21, 1
    %p107 = por %p105, %p106
    %p108 = scmp.ne.s32.totalorder %s99, %s100
    %p109 = scmp.eq.s32.totalorder %s21, 0
    %p110 = por %p108, %p109
    %p111 = scmp.ne.s32.totalorder %s99, %s100
    %p112 = scmp.eq.s32.totalorder %s22, 1
    %p113 = por %p111, %p112
    %p115 = scmp.ne.s32.totalorder %s100, %s114
    %p116 = scmp.eq.s32.totalorder %s22, 0
    %p117 = por %p115, %p116
    %s119 = sadd.s32 %s118, 1
    %p122 = scmp.eq.s32.totalorder %s16, 1
    %p123 = scmp.ne.s32.totalorder %s118, %s120
    %p124 = scmp.eq.s32.totalorder %s16, 0
    %p125 = por %p123, %p124
    %p126 = scmp.ne.s32.totalorder %s118, %s120
    %p127 = scmp.eq.s32.totalorder %s21, 1
    %p128 = por %p126, %p127
    %p129 = scmp.ne.s32.totalorder %s120, %s121
    %p130 = scmp.eq.s32.totalorder %s21, 0
    %p131 = por %p129, %p130
    %p132 = scmp.ne.s32.totalorder %s120, %s121
    %p133 = scmp.eq.s32.totalorder %s22, 1
    %p134 = por %p132, %p133
    %p136 = scmp.ne.s32.totalorder %s121, %s135
    %p137 = scmp.eq.s32.totalorder %s22, 0
    %p138 = por %p136, %p137
    %s140 = sadd.s32 %s139, 1
    %p143 = scmp.eq.s32.totalorder %s16, 1
    %p144 = scmp.ne.s32.totalorder %s139, %s141
    %p145 = scmp.eq.s32.totalorder %s16, 0
    %p146 = por %p144, %p145
    %p147 = scmp.ne.s32.totalorder %s139, %s141
    %p148 = scmp.eq.s32.totalorder %s21, 1
    %p149 = por %p147, %p148
    %p150 = scmp.ne.s32.totalorder %s141, %s142
    %p151 = scmp.eq.s32.totalorder %s21, 0
    %p152 = por %p150, %p151
    %p153 = scmp.ne.s32.totalorder %s141, %s142
    %p154 = scmp.eq.s32.totalorder %s22, 1
    %p155 = por %p153, %p154
    %p157 = scmp.ne.s32.totalorder %s142, %s156
    %p158 = scmp.eq.s32.totalorder %s22, 0
    %p159 = por %p157, %p158
    %s161 = sadd.s32 %s160, 1
    %p164 = scmp.eq.s32.totalorder %s16, 1
    %p165 = scmp.ne.s32.totalorder %s160, %s162
    %p166 = scmp.eq.s32.totalorder %s16, 0
    %p167 = por %p165, %p166
    %p168 = scmp.ne.s32.totalorder %s160, %s162
    %p169 = scmp.eq.s32.totalorder %s21, 1
    %p170 = por %p168, %p169
    %p171 = scmp.ne.s32.totalorder %s162, %s163
    %p172 = scmp.eq.s32.totalorder %s21, 0
    %p173 = por %p171, %p172
    %p174 = scmp.ne.s32.totalorder %s162, %s163
    %p175 = scmp.eq.s32.totalorder %s22, 1
    %p176 = por %p174, %p175
    %p178 = scmp.ne.s32.totalorder %s163, %s177
    %p179 = scmp.eq.s32.totalorder %s22, 0
    %p180 = por %p178, %p179
    %s182 = sadd.s32 %s181, 1
    %p185 = scmp.eq.s32.totalorder %s16, 1
    %p186 = scmp.ne.s32.totalorder %s181, %s183
    %p187 = scmp.eq.s32.totalorder %s16, 0
    %p188 = por %p186, %p187
    %p189 = scmp.ne.s32.totalorder %s181, %s183
    %p190 = scmp.eq.s32.totalorder %s21, 1
    %p191 = por %p189, %p190
    %p192 = scmp.ne.s32.totalorder %s183, %s184
    %p193 = scmp.eq.s32.totalorder %s21, 0
    %p194 = por %p192, %p193
    %p195 = scmp.ne.s32.totalorder %s183, %s184
    %p196 = scmp.eq.s32.totalorder %s22, 1
    %p197 = por %p195, %p196
    %p199 = scmp.ne.s32.totalorder %s184, %s198
    %p200 = scmp.eq.s32.totalorder %s22, 0
    %p201 = por %p199, %p200
    %s202 = ssub.s32 %s16, %s23
    %p203 = scmp.eq.s32.totalorder %s202, 0
    %s205 = sadd.s32 %s204, 1
    %s206 = scalar_select %p203, %s204, %s205
    %p209 = pneg %p203
    %p210 = scmp.eq.s32.totalorder %s16, 1
    %p211 = por %p209, %p210
    %p212 = scmp.ne.s32.totalorder %s204, %s207
    %p213 = scmp.eq.s32.totalorder %s16, 0
    %p214 = por %p212, %p213
    %p215 = scmp.ne.s32.totalorder %s204, %s207
    %p216 = scmp.eq.s32.totalorder %s21, 1
    %p217 = por %p215, %p216
    %p218 = scmp.ne.s32.totalorder %s207, %s208
    %p219 = scmp.eq.s32.totalorder %s21, 0
    %p220 = por %p218, %p219
    %p221 = scmp.ne.s32.totalorder %s207, %s208
    %p222 = scmp.eq.s32.totalorder %s22, 1
    %p223 = por %p221, %p222
    %p225 = scmp.ne.s32.totalorder %s208, %s224
    %p226 = scmp.eq.s32.totalorder %s22, 0
    %p227 = por %p225, %p226
    %s228 = ssub.s32 %s16, %s23
    %p229 = scmp.eq.s32.totalorder %s228, 0
    %s231 = sadd.s32 %s230, 1
    %s232 = scalar_select %p229, %s230, %s231
    %p235 = pneg %p229
    %p236 = scmp.eq.s32.totalorder %s16, 1
    %p237 = por %p235, %p236
    %p238 = scmp.ne.s32.totalorder %s230, %s233
    %p239 = scmp.eq.s32.totalorder %s16, 0
    %p240 = por %p238, %p239
    %p241 = scmp.ne.s32.totalorder %s230, %s233
    %p242 = scmp.eq.s32.totalorder %s21, 1
    %p243 = por %p241, %p242
    %p244 = scmp.ne.s32.totalorder %s233, %s234
    %p245 = scmp.eq.s32.totalorder %s21, 0
    %p246 = por %p244, %p245
    %p247 = scmp.ne.s32.totalorder %s233, %s234
    %p248 = scmp.eq.s32.totalorder %s22, 1
    %p249 = por %p247, %p248
    %p251 = scmp.ne.s32.totalorder %s234, %s250
    %p252 = scmp.eq.s32.totalorder %s22, 0
    %p253 = por %p251, %p252
    %p254 = scmp.le.s32.totalorder 1, %s16
    %p255 = scmp.lt.s32.totalorder %s16, 3
    %p256 = pnand %p254, %p255
    %p257 = pneg %p256
    // Predicated region
    $region9: #{birnn_forward.6} parent=5 // pred_check
      _
    $region10: #{birnn_forward.6} parent=5 // pred_check_branch
      %259 = sbr.rel (%p256) target = $region12
    $region11: #{birnn_forward.6} parent=5 // pred_region
      %s260 = ssub.s32 %s16, 1
      // Predicated region
      $region13: #{birnn_forward.6} parent=11 // pred_check
        %p261 = pneg %p89
      $region14: #{birnn_forward.6} parent=11 // pred_check_branch
        %263 = sbr.rel (%p261) target = $region16
      $region15: #{birnn_forward.6} parent=11 // pred_region
        _
      $region16: #{birnn_forward.6} parent=11 // pred_fallthru
        _
      // Predicated region
      $region17: #{birnn_forward.6} parent=11 // pred_check
        %p264 = pneg %p110
      $region18: #{birnn_forward.6} parent=11 // pred_check_branch
        %266 = sbr.rel (%p264) target = $region20
      $region19: #{birnn_forward.6} parent=11 // pred_region
        _
      $region20: #{birnn_forward.6} parent=11 // pred_fallthru
        _
      // Predicated region
      $region21: #{birnn_forward.6} parent=11 // pred_check
        %p267 = pneg %p131
      $region22: #{birnn_forward.6} parent=11 // pred_check_branch
        %269 = sbr.rel (%p267) target = $region24
      $region23: #{birnn_forward.6} parent=11 // pred_region
        _
      $region24: #{birnn_forward.6} parent=11 // pred_fallthru
        _
      // Predicated region
      $region25: #{birnn_forward.6} parent=11 // pred_check
        %p270 = pneg %p152
      $region26: #{birnn_forward.6} parent=11 // pred_check_branch
        %272 = sbr.rel (%p270) target = $region28
      $region27: #{birnn_forward.6} parent=11 // pred_region
        _
      $region28: #{birnn_forward.6} parent=11 // pred_fallthru
        _
      // Predicated region
      $region29: #{birnn_forward.6} parent=11 // pred_check
        %p273 = pneg %p173
      $region30: #{birnn_forward.6} parent=11 // pred_check_branch
        %275 = sbr.rel (%p273) target = $region32
      $region31: #{birnn_forward.6} parent=11 // pred_region
        _
      $region32: #{birnn_forward.6} parent=11 // pred_fallthru
        _
      // Predicated region
      $region33: #{birnn_forward.6} parent=11 // pred_check
        %p276 = pneg %p194
      $region34: #{birnn_forward.6} parent=11 // pred_check_branch
        %278 = sbr.rel (%p276) target = $region36
      $region35: #{birnn_forward.6} parent=11 // pred_region
        _
      $region36: #{birnn_forward.6} parent=11 // pred_fallthru
        _
    $region12: #{birnn_forward.6} parent=5 // pred_fallthru
      _
    %p279 = scmp.lt.s32.totalorder %s16, 2
    // Predicated region
    $region37: #{birnn_forward.6} parent=5 // pred_check
      %p280 = pneg %p279
    $region38: #{birnn_forward.6} parent=5 // pred_check_branch
      %282 = sbr.rel (%p280) target = $region40
    $region39: #{birnn_forward.6} parent=5 // pred_region
      // Predicated region
      $region41: #{birnn_forward.6} parent=39 // pred_check
        %p283 = pneg %p36
      $region42: #{birnn_forward.6} parent=39 // pred_check_branch
        %285 = sbr.rel (%p283) target = $region44
      $region43: #{birnn_forward.6} parent=39 // pred_region
        %p286 = scmp.lt.s32.totalorder %s16, 1
        %s287 = scalar_select %p286, %s16, 1
        %s288 = smul.addr %s287, 8
        %s289 = scalar_lea.vmem %s0, %s288
      $region44: #{birnn_forward.6} parent=39 // pred_fallthru
        _
      // Predicated region
      $region45: #{birnn_forward.6} parent=39 // pred_check
        %p290 = pneg %p62
      $region46: #{birnn_forward.6} parent=39 // pred_check_branch
        %292 = sbr.rel (%p290) target = $region48
      $region47: #{birnn_forward.6} parent=39 // pred_region
        %p293 = scmp.lt.s32.totalorder %s16, 1
        %s294 = scalar_select %p293, %s16, 1
        %s295 = smul.addr %s294, 8
        %s296 = scalar_lea.vmem %s1, %s295
      $region48: #{birnn_forward.6} parent=39 // pred_fallthru
        _
    $region40: #{birnn_forward.6} parent=5 // pred_fallthru
      _
    %p297 = scmp.le.s32.totalorder 1, %s16
    %p298 = scmp.lt.s32.totalorder %s16, 3
    %p299 = pnand %p297, %p298
    %p300 = pneg %p299
    // Predicated region
    $region49: #{birnn_forward.6} parent=5 // pred_check
      _
    $region50: #{birnn_forward.6} parent=5 // pred_check_branch
      %302 = sbr.rel (%p299) target = $region52
    $region51: #{birnn_forward.6} parent=5 // pred_region
      %s303 = ssub.s32 %s16, 1
      %p304 = scmp.lt.s32.totalorder %s21, 1
      %s305 = scalar_select %p304, %s21, 1
      %s306 = smul.addr %s305, 8
      %s307 = scalar_lea.vmem %s0, %s306
      %p308 = pneg %p42
      %p309 = pneg %p39
      %p310 = scmp.lt.s32.totalorder %s21, 1
      %s311 = scalar_select %p310, %s21, 1
      %s312 = smul.addr %s311, 8
      %s313 = scalar_lea.vmem %s1, %s312
      %p314 = pneg %p68
      %p315 = pneg %p65
      %p316 = pneg %p89
      %p317 = pneg %p86
      %p318 = pneg %p110
      %p319 = pneg %p107
      %p320 = pneg %p131
      %p321 = pneg %p128
      %p322 = pneg %p152
      %p323 = pneg %p149
      %p324 = pneg %p173
      %p325 = pneg %p170
      %p326 = pneg %p194
      %p327 = pneg %p191
      %p328 = pneg %p220
      %p329 = pneg %p217
      %p330 = scmp.lt.s32.totalorder %s21, 1
      %s331 = scalar_select %p330, %s21, 1
      %s332 = smul.addr %s331, 8
      %s333 = scalar_lea.vmem %s8, %s332
      %p334 = pneg %p246
      %p335 = pneg %p243
      %p336 = scmp.lt.s32.totalorder %s21, 1
      %s337 = scalar_select %p336, %s21, 1
      %s338 = smul.addr %s337, 8
      %s339 = scalar_lea.vmem %s9, %s338
      %p340 = scmp.lt.s32.totalorder %s21, 1
      %s341 = scalar_select %p340, %s21, 1
      %s342 = smul.addr %s341, 8
      %s343 = scalar_lea.vmem %s0, %s342
      %p344 = scmp.lt.s32.totalorder %s21, 1
      %s345 = scalar_select %p344, %s21, 1
      %s346 = smul.addr %s345, 8
      %s347 = scalar_lea.vmem %s1, %s346
      %p348 = scmp.lt.s32.totalorder %s21, 1
      %s349 = scalar_select %p348, %s21, 1
      %s350 = smul.addr %s349, 8
      %s351 = scalar_lea.vmem %s8, %s350
      %p352 = scmp.lt.s32.totalorder %s21, 1
      %s353 = scalar_select %p352, %s21, 1
      %s354 = smul.addr %s353, 8
      %s355 = scalar_lea.vmem %s9, %s354
      %v356 = vld [vmem:[%s6] sm:$0x1]
      %v357 = vld [vmem:[%s7] sm:$0x1]
      %v358 = vld [vmem:[%s343] sm:$0xff]
      %v359 = vld [vmem:[%s2] sm:$0xff]
      %v360 = vld [vmem:[%s2 + $0x8] sm:$0xff]
      %v361 = vld [vmem:[%s2 + $0x10] sm:$0xff]
      %v362 = vld [vmem:[%s2 + $0x18] sm:$0xff]
      %vm363 = vcmask 261120
      %v365 = vsel %vm363, %v358, 0
      %367 = vmatprep.subr.mxu0 0.0
      %368 = vmatpush1.msra.mxu0 %v359
      %369 = vmatprep.subr.mxu0 0.0
      %370 = vmatpush1.msra.mxu0 %v360
      %371 = vmatprep.subr.mxu0 0.0
      %372 = vmatpush1.msra.mxu0 %v361
      %373 = vmatprep.subr.mxu0 0.0
      %374 = vmatpush1.msra.mxu0 %v362
      %375 = vmatprep.subr.mxu0 0.0
      %376 = vmatpush1.msra.mxu0 0.0
      %377 = vmatprep.subr.mxu0 0.0
      %378 = vmatpush1.msra.mxu0 0.0
      %379 = vmatprep.subr.mxu0 0.0
      %380 = vmatpush1.msra.mxu0 0.0
      %381 = vmatprep.subr.mxu0 0.0
      %382 = vmatpush1.msra.mxu0 0.0
      %383 = vmatprep.subr.mxu0 0.0
      %384 = vmatpush1.msra.mxu0 0.0
      %385 = vmatprep.subr.mxu0 0.0
      %386 = vmatpush1.msra.mxu0 0.0
      %387 = vmatprep.subr.mxu0 0.0
      %388 = vmatpush1.msra.mxu0 0.0
      %389 = vmatprep.subr.mxu0 0.0
      %390 = vmatpush1.msra.mxu0 0.0
      %391 = vmatprep.subr.mxu0 0.0
      %392 = vmatpush1.msra.mxu0 0.0
      %393 = vmatprep.subr.mxu0 0.0
      %394 = vmatpush1.msra.mxu0 0.0
      %395 = vmatprep.subr.mxu0 0.0
      %396 = vmatpush1.msra.mxu0 0.0
      %397 = vmatprep.subr.mxu0 0.0
      %398 = vmatpush1.msra.mxu0 0.0
      %399 = vmatprep.subr.mxu0 0.0
      %400 = vmatpush1.msra.mxu0 0.0
      %401 = vmatprep.subr.mxu0 0.0
      %402 = vmatpush1.msra.mxu0 0.0
      %403 = vmatprep.subr.mxu0 0.0
      %404 = vmatpush1.msra.mxu0 0.0
      %405 = vmatprep.subr.mxu0 0.0
      %406 = vmatpush1.msra.mxu0 0.0
      %407 = vmatprep.subr.mxu0 0.0
      %408 = vmatpush1.msra.mxu0 0.0
      %409 = vmatprep.subr.mxu0 0.0
      %410 = vmatpush1.msra.mxu0 0.0
      %411 = vmatprep.subr.mxu0 0.0
      %412 = vmatpush1.msra.mxu0 0.0
      %413 = vmatprep.subr.mxu0 0.0
      %414 = vmatpush1.msra.mxu0 0.0
      %415 = vmatprep.subr.mxu0 0.0
      %416 = vmatpush1.msra.mxu0 0.0
      %417 = vmatprep.subr.mxu0 0.0
      %418 = vmatpush1.msra.mxu0 0.0
      %419 = vmatprep.subr.mxu0 0.0
      %420 = vmatpush1.msra.mxu0 0.0
      %421 = vmatprep.subr.mxu0 0.0
      %422 = vmatpush1.msra.mxu0 0.0
      %423 = vmatprep.subr.mxu0 0.0
      %424 = vmatpush1.msra.mxu0 0.0
      %425 = vmatprep.subr.mxu0 0.0
      %426 = vmatpush1.msra.mxu0 0.0
      %427 = vmatprep.subr.mxu0 0.0
      %428 = vmatpush1.msra.mxu0 0.0
      %429 = vmatprep.subr.mxu0 0.0
      %430 = vmatpush1.msra.mxu0 0.0
      %431 = vmatprep.mubr.f32.mxu0 0.0
      %432 = vmatmul.mubr.f32.gmra.mrb[0].mxu0 %v365
      %v433 = vpop.f32.mrb[0].mxu0
      %v434 = vadd.f32 0.0, %v433
      %v435 = vpop.f32.mrb[0].mxu0
      %436 = vdwg.mxu0
      %v438 = vlaneseq
      %v439 = vshrl.u32 %v438, 7
      %v440 = vsub.s32 0, %v439
      %v441 = vrot.slane %v356, %v440
      %v443 = vadd.f32 %v441, %v434
      %v444 = vld [vmem:[%s4] sm:$0xff]
      %v445 = vld [vmem:[%s4 + $0x8] sm:$0xff]
      %v446 = vld [vmem:[%s4 + $0x10] sm:$0xff]
      %v447 = vld [vmem:[%s4 + $0x18] sm:$0xff]
      %448 = vmatprep.subr.mxu0 0.0
      %449 = vmatpush1.msra.mxu0 %v444
      %450 = vmatprep.subr.mxu0 0.0
      %451 = vmatpush1.msra.mxu0 %v445
      %452 = vmatprep.subr.mxu0 0.0
      %453 = vmatpush1.msra.mxu0 %v446
      %454 = vmatprep.subr.mxu0 0.0
      %455 = vmatpush1.msra.mxu0 %v447
      %456 = vmatprep.subr.mxu0 0.0
      %457 = vmatpush1.msra.mxu0 0.0
      %458 = vmatprep.subr.mxu0 0.0
      %459 = vmatpush1.msra.mxu0 0.0
      %460 = vmatprep.subr.mxu0 0.0
      %461 = vmatpush1.msra.mxu0 0.0
      %462 = vmatprep.subr.mxu0 0.0
      %463 = vmatpush1.msra.mxu0 0.0
      %464 = vmatprep.subr.mxu0 0.0
      %465 = vmatpush1.msra.mxu0 0.0
      %466 = vmatprep.subr.mxu0 0.0
      %467 = vmatpush1.msra.mxu0 0.0
      %468 = vmatprep.subr.mxu0 0.0
      %469 = vmatpush1.msra.mxu0 0.0
      %470 = vmatprep.subr.mxu0 0.0
      %471 = vmatpush1.msra.mxu0 0.0
      %472 = vmatprep.subr.mxu0 0.0
      %473 = vmatpush1.msra.mxu0 0.0
      %474 = vmatprep.subr.mxu0 0.0
      %475 = vmatpush1.msra.mxu0 0.0
      %476 = vmatprep.subr.mxu0 0.0
      %477 = vmatpush1.msra.mxu0 0.0
      %478 = vmatprep.subr.mxu0 0.0
      %479 = vmatpush1.msra.mxu0 0.0
      %480 = vmatprep.subr.mxu0 0.0
      %481 = vmatpush1.msra.mxu0 0.0
      %482 = vmatprep.subr.mxu0 0.0
      %483 = vmatpush1.msra.mxu0 0.0
      %484 = vmatprep.subr.mxu0 0.0
      %485 = vmatpush1.msra.mxu0 0.0
      %486 = vmatprep.subr.mxu0 0.0
      %487 = vmatpush1.msra.mxu0 0.0
      %488 = vmatprep.subr.mxu0 0.0
      %489 = vmatpush1.msra.mxu0 0.0
      %490 = vmatprep.subr.mxu0 0.0
      %491 = vmatpush1.msra.mxu0 0.0
      %492 = vmatprep.subr.mxu0 0.0
      %493 = vmatpush1.msra.mxu0 0.0
      %494 = vmatprep.subr.mxu0 0.0
      %495 = vmatpush1.msra.mxu0 0.0
      %496 = vmatprep.subr.mxu0 0.0
      %497 = vmatpush1.msra.mxu0 0.0
      %498 = vmatprep.subr.mxu0 0.0
      %499 = vmatpush1.msra.mxu0 0.0
      %500 = vmatprep.subr.mxu0 0.0
      %501 = vmatpush1.msra.mxu0 0.0
      %502 = vmatprep.subr.mxu0 0.0
      %503 = vmatpush1.msra.mxu0 0.0
      %504 = vmatprep.subr.mxu0 0.0
      %505 = vmatpush1.msra.mxu0 0.0
      %506 = vmatprep.subr.mxu0 0.0
      %507 = vmatpush1.msra.mxu0 0.0
      %508 = vmatprep.subr.mxu0 0.0
      %509 = vmatpush1.msra.mxu0 0.0
      %510 = vmatprep.subr.mxu0 0.0
      %511 = vmatpush1.msra.mxu0 0.0
      %512 = vmatprep.mubr.f32.mxu0 0.0
      %513 = vmatmul.mubr.f32.gmra.mrb[0].mxu0 %v365
      %v514 = vpop.f32.mrb[0].mxu0
      %v515 = vadd.f32 0.0, %v514
      %v516 = vpop.f32.mrb[0].mxu0
      %517 = vdwg.mxu0
      %v519 = vlaneseq
      %v520 = vshrl.u32 %v519, 7
      %v521 = vsub.s32 0, %v520
      %v522 = vrot.slane %v357, %v521
      %v524 = vadd.f32 %v522, %v515
      %v525 = vld [vmem:[%s347] sm:$0xff]
      %v526 = vld [vmem:[%s3] sm:$0xff]
      %v527 = vld [vmem:[%s3 + $0x8] sm:$0xff]
      %v528 = vld [vmem:[%s3 + $0x10] sm:$0xff]
      %v529 = vld [vmem:[%s3 + $0x18] sm:$0xff]
      %v531 = vsel %vm363, %v525, 0
      %533 = vmatprep.subr.mxu0 0.0
      %534 = vmatpush1.msra.mxu0 %v526
      %535 = vmatprep.subr.mxu0 0.0
      %536 = vmatpush1.msra.mxu0 %v527
      %537 = vmatprep.subr.mxu0 0.0
      %538 = vmatpush1.msra.mxu0 %v528
      %539 = vmatprep.subr.mxu0 0.0
      %540 = vmatpush1.msra.mxu0 %v529
      %541 = vmatprep.subr.mxu0 0.0
      %542 = vmatpush1.msra.mxu0 0.0
      %543 = vmatprep.subr.mxu0 0.0
      %544 = vmatpush1.msra.mxu0 0.0
      %545 = vmatprep.subr.mxu0 0.0
      %546 = vmatpush1.msra.mxu0 0.0
      %547 = vmatprep.subr.mxu0 0.0
      %548 = vmatpush1.msra.mxu0 0.0
      %549 = vmatprep.subr.mxu0 0.0
      %550 = vmatpush1.msra.mxu0 0.0
      %551 = vmatprep.subr.mxu0 0.0
      %552 = vmatpush1.msra.mxu0 0.0
      %553 = vmatprep.subr.mxu0 0.0
      %554 = vmatpush1.msra.mxu0 0.0
      %555 = vmatprep.subr.mxu0 0.0
      %556 = vmatpush1.msra.mxu0 0.0
      %557 = vmatprep.subr.mxu0 0.0
      %558 = vmatpush1.msra.mxu0 0.0
      %559 = vmatprep.subr.mxu0 0.0
      %560 = vmatpush1.msra.mxu0 0.0
      %561 = vmatprep.subr.mxu0 0.0
      %562 = vmatpush1.msra.mxu0 0.0
      %563 = vmatprep.subr.mxu0 0.0
      %564 = vmatpush1.msra.mxu0 0.0
      %565 = vmatprep.subr.mxu0 0.0
      %566 = vmatpush1.msra.mxu0 0.0
      %567 = vmatprep.subr.mxu0 0.0
      %568 = vmatpush1.msra.mxu0 0.0
      %569 = vmatprep.subr.mxu0 0.0
      %570 = vmatpush1.msra.mxu0 0.0
      %571 = vmatprep.subr.mxu0 0.0
      %572 = vmatpush1.msra.mxu0 0.0
      %573 = vmatprep.subr.mxu0 0.0
      %574 = vmatpush1.msra.mxu0 0.0
      %575 = vmatprep.subr.mxu0 0.0
      %576 = vmatpush1.msra.mxu0 0.0
      %577 = vmatprep.subr.mxu0 0.0
      %578 = vmatpush1.msra.mxu0 0.0
      %579 = vmatprep.subr.mxu0 0.0
      %580 = vmatpush1.msra.mxu0 0.0
      %581 = vmatprep.subr.mxu0 0.0
      %582 = vmatpush1.msra.mxu0 0.0
      %583 = vmatprep.subr.mxu0 0.0
      %584 = vmatpush1.msra.mxu0 0.0
      %585 = vmatprep.subr.mxu0 0.0
      %586 = vmatpush1.msra.mxu0 0.0
      %587 = vmatprep.subr.mxu0 0.0
      %588 = vmatpush1.msra.mxu0 0.0
      %589 = vmatprep.subr.mxu0 0.0
      %590 = vmatpush1.msra.mxu0 0.0
      %591 = vmatprep.subr.mxu0 0.0
      %592 = vmatpush1.msra.mxu0 0.0
      %593 = vmatprep.subr.mxu0 0.0
      %594 = vmatpush1.msra.mxu0 0.0
      %595 = vmatprep.subr.mxu0 0.0
      %596 = vmatpush1.msra.mxu0 0.0
      %597 = vmatprep.mubr.f32.mxu0 0.0
      %598 = vmatmul.mubr.f32.gmra.mrb[0].mxu0 %v531
      %v599 = vpop.f32.mrb[0].mxu0
      %v600 = vadd.f32 0.0, %v599
      %v601 = vpop.f32.mrb[0].mxu0
      %602 = vdwg.mxu0
      %v603 = vadd.f32 %v443, %v600
      %v604 = vld [vmem:[%s5] sm:$0xff]
      %v605 = vld [vmem:[%s5 + $0x8] sm:$0xff]
      %v606 = vld [vmem:[%s5 + $0x10] sm:$0xff]
      %v607 = vld [vmem:[%s5 + $0x18] sm:$0xff]
      %608 = vmatprep.subr.mxu0 0.0
      %609 = vmatpush1.msra.mxu0 %v604
      %610 = vmatprep.subr.mxu0 0.0
      %611 = vmatpush1.msra.mxu0 %v605
      %612 = vmatprep.subr.mxu0 0.0
      %613 = vmatpush1.msra.mxu0 %v606
      %614 = vmatprep.subr.mxu0 0.0
      %615 = vmatpush1.msra.mxu0 %v607
      %616 = vmatprep.subr.mxu0 0.0
      %617 = vmatpush1.msra.mxu0 0.0
      %618 = vmatprep.subr.mxu0 0.0
      %619 = vmatpush1.msra.mxu0 0.0
      %620 = vmatprep.subr.mxu0 0.0
      %621 = vmatpush1.msra.mxu0 0.0
      %622 = vmatprep.subr.mxu0 0.0
      %623 = vmatpush1.msra.mxu0 0.0
      %624 = vmatprep.subr.mxu0 0.0
      %625 = vmatpush1.msra.mxu0 0.0
      %626 = vmatprep.subr.mxu0 0.0
      %627 = vmatpush1.msra.mxu0 0.0
      %628 = vmatprep.subr.mxu0 0.0
      %629 = vmatpush1.msra.mxu0 0.0
      %630 = vmatprep.subr.mxu0 0.0
      %631 = vmatpush1.msra.mxu0 0.0
      %632 = vmatprep.subr.mxu0 0.0
      %633 = vmatpush1.msra.mxu0 0.0
      %634 = vmatprep.subr.mxu0 0.0
      %635 = vmatpush1.msra.mxu0 0.0
      %636 = vmatprep.subr.mxu0 0.0
      %637 = vmatpush1.msra.mxu0 0.0
      %638 = vmatprep.subr.mxu0 0.0
      %639 = vmatpush1.msra.mxu0 0.0
      %640 = vmatprep.subr.mxu0 0.0
      %641 = vmatpush1.msra.mxu0 0.0
      %642 = vmatprep.subr.mxu0 0.0
      %643 = vmatpush1.msra.mxu0 0.0
      %644 = vmatprep.subr.mxu0 0.0
      %645 = vmatpush1.msra.mxu0 0.0
      %646 = vmatprep.subr.mxu0 0.0
      %647 = vmatpush1.msra.mxu0 0.0
      %648 = vmatprep.subr.mxu0 0.0
      %649 = vmatpush1.msra.mxu0 0.0
      %650 = vmatprep.subr.mxu0 0.0
      %651 = vmatpush1.msra.mxu0 0.0
      %652 = vmatprep.subr.mxu0 0.0
      %653 = vmatpush1.msra.mxu0 0.0
      %654 = vmatprep.subr.mxu0 0.0
      %655 = vmatpush1.msra.mxu0 0.0
      %656 = vmatprep.subr.mxu0 0.0
      %657 = vmatpush1.msra.mxu0 0.0
      %658 = vmatprep.subr.mxu0 0.0
      %659 = vmatpush1.msra.mxu0 0.0
      %660 = vmatprep.subr.mxu0 0.0
      %661 = vmatpush1.msra.mxu0 0.0
      %662 = vmatprep.subr.mxu0 0.0
      %663 = vmatpush1.msra.mxu0 0.0
      %664 = vmatprep.subr.mxu0 0.0
      %665 = vmatpush1.msra.mxu0 0.0
      %666 = vmatprep.subr.mxu0 0.0
      %667 = vmatpush1.msra.mxu0 0.0
      %668 = vmatprep.subr.mxu0 0.0
      %669 = vmatpush1.msra.mxu0 0.0
      %670 = vmatprep.subr.mxu0 0.0
      %671 = vmatpush1.msra.mxu0 0.0
      %672 = vmatprep.mubr.f32.mxu0 0.0
      %673 = vmatmul.mubr.f32.gmra.mrb[0].mxu0 %v531
      %v674 = vpop.f32.mrb[0].mxu0
      %v675 = vadd.f32 0.0, %v674
      %v676 = vpop.f32.mrb[0].mxu0
      %677 = vdwg.mxu0
      %v678 = vadd.f32 %v524, %v675
      %679 = vst [vmem:[%s351] sm:$0xff] %v603
      %680 = vst [vmem:[%s355] sm:$0xff] %v678
      %p681 = scmp.lt.s32.totalorder %s21, 1
      %s682 = scalar_select %p681, %s21, 1
      %s683 = smul.addr %s682, 8
      %s684 = scalar_lea.vmem %s8, %s683
      %p685 = scmp.lt.s32.totalorder %s21, 1
      %s686 = scalar_select %p685, %s21, 1
      %s687 = smul.addr %s686, 8
      %s688 = scalar_lea.vmem %s9, %s687
      // Predicated region
      $region53: #{birnn_forward.6} parent=51 // pred_check
        %p689 = pneg %p217
      $region54: #{birnn_forward.6} parent=51 // pred_check_branch
        %691 = sbr.rel (%p689) target = $region56
      $region55: #{birnn_forward.6} parent=51 // pred_region
        _
      $region56: #{birnn_forward.6} parent=51 // pred_fallthru
        _
      // Predicated region
      $region57: #{birnn_forward.6} parent=51 // pred_check
        %p692 = pneg %p243
      $region58: #{birnn_forward.6} parent=51 // pred_check_branch
        %694 = sbr.rel (%p692) target = $region60
      $region59: #{birnn_forward.6} parent=51 // pred_region
        _
      $region60: #{birnn_forward.6} parent=51 // pred_fallthru
        _
    $region52: #{birnn_forward.6} parent=5 // pred_fallthru
      _
    %p695 = scmp.le.s32.totalorder 2, %s16
    // Predicated region
    $region61: #{birnn_forward.6} parent=5 // pred_check
      %p696 = pneg %p695
    $region62: #{birnn_forward.6} parent=5 // pred_check_branch
      %698 = sbr.rel (%p696) target = $region64
    $region63: #{birnn_forward.6} parent=5 // pred_region
      %s699 = ssub.s32 %s16, 2
      // Predicated region
      $region65: #{birnn_forward.6} parent=63 // pred_check
        %p700 = pneg %p223
      $region66: #{birnn_forward.6} parent=63 // pred_check_branch
        %702 = sbr.rel (%p700) target = $region68
      $region67: #{birnn_forward.6} parent=63 // pred_region
        %p703 = scmp.lt.s32.totalorder %s22, 1
        %s704 = scalar_select %p703, %s22, 1
        %s705 = smul.addr %s704, 8
        %s706 = scalar_lea.vmem %s8, %s705
      $region68: #{birnn_forward.6} parent=63 // pred_fallthru
        _
      // Predicated region
      $region69: #{birnn_forward.6} parent=63 // pred_check
        %p707 = pneg %p249
      $region70: #{birnn_forward.6} parent=63 // pred_check_branch
        %709 = sbr.rel (%p707) target = $region72
      $region71: #{birnn_forward.6} parent=63 // pred_region
        %p710 = scmp.lt.s32.totalorder %s22, 1
        %s711 = scalar_select %p710, %s22, 1
        %s712 = smul.addr %s711, 8
        %s713 = scalar_lea.vmem %s9, %s712
      $region72: #{birnn_forward.6} parent=63 // pred_fallthru
        _
    $region64: #{birnn_forward.6} parent=5 // pred_fallthru
      _
  $region6: #{birnn_forward.6} parent=0 // loop_footer
    %s20 = sadd.s32 1, %s16
  $region7: #{birnn_forward.6} parent=0 // loop_footer_branch
    %15 = sbr.rel target = $region3
  $region8: #{birnn_forward.6} parent=0 // loop_exit
    _

// kernel: birnn_forward.5
$region0: #{birnn_forward.5}
  #allocation0 [shape = 'u32[]', space=smem, size = 0x4, offset = 0x4, fixed_abs, tag = 'smem constant byte address 0x4 - core index']
  #allocation1 [shape = 'u32[144,128]{1,0:T(1,128)}', space=vmem, size = 0x12000, scoped, tag = 'internal scratch']
  #allocation2 [shape = 'f32[2,32,128]{2,1,0:T(8,128)}', space=vmem, size = 0x8000, scoped, tag = 'scratch operand']
  #allocation3 [shape = 'f32[2,32]{1,0:T(2,128)}', space=vmem, size = 0x400, scoped, tag = 'scratch operand']
  #allocation4 [shape = 'f32[2,32]{1,0:T(2,128)}', space=vmem, size = 0x400, scoped, tag = 'scratch operand']
  #allocation5 [shape = 'f32[2,32]{1,0:T(2,128)}', space=vmem, size = 0x400, scoped, tag = 'scratch operand']
  #allocation6 [shape = 'f32[2,32]{1,0:T(2,128)}', space=vmem, size = 0x400, scoped, tag = 'scratch operand']
  #allocation7 [shape = 's32[1]{0}', space=sflag, size = 0x4, scoped, tag = 'scratch operand']
  #allocation8 [shape = 's32[]', space=sflag, size = 0x4, offset = 0, fixed_abs, tag = 'sflag constant byte address 0x0 - dummy sync flag']
  %s0 = inlined_call_operand.vmem [shape: f32[8,2,128], index: 0, kind: input, shape index: {}]
  %s1 = inlined_call_operand.vmem [shape: f32[8,2,128], index: 1, kind: input, shape index: {}]
  %s2 = inlined_call_operand.vmem [shape: f32[2,32,128], index: 2, kind: input, shape index: {}]
  %s3 = inlined_call_operand.vmem [shape: f32[8,2,32], index: 3, kind: output, shape index: {0}]
  %s4 = inlined_call_operand.vmem [shape: f32[8,2,32], index: 4, kind: output, shape index: {1}]
  %5 = xla_tuple %s3, %s4
  %s6 = sld [smem:[#allocation0]]
  $region87: #{birnn_forward.5} parent=0
    _
  %s8 = ssub.s32 1, %s6
  %s9 = scalar_select 0, %s8, %s6
  loop: start=0, step=1, limit=4
  $region2: #{birnn_forward.5} parent=0 // loop_pre_header
    _
  $region3: #{birnn_forward.5} parent=0 // loop_header
    %s11 = sphi 0, %s15
    %p12 = scmp.ge.s32.totalorder %s11, 4
    %s21 = sphi 0, %s23
    %s24 = sphi 0, %s21
    %s25 = sphi 0, %s24
    %s41 = sphi 0, %s25
    %s49 = sphi 0, %s51
    %s52 = sphi 0, %s49
    %s53 = sphi 0, %s52
    %s69 = sphi 0, %s53
    %s75 = sphi 0, %s77
    %s78 = sphi 0, %s75
    %s79 = sphi 0, %s78
    %s95 = sphi 0, %s79
    %s103 = sphi 0, %s105
    %s106 = sphi 0, %s103
    %s107 = sphi 0, %s106
    %s123 = sphi 0, %s107
  $region4: #{birnn_forward.5} parent=0 // loop_header_branch
    %14 = sbr.rel (%p12) target = $region8
  $region5: #{birnn_forward.5} parent=0 // loop_body
    %s16 = ssub.s32 %s11, 1
    %s17 = ssub.s32 %s11, 2
    %s18 = sadd.s32 %s11, 1
    %s19 = ssub.s32 %s11, %s18
    %p20 = scmp.eq.s32.totalorder %s19, 0
    %s22 = sadd.s32 %s21, 1
    %s23 = scalar_select %p20, %s21, %s22
    %p26 = pneg %p20
    %p27 = scmp.eq.s32.totalorder %s11, 1
    %p28 = por %p26, %p27
    %p29 = scmp.ne.s32.totalorder %s21, %s24
    %p30 = scmp.eq.s32.totalorder %s11, 0
    %p31 = por %p29, %p30
    %p32 = scmp.ne.s32.totalorder %s21, %s24
    %p33 = scmp.eq.s32.totalorder %s16, 1
    %p34 = por %p32, %p33
    %p35 = scmp.ne.s32.totalorder %s24, %s25
    %p36 = scmp.eq.s32.totalorder %s16, 0
    %p37 = por %p35, %p36
    %p38 = scmp.ne.s32.totalorder %s24, %s25
    %p39 = scmp.eq.s32.totalorder %s17, 1
    %p40 = por %p38, %p39
    %p42 = scmp.ne.s32.totalorder %s25, %s41
    %p43 = scmp.eq.s32.totalorder %s17, 0
    %p44 = por %p42, %p43
    %s45 = ssub.s32 1, %s11
    %s46 = ssub.s32 1, %s18
    %s47 = ssub.s32 %s45, %s46
    %p48 = scmp.eq.s32.totalorder %s47, 0
    %s50 = sadd.s32 %s49, 1
    %s51 = scalar_select %p48, %s49, %s50
    %p54 = pneg %p48
    %p55 = scmp.eq.s32.totalorder %s11, 1
    %p56 = por %p54, %p55
    %p57 = scmp.ne.s32.totalorder %s49, %s52
    %p58 = scmp.eq.s32.totalorder %s11, 0
    %p59 = por %p57, %p58
    %p60 = scmp.ne.s32.totalorder %s49, %s52
    %p61 = scmp.eq.s32.totalorder %s16, 1
    %p62 = por %p60, %p61
    %p63 = scmp.ne.s32.totalorder %s52, %s53
    %p64 = scmp.eq.s32.totalorder %s16, 0
    %p65 = por %p63, %p64
    %p66 = scmp.ne.s32.totalorder %s52, %s53
    %p67 = scmp.eq.s32.totalorder %s17, 1
    %p68 = por %p66, %p67
    %p70 = scmp.ne.s32.totalorder %s53, %s69
    %p71 = scmp.eq.s32.totalorder %s17, 0
    %p72 = por %p70, %p71
    %s73 = ssub.s32 %s11, %s18
    %p74 = scmp.eq.s32.totalorder %s73, 0
    %s76 = sadd.s32 %s75, 1
    %s77 = scalar_select %p74, %s75, %s76
    %p80 = pneg %p74
    %p81 = scmp.eq.s32.totalorder %s11, 1
    %p82 = por %p80, %p81
    %p83 = scmp.ne.s32.totalorder %s75, %s78
    %p84 = scmp.eq.s32.totalorder %s11, 0
    %p85 = por %p83, %p84
    %p86 = scmp.ne.s32.totalorder %s75, %s78
    %p87 = scmp.eq.s32.totalorder %s16, 1
    %p88 = por %p86, %p87
    %p89 = scmp.ne.s32.totalorder %s78, %s79
    %p90 = scmp.eq.s32.totalorder %s16, 0
    %p91 = por %p89, %p90
    %p92 = scmp.ne.s32.totalorder %s78, %s79
    %p93 = scmp.eq.s32.totalorder %s17, 1
    %p94 = por %p92, %p93
    %p96 = scmp.ne.s32.totalorder %s79, %s95
    %p97 = scmp.eq.s32.totalorder %s17, 0
    %p98 = por %p96, %p97
    %s99 = ssub.s32 1, %s11
    %s100 = ssub.s32 1, %s18
    %s101 = ssub.s32 %s99, %s100
    %p102 = scmp.eq.s32.totalorder %s101, 0
    %s104 = sadd.s32 %s103, 1
    %s105 = scalar_select %p102, %s103, %s104
    %p108 = pneg %p102
    %p109 = scmp.eq.s32.totalorder %s11, 1
    %p110 = por %p108, %p109
    %p111 = scmp.ne.s32.totalorder %s103, %s106
    %p112 = scmp.eq.s32.totalorder %s11, 0
    %p113 = por %p111, %p112
    %p114 = scmp.ne.s32.totalorder %s103, %s106
    %p115 = scmp.eq.s32.totalorder %s16, 1
    %p116 = por %p114, %p115
    %p117 = scmp.ne.s32.totalorder %s106, %s107
    %p118 = scmp.eq.s32.totalorder %s16, 0
    %p119 = por %p117, %p118
    %p120 = scmp.ne.s32.totalorder %s106, %s107
    %p121 = scmp.eq.s32.totalorder %s17, 1
    %p122 = por %p120, %p121
    %p124 = scmp.ne.s32.totalorder %s107, %s123
    %p125 = scmp.eq.s32.totalorder %s17, 0
    %p126 = por %p124, %p125
    %p127 = scmp.le.s32.totalorder 1, %s11
    %p128 = scmp.lt.s32.totalorder %s11, 3
    %p129 = pnand %p127, %p128
    %p130 = pneg %p129
    // Predicated region
    $region9: #{birnn_forward.5} parent=5 // pred_check
      _
    $region10: #{birnn_forward.5} parent=5 // pred_check_branch
      %132 = sbr.rel (%p129) target = $region12
    $region11: #{birnn_forward.5} parent=5 // pred_region
      %s133 = ssub.s32 %s11, 1
    $region12: #{birnn_forward.5} parent=5 // pred_fallthru
      _
    %p134 = scmp.lt.s32.totalorder %s11, 2
    // Predicated region
    $region13: #{birnn_forward.5} parent=5 // pred_check
      %p135 = pneg %p134
    $region14: #{birnn_forward.5} parent=5 // pred_check_branch
      %137 = sbr.rel (%p135) target = $region16
    $region15: #{birnn_forward.5} parent=5 // pred_region
      // Predicated region
      $region17: #{birnn_forward.5} parent=15 // pred_check
        %p138 = pneg %p31
      $region18: #{birnn_forward.5} parent=15 // pred_check_branch
        %140 = sbr.rel (%p138) target = $region20
      $region19: #{birnn_forward.5} parent=15 // pred_region
        %s141 = smul.u32 4, %s11
        %p142 = scmp.lt.s32.totalorder %s141, 7
        %s143 = scalar_select %p142, %s141, 7
        %s144 = smul.addr %s143, 2
        %s145 = scalar_lea.vmem %s0, %s144
        %s146 = smul.u32 4, %s11
      $region20: #{birnn_forward.5} parent=15 // pred_fallthru
        _
      // Predicated region
      $region21: #{birnn_forward.5} parent=15 // pred_check
        %p147 = pneg %p59
      $region22: #{birnn_forward.5} parent=15 // pred_check_branch
        %149 = sbr.rel (%p147) target = $region24
      $region23: #{birnn_forward.5} parent=15 // pred_region
        %s150 = ssub.s32 1, %s11
        %s151 = smul.u32 4, %s150
        %p152 = scmp.lt.s32.totalorder %s151, 7
        %s153 = scalar_select %p152, %s151, 7
        %s154 = smul.addr %s153, 2
        %s155 = scalar_lea.vmem %s1, %s154
        %s156 = ssub.s32 1, %s11
        %s157 = smul.u32 4, %s156
      $region24: #{birnn_forward.5} parent=15 // pred_fallthru
        _
    $region16: #{birnn_forward.5} parent=5 // pred_fallthru
      _
    %p158 = scmp.le.s32.totalorder 1, %s11
    %p159 = scmp.lt.s32.totalorder %s11, 3
    %p160 = pnand %p158, %p159
    %p161 = pneg %p160
    // Predicated region
    $region25: #{birnn_forward.5} parent=5 // pred_check
      _
    $region26: #{birnn_forward.5} parent=5 // pred_check_branch
      %163 = sbr.rel (%p160) target = $region28
    $region27: #{birnn_forward.5} parent=5 // pred_region
      %s164 = ssub.s32 %s11, 1
      %s165 = smul.u32 4, %s16
      %p166 = scmp.lt.s32.totalorder %s165, 7
      %s167 = scalar_select %p166, %s165, 7
      %s168 = smul.addr %s167, 2
      %s169 = scalar_lea.vmem %s0, %s168
      %p170 = pneg %p37
      %p171 = pneg %p34
      %s172 = ssub.s32 1, %s16
      %s173 = smul.u32 4, %s172
      %p174 = scmp.lt.s32.totalorder %s173, 7
      %s175 = scalar_select %p174, %s173, 7
      %s176 = smul.addr %s175, 2
      %s177 = scalar_lea.vmem %s1, %s176
      %p178 = pneg %p65
      %p179 = pneg %p62
      %p180 = pneg %p91
      %p181 = pneg %p88
      %s182 = smul.u32 4, %s16
      %p183 = scmp.lt.s32.totalorder %s182, 7
      %s184 = scalar_select %p183, %s182, 7
      %s185 = smul.addr %s184, 2
      %s186 = scalar_lea.vmem %s3, %s185
      %p187 = pneg %p119
      %p188 = pneg %p116
      %s189 = ssub.s32 1, %s16
      %s190 = smul.u32 4, %s189
      %p191 = scmp.lt.s32.totalorder %s190, 7
      %s192 = scalar_select %p191, %s190, 7
      %s193 = smul.addr %s192, 2
      %s194 = scalar_lea.vmem %s4, %s193
      %s195 = smul.u32 4, %s16
      %p196 = scmp.lt.s32.totalorder %s195, 7
      %s197 = scalar_select %p196, %s195, 7
      %s198 = smul.addr %s197, 2
      %s199 = scalar_lea.vmem %s0, %s198
      %s200 = smul.u32 4, %s16
      %s201 = ssub.s32 1, %s16
      %s202 = smul.u32 4, %s201
      %p203 = scmp.lt.s32.totalorder %s202, 7
      %s204 = scalar_select %p203, %s202, 7
      %s205 = smul.addr %s204, 2
      %s206 = scalar_lea.vmem %s1, %s205
      %s207 = ssub.s32 1, %s16
      %s208 = smul.u32 4, %s207
      %s209 = smul.u32 4, %s16
      %p210 = scmp.lt.s32.totalorder %s209, 7
      %s211 = scalar_select %p210, %s209, 7
      %s212 = smul.addr %s211, 2
      %s213 = scalar_lea.vmem %s3, %s212
      %s214 = smul.u32 4, %s16
      %s215 = ssub.s32 1, %s16
      %s216 = smul.u32 4, %s215
      %p217 = scmp.lt.s32.totalorder %s216, 7
      %s218 = scalar_select %p217, %s216, 7
      %s219 = smul.addr %s218, 2
      %s220 = scalar_lea.vmem %s4, %s219
      %s221 = ssub.s32 1, %s16
      %s222 = smul.u32 4, %s221
      %p223 = scmp.eq.s32.totalorder %s16, 0
      // Predicated region
      $region29: #{birnn_forward.5} parent=27 // pred_check
        %p224 = pneg %p223
      $region30: #{birnn_forward.5} parent=27 // pred_check_branch
        %226 = sbr.rel (%p224) target = $region32
      $region31: #{birnn_forward.5} parent=27 // pred_region
        %p228 = scmp.lt.u32.totalorder 64, 8
        %p229 = pneg %p228
        // Predicated region
        $region33: #{birnn_forward.5} parent=31 // pred_check
          _
        $region34: #{birnn_forward.5} parent=31 // pred_check_branch
          %231 = sbr.rel (%p228) target = $region36
        $region35: #{birnn_forward.5} parent=31 // pred_region
          %s246 = sand.u32 64, 7
          %p247 = scmp.eq.s32.totalorder %s246, 0
          // Predicated region
          $region48: #{birnn_forward.5} parent=35 // pred_check
            %p248 = pneg %p247
          $region49: #{birnn_forward.5} parent=35 // pred_check_branch
            %250 = sbr.rel (%p248) target = $region51
          $region50: #{birnn_forward.5} parent=35 // pred_region
            loop: start=0, step=1, limit=1
            $region52: #{birnn_forward.5} parent=50 // loop_pre_header
              _
            $region53: #{birnn_forward.5} parent=50 // loop_header
              %s252 = sphi 0, %s256
              %p253 = scmp.ge.s32.totalorder %s252, 1
              %s257 = sphi %s2, %s2
              %s258 = sphi [#allocation2], [#allocation2]
            $region54: #{birnn_forward.5} parent=50 // loop_header_branch
              %255 = sbr.rel (%p253) target = $region58
            $region55: #{birnn_forward.5} parent=50 // loop_body
              %v259 = vld [vmem:[%s257] sm:$0xff]
              %260 = vst [vmem:[%s258] sm:$0xff] %v259
              %v261 = vld [vmem:[%s257 + $0x8] sm:$0xff]
              %262 = vst [vmem:[%s258 + $0x8] sm:$0xff] %v261
              %v263 = vld [vmem:[%s257 + $0x10] sm:$0xff]
              %264 = vst [vmem:[%s258 + $0x10] sm:$0xff] %v263
              %v265 = vld [vmem:[%s257 + $0x18] sm:$0xff]
              %266 = vst [vmem:[%s258 + $0x18] sm:$0xff] %v265
              %v267 = vld [vmem:[%s257 + $0x20] sm:$0xff]
              %268 = vst [vmem:[%s258 + $0x20] sm:$0xff] %v267
              %v269 = vld [vmem:[%s257 + $0x28] sm:$0xff]
              %270 = vst [vmem:[%s258 + $0x28] sm:$0xff] %v269
              %v271 = vld [vmem:[%s257 + $0x30] sm:$0xff]
              %272 = vst [vmem:[%s258 + $0x30] sm:$0xff] %v271
              %v273 = vld [vmem:[%s257 + $0x38] sm:$0xff]
              %274 = vst [vmem:[%s258 + $0x38] sm:$0xff] %v273
            $region56: #{birnn_forward.5} parent=50 // loop_footer
              %s256 = sadd.s32 1, %s252
            $region57: #{birnn_forward.5} parent=50 // loop_footer_branch
              %251 = sbr.rel target = $region53
            $region58: #{birnn_forward.5} parent=50 // loop_exit
              _
          $region51: #{birnn_forward.5} parent=35 // pred_fallthru
            _
          %p275 = pneg %p247
          // Predicated region
          $region59: #{birnn_forward.5} parent=35 // pred_check
            _
          $region60: #{birnn_forward.5} parent=35 // pred_check_branch
            %277 = sbr.rel (%p247) target = $region62
          $region61: #{birnn_forward.5} parent=35 // pred_region
            %s278 = sand.u32 64, 7
          $region62: #{birnn_forward.5} parent=35 // pred_fallthru
            _
        $region36: #{birnn_forward.5} parent=31 // pred_fallthru
          _
        // Predicated region
        $region37: #{birnn_forward.5} parent=31 // pred_check
          %p232 = pneg %p228
        $region38: #{birnn_forward.5} parent=31 // pred_check_branch
          %234 = sbr.rel (%p232) target = $region40
        $region39: #{birnn_forward.5} parent=31 // pred_region
          %s235 = sshllo.u32 0, 64
          loop: start=0, step=1, limit=1
          $region41: #{birnn_forward.5} parent=39 // loop_pre_header
            _
          $region42: #{birnn_forward.5} parent=39 // loop_header
            %s237 = sphi 0, %s241
            %p238 = scmp.ge.s32.totalorder %s237, 1
            %s242 = sphi %s2, %s2
            %s243 = sphi [#allocation2], [#allocation2]
          $region43: #{birnn_forward.5} parent=39 // loop_header_branch
            %240 = sbr.rel (%p238) target = $region47
          $region44: #{birnn_forward.5} parent=39 // loop_body
            %v244 = vld [vmem:[%s242] sm:%s235]
            %245 = vst [vmem:[%s243] sm:%s235] %v244
          $region45: #{birnn_forward.5} parent=39 // loop_footer
            %s241 = sadd.s32 1, %s237
          $region46: #{birnn_forward.5} parent=39 // loop_footer_branch
            %236 = sbr.rel target = $region42
          $region47: #{birnn_forward.5} parent=39 // loop_exit
            _
        $region40: #{birnn_forward.5} parent=31 // pred_fallthru
          _
        // Predicated region
        $region63: #{birnn_forward.5} parent=31 // pred_check
          _
        $region64: #{birnn_forward.5} parent=31 // pred_check_branch
          %281 = sbr.rel (0) target = $region66
        $region65: #{birnn_forward.5} parent=31 // pred_region
          %282 = vsyncadd [#allocation7], 1024
        $region66: #{birnn_forward.5} parent=31 // pred_fallthru
          _
        %s283 = smul.u32 2, 32
        %s284 = smul.u32 %s283, 1
        %s285 = sshll.u32 %s284, 4
        %286 = dma.done [#allocation7], %s285
        %vm287 = vcmask 254976
        %288 = vst.msk [vmem:[#allocation3] sm:$0x3] %vm287, 0.0
        %289 = vst.msk [vmem:[#allocation4] sm:$0x3] %vm287, 0.0
        %290 = vst.msk [vmem:[#allocation5] sm:$0x3] %vm287, 0.0
        %291 = vst.msk [vmem:[#allocation6] sm:$0x3] %vm287, 0.0
      $region32: #{birnn_forward.5} parent=27 // pred_fallthru
        _
      %v292 = vld [vmem:[#allocation2] sm:$0xff]
      %v293 = vld [vmem:[#allocation2 + $0x8] sm:$0xff]
      %v294 = vld [vmem:[#allocation2 + $0x10] sm:$0xff]
      %v295 = vld [vmem:[#allocation2 + $0x18] sm:$0xff]
      %s296 = scalar_lea.vmem [#allocation2], 32
      %v297 = vld [vmem:[%s296] sm:$0xff]
      %v298 = vld [vmem:[%s296 + $0x8] sm:$0xff]
      %v299 = vld [vmem:[%s296 + $0x10] sm:$0xff]
      %v300 = vld [vmem:[%s296 + $0x18] sm:$0xff]
      %v301 = vld [vmem:[#allocation3] sm:$0x3]
      %v302 = vld [vmem:[#allocation4] sm:$0x3]
      %v303 = vld [vmem:[#allocation5] sm:$0x3]
      %v304 = vld [vmem:[#allocation6] sm:$0x3]
      %v305 = vld [vmem:[%s199] sm:$0x3]
      %vm306 = vcmask 261120
      %v308 = vsel %vm306, %v301, 0
      %310 = vmatprep.subr.mxu0 0.0
      %311 = vmatpush1.msra.mxu0 %v292
      %312 = vmatprep.subr.mxu0 0.0
      %313 = vmatpush1.msra.mxu0 %v293
      %314 = vmatprep.subr.mxu0 0.0
      %315 = vmatpush1.msra.mxu0 %v294
      %316 = vmatprep.subr.mxu0 0.0
      %317 = vmatpush1.msra.mxu0 %v295
      %318 = vmatprep.subr.mxu0 0.0
      %319 = vmatpush1.msra.mxu0 0.0
      %320 = vmatprep.subr.mxu0 0.0
      %321 = vmatpush1.msra.mxu0 0.0
      %322 = vmatprep.subr.mxu0 0.0
      %323 = vmatpush1.msra.mxu0 0.0
      %324 = vmatprep.subr.mxu0 0.0
      %325 = vmatpush1.msra.mxu0 0.0
      %326 = vmatprep.subr.mxu0 0.0
      %327 = vmatpush1.msra.mxu0 0.0
      %328 = vmatprep.subr.mxu0 0.0
      %329 = vmatpush1.msra.mxu0 0.0
      %330 = vmatprep.subr.mxu0 0.0
      %331 = vmatpush1.msra.mxu0 0.0
      %332 = vmatprep.subr.mxu0 0.0
      %333 = vmatpush1.msra.mxu0 0.0
      %334 = vmatprep.subr.mxu0 0.0
      %335 = vmatpush1.msra.mxu0 0.0
      %336 = vmatprep.subr.mxu0 0.0
      %337 = vmatpush1.msra.mxu0 0.0
      %338 = vmatprep.subr.mxu0 0.0
      %339 = vmatpush1.msra.mxu0 0.0
      %340 = vmatprep.subr.mxu0 0.0
      %341 = vmatpush1.msra.mxu0 0.0
      %342 = vmatprep.subr.mxu0 0.0
      %343 = vmatpush1.msra.mxu0 0.0
      %344 = vmatprep.subr.mxu0 0.0
      %345 = vmatpush1.msra.mxu0 0.0
      %346 = vmatprep.subr.mxu0 0.0
      %347 = vmatpush1.msra.mxu0 0.0
      %348 = vmatprep.subr.mxu0 0.0
      %349 = vmatpush1.msra.mxu0 0.0
      %350 = vmatprep.subr.mxu0 0.0
      %351 = vmatpush1.msra.mxu0 0.0
      %352 = vmatprep.subr.mxu0 0.0
      %353 = vmatpush1.msra.mxu0 0.0
      %354 = vmatprep.subr.mxu0 0.0
      %355 = vmatpush1.msra.mxu0 0.0
      %356 = vmatprep.subr.mxu0 0.0
      %357 = vmatpush1.msra.mxu0 0.0
      %358 = vmatprep.subr.mxu0 0.0
      %359 = vmatpush1.msra.mxu0 0.0
      %360 = vmatprep.subr.mxu0 0.0
      %361 = vmatpush1.msra.mxu0 0.0
      %362 = vmatprep.subr.mxu0 0.0
      %363 = vmatpush1.msra.mxu0 0.0
      %364 = vmatprep.subr.mxu0 0.0
      %365 = vmatpush1.msra.mxu0 0.0
      %366 = vmatprep.subr.mxu0 0.0
      %367 = vmatpush1.msra.mxu0 0.0
      %368 = vmatprep.subr.mxu0 0.0
      %369 = vmatpush1.msra.mxu0 0.0
      %370 = vmatprep.subr.mxu0 0.0
      %371 = vmatpush1.msra.mxu0 0.0
      %372 = vmatprep.subr.mxu0 0.0
      %373 = vmatpush1.msra.mxu0 0.0
      %374 = vmatprep.mubr.f32.mxu0 0.0
      %375 = vmatmul.mubr.f32.gmra.mrb[0].mxu0 %v308
      %v376 = vpop.f32.mrb[0].mxu0
      %v377 = vadd.f32 0.0, %v376
      %v378 = vpop.f32.mrb[0].mxu0
      %379 = vdwg.mxu0
      %v380 = vadd.f32 %v305, %v377
      %v381 = vxor.u32 %v380, 2147483648
      %v382 = vmul.f32 %v381, 1.442695
      %v383 = vpow.pop %v382
      %v384 = vadd.f32 %v383, 1.0
      %v385 = vrcp.pop %v384
      %v386 = vmul.f32 1.0, %v385
      %v387 = vtanh.pop %v380
      %389 = vrot.lane.b32.xlu0 %v302, 32
      %v390 = vpop.permute.xlu0 %389
      %v392 = vmul.f32 %v386, %v390
      %394 = vrot.lane.b32.xlu0 %v387, 32
      %v395 = vpop.permute.xlu0 %394
      %v397 = vmul.f32 %v386, %v395
      %399 = vrot.lane.b32.xlu0 %v397, 32
      %v400 = vpop.permute.xlu0 %399
      %v402 = vadd.f32 %v392, %v400
      %v403 = vtanh.pop %v402
      %405 = vrot.lane.b32.xlu0 %v403, 32
      %v406 = vpop.permute.xlu0 %405
      %v408 = vmul.f32 %v386, %v406
      %s409 = scalar_lea.vmem %s206, 6
      %v410 = vld [vmem:[%s409] sm:$0x3]
      %v412 = vsel %vm306, %v303, 0
      %414 = vmatprep.subr.mxu0 0.0
      %415 = vmatpush1.msra.mxu0 %v297
      %416 = vmatprep.subr.mxu0 0.0
      %417 = vmatpush1.msra.mxu0 %v298
      %418 = vmatprep.subr.mxu0 0.0
      %419 = vmatpush1.msra.mxu0 %v299
      %420 = vmatprep.subr.mxu0 0.0
      %421 = vmatpush1.msra.mxu0 %v300
      %422 = vmatprep.subr.mxu0 0.0
      %423 = vmatpush1.msra.mxu0 0.0
      %424 = vmatprep.subr.mxu0 0.0
      %425 = vmatpush1.msra.mxu0 0.0
      %426 = vmatprep.subr.mxu0 0.0
      %427 = vmatpush1.msra.mxu0 0.0
      %428 = vmatprep.subr.mxu0 0.0
      %429 = vmatpush1.msra.mxu0 0.0
      %430 = vmatprep.subr.mxu0 0.0
      %431 = vmatpush1.msra.mxu0 0.0
      %432 = vmatprep.subr.mxu0 0.0
      %433 = vmatpush1.msra.mxu0 0.0
      %434 = vmatprep.subr.mxu0 0.0
      %435 = vmatpush1.msra.mxu0 0.0
      %436 = vmatprep.subr.mxu0 0.0
      %437 = vmatpush1.msra.mxu0 0.0
      %438 = vmatprep.subr.mxu0 0.0
      %439 = vmatpush1.msra.mxu0 0.0
      %440 = vmatprep.subr.mxu0 0.0
      %441 = vmatpush1.msra.mxu0 0.0
      %442 = vmatprep.subr.mxu0 0.0
      %443 = vmatpush1.msra.mxu0 0.0
      %444 = vmatprep.subr.mxu0 0.0
      %445 = vmatpush1.msra.mxu0 0.0
      %446 = vmatprep.subr.mxu0 0.0
      %447 = vmatpush1.msra.mxu0 0.0
      %448 = vmatprep.subr.mxu0 0.0
      %449 = vmatpush1.msra.mxu0 0.0
      %450 = vmatprep.subr.mxu0 0.0
      %451 = vmatpush1.msra.mxu0 0.0
      %452 = vmatprep.subr.mxu0 0.0
      %453 = vmatpush1.msra.mxu0 0.0
      %454 = vmatprep.subr.mxu0 0.0
      %455 = vmatpush1.msra.mxu0 0.0
      %456 = vmatprep.subr.mxu0 0.0
      %457 = vmatpush1.msra.mxu0 0.0
      %458 = vmatprep.subr.mxu0 0.0
      %459 = vmatpush1.msra.mxu0 0.0
      %460 = vmatprep.subr.mxu0 0.0
      %461 = vmatpush1.msra.mxu0 0.0
      %462 = vmatprep.subr.mxu0 0.0
      %463 = vmatpush1.msra.mxu0 0.0
      %464 = vmatprep.subr.mxu0 0.0
      %465 = vmatpush1.msra.mxu0 0.0
      %466 = vmatprep.subr.mxu0 0.0
      %467 = vmatpush1.msra.mxu0 0.0
      %468 = vmatprep.subr.mxu0 0.0
      %469 = vmatpush1.msra.mxu0 0.0
      %470 = vmatprep.subr.mxu0 0.0
      %471 = vmatpush1.msra.mxu0 0.0
      %472 = vmatprep.subr.mxu0 0.0
      %473 = vmatpush1.msra.mxu0 0.0
      %474 = vmatprep.subr.mxu0 0.0
      %475 = vmatpush1.msra.mxu0 0.0
      %476 = vmatprep.subr.mxu0 0.0
      %477 = vmatpush1.msra.mxu0 0.0
      %478 = vmatprep.mubr.f32.mxu0 0.0
      %479 = vmatmul.mubr.f32.gmra.mrb[0].mxu0 %v412
      %v480 = vpop.f32.mrb[0].mxu0
      %v481 = vadd.f32 0.0, %v480
      %v482 = vpop.f32.mrb[0].mxu0
      %483 = vdwg.mxu0
      %v484 = vadd.f32 %v410, %v481
      %v485 = vxor.u32 %v484, 2147483648
      %v486 = vmul.f32 %v485, 1.442695
      %v487 = vpow.pop %v486
      %v488 = vadd.f32 %v487, 1.0
      %v489 = vrcp.pop %v488
      %v490 = vmul.f32 1.0, %v489
      %v491 = vtanh.pop %v484
      %493 = vrot.lane.b32.xlu0 %v304, 32
      %v494 = vpop.permute.xlu0 %493
      %v496 = vmul.f32 %v490, %v494
      %498 = vrot.lane.b32.xlu0 %v491, 32
      %v499 = vpop.permute.xlu0 %498
      %v501 = vmul.f32 %v490, %v499
      %503 = vrot.lane.b32.xlu0 %v501, 32
      %v504 = vpop.permute.xlu0 %503
      %v506 = vadd.f32 %v496, %v504
      %v507 = vtanh.pop %v506
      %509 = vrot.lane.b32.xlu0 %v507, 32
      %v510 = vpop.permute.xlu0 %509
      %v512 = vmul.f32 %v490, %v510
      %514 = vrot.lane.b32.xlu0 %v408, 64
      %v515 = vpop.permute.xlu0 %514
      %vm517 = vcmask 254976
      %518 = vst.msk [vmem:[%s213] sm:$0x3] %vm517, %v515
      %520 = vrot.lane.b32.xlu0 %v512, 64
      %v521 = vpop.permute.xlu0 %520
      %s523 = scalar_lea.vmem %s220, 6
      %524 = vst.msk [vmem:[%s523] sm:$0x3] %vm517, %v521
      %s525 = scalar_lea.vmem %s199, 2
      %v526 = vld [vmem:[%s525] sm:$0x3]
      %v527 = vsel %vm306, %v515, 0
      %529 = vmatprep.subr.mxu0 0.0
      %530 = vmatpush1.msra.mxu0 %v292
      %531 = vmatprep.subr.mxu0 0.0
      %532 = vmatpush1.msra.mxu0 %v293
      %533 = vmatprep.subr.mxu0 0.0
      %534 = vmatpush1.msra.mxu0 %v294
      %535 = vmatprep.subr.mxu0 0.0
      %536 = vmatpush1.msra.mxu0 %v295
      %537 = vmatprep.subr.mxu0 0.0
      %538 = vmatpush1.msra.mxu0 0.0
      %539 = vmatprep.subr.mxu0 0.0
      %540 = vmatpush1.msra.mxu0 0.0
      %541 = vmatprep.subr.mxu0 0.0
      %542 = vmatpush1.msra.mxu0 0.0
      %543 = vmatprep.subr.mxu0 0.0
      %544 = vmatpush1.msra.mxu0 0.0
      %545 = vmatprep.subr.mxu0 0.0
      %546 = vmatpush1.msra.mxu0 0.0
      %547 = vmatprep.subr.mxu0 0.0
      %548 = vmatpush1.msra.mxu0 0.0
      %549 = vmatprep.subr.mxu0 0.0
      %550 = vmatpush1.msra.mxu0 0.0
      %551 = vmatprep.subr.mxu0 0.0
      %552 = vmatpush1.msra.mxu0 0.0
      %553 = vmatprep.subr.mxu0 0.0
      %554 = vmatpush1.msra.mxu0 0.0
      %555 = vmatprep.subr.mxu0 0.0
      %556 = vmatpush1.msra.mxu0 0.0
      %557 = vmatprep.subr.mxu0 0.0
      %558 = vmatpush1.msra.mxu0 0.0
      %559 = vmatprep.subr.mxu0 0.0
      %560 = vmatpush1.msra.mxu0 0.0
      %561 = vmatprep.subr.mxu0 0.0
      %562 = vmatpush1.msra.mxu0 0.0
      %563 = vmatprep.subr.mxu0 0.0
      %564 = vmatpush1.msra.mxu0 0.0
      %565 = vmatprep.subr.mxu0 0.0
      %566 = vmatpush1.msra.mxu0 0.0
      %567 = vmatprep.subr.mxu0 0.0
      %568 = vmatpush1.msra.mxu0 0.0
      %569 = vmatprep.subr.mxu0 0.0
      %570 = vmatpush1.msra.mxu0 0.0
      %571 = vmatprep.subr.mxu0 0.0
      %572 = vmatpush1.msra.mxu0 0.0
      %573 = vmatprep.subr.mxu0 0.0
      %574 = vmatpush1.msra.mxu0 0.0
      %575 = vmatprep.subr.mxu0 0.0
      %576 = vmatpush1.msra.mxu0 0.0
      %577 = vmatprep.subr.mxu0 0.0
      %578 = vmatpush1.msra.mxu0 0.0
      %579 = vmatprep.subr.mxu0 0.0
      %580 = vmatpush1.msra.mxu0 0.0
      %581 = vmatprep.subr.mxu0 0.0
      %582 = vmatpush1.msra.mxu0 0.0
      %583 = vmatprep.subr.mxu0 0.0
      %584 = vmatpush1.msra.mxu0 0.0
      %585 = vmatprep.subr.mxu0 0.0
      %586 = vmatpush1.msra.mxu0 0.0
      %587 = vmatprep.subr.mxu0 0.0
      %588 = vmatpush1.msra.mxu0 0.0
      %589 = vmatprep.subr.mxu0 0.0
      %590 = vmatpush1.msra.mxu0 0.0
      %591 = vmatprep.subr.mxu0 0.0
      %592 = vmatpush1.msra.mxu0 0.0
      %593 = vmatprep.mubr.f32.mxu0 0.0
      %594 = vmatmul.mubr.f32.gmra.mrb[0].mxu0 %v527
      %v595 = vpop.f32.mrb[0].mxu0
      %v596 = vadd.f32 0.0, %v595
      %v597 = vpop.f32.mrb[0].mxu0
      %598 = vdwg.mxu0
      %v599 = vadd.f32 %v526, %v596
      %v600 = vxor.u32 %v599, 2147483648
      %v601 = vmul.f32 %v600, 1.442695
      %v602 = vpow.pop %v601
      %v603 = vadd.f32 %v602, 1.0
      %v604 = vrcp.pop %v603
      %v605 = vmul.f32 1.0, %v604
      %v606 = vtanh.pop %v599
      %v607 = vmul.f32 %v605, %v402
      %609 = vrot.lane.b32.xlu0 %v606, 32
      %v610 = vpop.permute.xlu0 %609
      %v612 = vmul.f32 %v605, %v610
      %614 = vrot.lane.b32.xlu0 %v612, 32
      %v615 = vpop.permute.xlu0 %614
      %v617 = vadd.f32 %v607, %v615
      %v618 = vtanh.pop %v617
      %620 = vrot.lane.b32.xlu0 %v618, 32
      %v621 = vpop.permute.xlu0 %620
      %v623 = vmul.f32 %v605, %v621
      %s624 = scalar_lea.vmem %s206, 4
      %v625 = vld [vmem:[%s624] sm:$0x3]
      %v626 = vsel %vm306, %v521, 0
      %628 = vmatprep.subr.mxu0 0.0
      %629 = vmatpush1.msra.mxu0 %v297
      %630 = vmatprep.subr.mxu0 0.0
      %631 = vmatpush1.msra.mxu0 %v298
      %632 = vmatprep.subr.mxu0 0.0
      %633 = vmatpush1.msra.mxu0 %v299
      %634 = vmatprep.subr.mxu0 0.0
      %635 = vmatpush1.msra.mxu0 %v300
      %636 = vmatprep.subr.mxu0 0.0
      %637 = vmatpush1.msra.mxu0 0.0
      %638 = vmatprep.subr.mxu0 0.0
      %639 = vmatpush1.msra.mxu0 0.0
      %640 = vmatprep.subr.mxu0 0.0
      %641 = vmatpush1.msra.mxu0 0.0
      %642 = vmatprep.subr.mxu0 0.0
      %643 = vmatpush1.msra.mxu0 0.0
      %644 = vmatprep.subr.mxu0 0.0
      %645 = vmatpush1.msra.mxu0 0.0
      %646 = vmatprep.subr.mxu0 0.0
      %647 = vmatpush1.msra.mxu0 0.0
      %648 = vmatprep.subr.mxu0 0.0
      %649 = vmatpush1.msra.mxu0 0.0
      %650 = vmatprep.subr.mxu0 0.0
      %651 = vmatpush1.msra.mxu0 0.0
      %652 = vmatprep.subr.mxu0 0.0
      %653 = vmatpush1.msra.mxu0 0.0
      %654 = vmatprep.subr.mxu0 0.0
      %655 = vmatpush1.msra.mxu0 0.0
      %656 = vmatprep.subr.mxu0 0.0
      %657 = vmatpush1.msra.mxu0 0.0
      %658 = vmatprep.subr.mxu0 0.0
      %659 = vmatpush1.msra.mxu0 0.0
      %660 = vmatprep.subr.mxu0 0.0
      %661 = vmatpush1.msra.mxu0 0.0
      %662 = vmatprep.subr.mxu0 0.0
      %663 = vmatpush1.msra.mxu0 0.0
      %664 = vmatprep.subr.mxu0 0.0
      %665 = vmatpush1.msra.mxu0 0.0
      %666 = vmatprep.subr.mxu0 0.0
      %667 = vmatpush1.msra.mxu0 0.0
      %668 = vmatprep.subr.mxu0 0.0
      %669 = vmatpush1.msra.mxu0 0.0
      %670 = vmatprep.subr.mxu0 0.0
      %671 = vmatpush1.msra.mxu0 0.0
      %672 = vmatprep.subr.mxu0 0.0
      %673 = vmatpush1.msra.mxu0 0.0
      %674 = vmatprep.subr.mxu0 0.0
      %675 = vmatpush1.msra.mxu0 0.0
      %676 = vmatprep.subr.mxu0 0.0
      %677 = vmatpush1.msra.mxu0 0.0
      %678 = vmatprep.subr.mxu0 0.0
      %679 = vmatpush1.msra.mxu0 0.0
      %680 = vmatprep.subr.mxu0 0.0
      %681 = vmatpush1.msra.mxu0 0.0
      %682 = vmatprep.subr.mxu0 0.0
      %683 = vmatpush1.msra.mxu0 0.0
      %684 = vmatprep.subr.mxu0 0.0
      %685 = vmatpush1.msra.mxu0 0.0
      %686 = vmatprep.subr.mxu0 0.0
      %687 = vmatpush1.msra.mxu0 0.0
      %688 = vmatprep.subr.mxu0 0.0
      %689 = vmatpush1.msra.mxu0 0.0
      %690 = vmatprep.subr.mxu0 0.0
      %691 = vmatpush1.msra.mxu0 0.0
      %692 = vmatprep.mubr.f32.mxu0 0.0
      %693 = vmatmul.mubr.f32.gmra.mrb[0].mxu0 %v626
      %v694 = vpop.f32.mrb[0].mxu0
      %v695 = vadd.f32 0.0, %v694
      %v696 = vpop.f32.mrb[0].mxu0
      %697 = vdwg.mxu0
      %v698 = vadd.f32 %v625, %v695
      %v699 = vxor.u32 %v698, 2147483648
      %v700 = vmul.f32 %v699, 1.442695
      %v701 = vpow.pop %v700
      %v702 = vadd.f32 %v701, 1.0
      %v703 = vrcp.pop %v702
      %v704 = vmul.f32 1.0, %v703
      %v705 = vtanh.pop %v698
      %v706 = vmul.f32 %v704, %v506
      %708 = vrot.lane.b32.xlu0 %v705, 32
      %v709 = vpop.permute.xlu0 %708
      %v711 = vmul.f32 %v704, %v709
      %713 = vrot.lane.b32.xlu0 %v711, 32
      %v714 = vpop.permute.xlu0 %713
      %v716 = vadd.f32 %v706, %v714
      %v717 = vtanh.pop %v716
      %719 = vrot.lane.b32.xlu0 %v717, 32
      %v720 = vpop.permute.xlu0 %719
      %v722 = vmul.f32 %v704, %v720
      %724 = vrot.lane.b32.xlu0 %v623, 64
      %v725 = vpop.permute.xlu0 %724
      %s727 = scalar_lea.vmem %s213, 2
      %728 = vst.msk [vmem:[%s727] sm:$0x3] %vm517, %v725
      %730 = vrot.lane.b32.xlu0 %v722, 64
      %v731 = vpop.permute.xlu0 %730
      %s733 = scalar_lea.vmem %s220, 4
      %734 = vst.msk [vmem:[%s733] sm:$0x3] %vm517, %v731
      %s735 = scalar_lea.vmem %s199, 4
      %v736 = vld [vmem:[%s735] sm:$0x3]
      %v737 = vsel %vm306, %v725, 0
      %739 = vmatprep.subr.mxu0 0.0
      %740 = vmatpush1.msra.mxu0 %v292
      %741 = vmatprep.subr.mxu0 0.0
      %742 = vmatpush1.msra.mxu0 %v293
      %743 = vmatprep.subr.mxu0 0.0
      %744 = vmatpush1.msra.mxu0 %v294
      %745 = vmatprep.subr.mxu0 0.0
      %746 = vmatpush1.msra.mxu0 %v295
      %747 = vmatprep.subr.mxu0 0.0
      %748 = vmatpush1.msra.mxu0 0.0
      %749 = vmatprep.subr.mxu0 0.0
      %750 = vmatpush1.msra.mxu0 0.0
      %751 = vmatprep.subr.mxu0 0.0
      %752 = vmatpush1.msra.mxu0 0.0
      %753 = vmatprep.subr.mxu0 0.0
      %754 = vmatpush1.msra.mxu0 0.0
      %755 = vmatprep.subr.mxu0 0.0
      %756 = vmatpush1.msra.mxu0 0.0
      %757 = vmatprep.subr.mxu0 0.0
      %758 = vmatpush1.msra.mxu0 0.0
      %759 = vmatprep.subr.mxu0 0.0
      %760 = vmatpush1.msra.mxu0 0.0
      %761 = vmatprep.subr.mxu0 0.0
      %762 = vmatpush1.msra.mxu0 0.0
      %763 = vmatprep.subr.mxu0 0.0
      %764 = vmatpush1.msra.mxu0 0.0
      %765 = vmatprep.subr.mxu0 0.0
      %766 = vmatpush1.msra.mxu0 0.0
      %767 = vmatprep.subr.mxu0 0.0
      %768 = vmatpush1.msra.mxu0 0.0
      %769 = vmatprep.subr.mxu0 0.0
      %770 = vmatpush1.msra.mxu0 0.0
      %771 = vmatprep.subr.mxu0 0.0
      %772 = vmatpush1.msra.mxu0 0.0
      %773 = vmatprep.subr.mxu0 0.0
      %774 = vmatpush1.msra.mxu0 0.0
      %775 = vmatprep.subr.mxu0 0.0
      %776 = vmatpush1.msra.mxu0 0.0
      %777 = vmatprep.subr.mxu0 0.0
      %778 = vmatpush1.msra.mxu0 0.0
      %779 = vmatprep.subr.mxu0 0.0
      %780 = vmatpush1.msra.mxu0 0.0
      %781 = vmatprep.subr.mxu0 0.0
      %782 = vmatpush1.msra.mxu0 0.0
      %783 = vmatprep.subr.mxu0 0.0
      %784 = vmatpush1.msra.mxu0 0.0
      %785 = vmatprep.subr.mxu0 0.0
      %786 = vmatpush1.msra.mxu0 0.0
      %787 = vmatprep.subr.mxu0 0.0
      %788 = vmatpush1.msra.mxu0 0.0
      %789 = vmatprep.subr.mxu0 0.0
      %790 = vmatpush1.msra.mxu0 0.0
      %791 = vmatprep.subr.mxu0 0.0
      %792 = vmatpush1.msra.mxu0 0.0
      %793 = vmatprep.subr.mxu0 0.0
      %794 = vmatpush1.msra.mxu0 0.0
      %795 = vmatprep.subr.mxu0 0.0
      %796 = vmatpush1.msra.mxu0 0.0
      %797 = vmatprep.subr.mxu0 0.0
      %798 = vmatpush1.msra.mxu0 0.0
      %799 = vmatprep.subr.mxu0 0.0
      %800 = vmatpush1.msra.mxu0 0.0
      %801 = vmatprep.subr.mxu0 0.0
      %802 = vmatpush1.msra.mxu0 0.0
      %803 = vmatprep.mubr.f32.mxu0 0.0
      %804 = vmatmul.mubr.f32.gmra.mrb[0].mxu0 %v737
      %v805 = vpop.f32.mrb[0].mxu0
      %v806 = vadd.f32 0.0, %v805
      %v807 = vpop.f32.mrb[0].mxu0
      %808 = vdwg.mxu0
      %v809 = vadd.f32 %v736, %v806
      %v810 = vxor.u32 %v809, 2147483648
      %v811 = vmul.f32 %v810, 1.442695
      %v812 = vpow.pop %v811
      %v813 = vadd.f32 %v812, 1.0
      %v814 = vrcp.pop %v813
      %v815 = vmul.f32 1.0, %v814
      %v816 = vtanh.pop %v809
      %v817 = vmul.f32 %v815, %v617
      %819 = vrot.lane.b32.xlu0 %v816, 32
      %v820 = vpop.permute.xlu0 %819
      %v822 = vmul.f32 %v815, %v820
      %824 = vrot.lane.b32.xlu0 %v822, 32
      %v825 = vpop.permute.xlu0 %824
      %v827 = vadd.f32 %v817, %v825
      %v828 = vtanh.pop %v827
      %830 = vrot.lane.b32.xlu0 %v828, 32
      %v831 = vpop.permute.xlu0 %830
      %v833 = vmul.f32 %v815, %v831
      %s834 = scalar_lea.vmem %s206, 2
      %v835 = vld [vmem:[%s834] sm:$0x3]
      %v836 = vsel %vm306, %v731, 0
      %838 = vmatprep.subr.mxu0 0.0
      %839 = vmatpush1.msra.mxu0 %v297
      %840 = vmatprep.subr.mxu0 0.0
      %841 = vmatpush1.msra.mxu0 %v298
      %842 = vmatprep.subr.mxu0 0.0
      %843 = vmatpush1.msra.mxu0 %v299
      %844 = vmatprep.subr.mxu0 0.0
      %845 = vmatpush1.msra.mxu0 %v300
      %846 = vmatprep.subr.mxu0 0.0
      %847 = vmatpush1.msra.mxu0 0.0
      %848 = vmatprep.subr.mxu0 0.0
      %849 = vmatpush1.msra.mxu0 0.0
      %850 = vmatprep.subr.mxu0 0.0
      %851 = vmatpush1.msra.mxu0 0.0
      %852 = vmatprep.subr.mxu0 0.0
      %853 = vmatpush1.msra.mxu0 0.0
      %854 = vmatprep.subr.mxu0 0.0
      %855 = vmatpush1.msra.mxu0 0.0
      %856 = vmatprep.subr.mxu0 0.0
      %857 = vmatpush1.msra.mxu0 0.0
      %858 = vmatprep.subr.mxu0 0.0
      %859 = vmatpush1.msra.mxu0 0.0
      %860 = vmatprep.subr.mxu0 0.0
      %861 = vmatpush1.msra.mxu0 0.0
      %862 = vmatprep.subr.mxu0 0.0
      %863 = vmatpush1.msra.mxu0 0.0
      %864 = vmatprep.subr.mxu0 0.0
      %865 = vmatpush1.msra.mxu0 0.0
      %866 = vmatprep.subr.mxu0 0.0
      %867 = vmatpush1.msra.mxu0 0.0
      %868 = vmatprep.subr.mxu0 0.0
      %869 = vmatpush1.msra.mxu0 0.0
      %870 = vmatprep.subr.mxu0 0.0
      %871 = vmatpush1.msra.mxu0 0.0
      %872 = vmatprep.subr.mxu0 0.0
      %873 = vmatpush1.msra.mxu0 0.0
      %874 = vmatprep.subr.mxu0 0.0
      %875 = vmatpush1.msra.mxu0 0.0
      %876 = vmatprep.subr.mxu0 0.0
      %877 = vmatpush1.msra.mxu0 0.0
      %878 = vmatprep.subr.mxu0 0.0
      %879 = vmatpush1.msra.mxu0 0.0
      %880 = vmatprep.subr.mxu0 0.0
      %881 = vmatpush1.msra.mxu0 0.0
      %882 = vmatprep.subr.mxu0 0.0
      %883 = vmatpush1.msra.mxu0 0.0
      %884 = vmatprep.subr.mxu0 0.0
      %885 = vmatpush1.msra.mxu0 0.0
      %886 = vmatprep.subr.mxu0 0.0
      %887 = vmatpush1.msra.mxu0 0.0
      %888 = vmatprep.subr.mxu0 0.0
      %889 = vmatpush1.msra.mxu0 0.0
      %890 = vmatprep.subr.mxu0 0.0
      %891 = vmatpush1.msra.mxu0 0.0
      %892 = vmatprep.subr.mxu0 0.0
      %893 = vmatpush1.msra.mxu0 0.0
      %894 = vmatprep.subr.mxu0 0.0
      %895 = vmatpush1.msra.mxu0 0.0
      %896 = vmatprep.subr.mxu0 0.0
      %897 = vmatpush1.msra.mxu0 0.0
      %898 = vmatprep.subr.mxu0 0.0
      %899 = vmatpush1.msra.mxu0 0.0
      %900 = vmatprep.subr.mxu0 0.0
      %901 = vmatpush1.msra.mxu0 0.0
      %902 = vmatprep.mubr.f32.mxu0 0.0
      %903 = vmatmul.mubr.f32.gmra.mrb[0].mxu0 %v836
      %v904 = vpop.f32.mrb[0].mxu0
      %v905 = vadd.f32 0.0, %v904
      %v906 = vpop.f32.mrb[0].mxu0
      %907 = vdwg.mxu0
      %v908 = vadd.f32 %v835, %v905
      %v909 = vxor.u32 %v908, 2147483648
      %v910 = vmul.f32 %v909, 1.442695
      %v911 = vpow.pop %v910
      %v912 = vadd.f32 %v911, 1.0
      %v913 = vrcp.pop %v912
      %v914 = vmul.f32 1.0, %v913
      %v915 = vtanh.pop %v908
      %v916 = vmul.f32 %v914, %v716
      %918 = vrot.lane.b32.xlu0 %v915, 32
      %v919 = vpop.permute.xlu0 %918
      %v921 = vmul.f32 %v914, %v919
      %923 = vrot.lane.b32.xlu0 %v921, 32
      %v924 = vpop.permute.xlu0 %923
      %v926 = vadd.f32 %v916, %v924
      %v927 = vtanh.pop %v926
      %929 = vrot.lane.b32.xlu0 %v927, 32
      %v930 = vpop.permute.xlu0 %929
      %v932 = vmul.f32 %v914, %v930
      %934 = vrot.lane.b32.xlu0 %v833, 64
      %v935 = vpop.permute.xlu0 %934
      %s937 = scalar_lea.vmem %s213, 4
      %938 = vst.msk [vmem:[%s937] sm:$0x3] %vm517, %v935
      %940 = vrot.lane.b32.xlu0 %v932, 64
      %v941 = vpop.permute.xlu0 %940
      %s943 = scalar_lea.vmem %s220, 2
      %944 = vst.msk [vmem:[%s943] sm:$0x3] %vm517, %v941
      %s945 = scalar_lea.vmem %s199, 6
      %v946 = vld [vmem:[%s945] sm:$0x3]
      %v947 = vsel %vm306, %v935, 0
      %949 = vmatprep.subr.mxu0 0.0
      %950 = vmatpush1.msra.mxu0 %v292
      %951 = vmatprep.subr.mxu0 0.0
      %952 = vmatpush1.msra.mxu0 %v293
      %953 = vmatprep.subr.mxu0 0.0
      %954 = vmatpush1.msra.mxu0 %v294
      %955 = vmatprep.subr.mxu0 0.0
      %956 = vmatpush1.msra.mxu0 %v295
      %957 = vmatprep.subr.mxu0 0.0
      %958 = vmatpush1.msra.mxu0 0.0
      %959 = vmatprep.subr.mxu0 0.0
      %960 = vmatpush1.msra.mxu0 0.0
      %961 = vmatprep.subr.mxu0 0.0
      %962 = vmatpush1.msra.mxu0 0.0
      %963 = vmatprep.subr.mxu0 0.0
      %964 = vmatpush1.msra.mxu0 0.0
      %965 = vmatprep.subr.mxu0 0.0
      %966 = vmatpush1.msra.mxu0 0.0
      %967 = vmatprep.subr.mxu0 0.0
      %968 = vmatpush1.msra.mxu0 0.0
      %969 = vmatprep.subr.mxu0 0.0
      %970 = vmatpush1.msra.mxu0 0.0
      %971 = vmatprep.subr.mxu0 0.0
      %972 = vmatpush1.msra.mxu0 0.0
      %973 = vmatprep.subr.mxu0 0.0
      %974 = vmatpush1.msra.mxu0 0.0
      %975 = vmatprep.subr.mxu0 0.0
      %976 = vmatpush1.msra.mxu0 0.0
      %977 = vmatprep.subr.mxu0 0.0
      %978 = vmatpush1.msra.mxu0 0.0
      %979 = vmatprep.subr.mxu0 0.0
      %980 = vmatpush1.msra.mxu0 0.0
      %981 = vmatprep.subr.mxu0 0.0
      %982 = vmatpush1.msra.mxu0 0.0
      %983 = vmatprep.subr.mxu0 0.0
      %984 = vmatpush1.msra.mxu0 0.0
      %985 = vmatprep.subr.mxu0 0.0
      %986 = vmatpush1.msra.mxu0 0.0
      %987 = vmatprep.subr.mxu0 0.0
      %988 = vmatpush1.msra.mxu0 0.0
      %989 = vmatprep.subr.mxu0 0.0
      %990 = vmatpush1.msra.mxu0 0.0
      %991 = vmatprep.subr.mxu0 0.0
      %992 = vmatpush1.msra.mxu0 0.0
      %993 = vmatprep.subr.mxu0 0.0
      %994 = vmatpush1.msra.mxu0 0.0
      %995 = vmatprep.subr.mxu0 0.0
      %996 = vmatpush1.msra.mxu0 0.0
      %997 = vmatprep.subr.mxu0 0.0
      %998 = vmatpush1.msra.mxu0 0.0
      %999 = vmatprep.subr.mxu0 0.0
      %1000 = vmatpush1.msra.mxu0 0.0
      %1001 = vmatprep.subr.mxu0 0.0
      %1002 = vmatpush1.msra.mxu0 0.0
      %1003 = vmatprep.subr.mxu0 0.0
      %1004 = vmatpush1.msra.mxu0 0.0
      %1005 = vmatprep.subr.mxu0 0.0
      %1006 = vmatpush1.msra.mxu0 0.0
      %1007 = vmatprep.subr.mxu0 0.0
      %1008 = vmatpush1.msra.mxu0 0.0
      %1009 = vmatprep.subr.mxu0 0.0
      %1010 = vmatpush1.msra.mxu0 0.0
      %1011 = vmatprep.subr.mxu0 0.0
      %1012 = vmatpush1.msra.mxu0 0.0
      %1013 = vmatprep.mubr.f32.mxu0 0.0
      %1014 = vmatmul.mubr.f32.gmra.mrb[0].mxu0 %v947
      %v1015 = vpop.f32.mrb[0].mxu0
      %v1016 = vadd.f32 0.0, %v1015
      %v1017 = vpop.f32.mrb[0].mxu0
      %1018 = vdwg.mxu0
      %v1019 = vadd.f32 %v946, %v1016
      %v1020 = vxor.u32 %v1019, 2147483648
      %v1021 = vmul.f32 %v1020, 1.442695
      %v1022 = vpow.pop %v1021
      %v1023 = vadd.f32 %v1022, 1.0
      %v1024 = vrcp.pop %v1023
      %v1025 = vmul.f32 1.0, %v1024
      %v1026 = vtanh.pop %v1019
      %v1027 = vmul.f32 %v1025, %v827
      %1029 = vrot.lane.b32.xlu0 %v1026, 32
      %v1030 = vpop.permute.xlu0 %1029
      %v1032 = vmul.f32 %v1025, %v1030
      %1034 = vrot.lane.b32.xlu0 %v1032, 32
      %v1035 = vpop.permute.xlu0 %1034
      %v1037 = vadd.f32 %v1027, %v1035
      %v1038 = vtanh.pop %v1037
      %1040 = vrot.lane.b32.xlu0 %v1038, 32
      %v1041 = vpop.permute.xlu0 %1040
      %v1043 = vmul.f32 %v1025, %v1041
      %v1044 = vld [vmem:[%s206] sm:$0x3]
      %v1045 = vsel %vm306, %v941, 0
      %1047 = vmatprep.subr.mxu0 0.0
      %1048 = vmatpush1.msra.mxu0 %v297
      %1049 = vmatprep.subr.mxu0 0.0
      %1050 = vmatpush1.msra.mxu0 %v298
      %1051 = vmatprep.subr.mxu0 0.0
      %1052 = vmatpush1.msra.mxu0 %v299
      %1053 = vmatprep.subr.mxu0 0.0
      %1054 = vmatpush1.msra.mxu0 %v300
      %1055 = vmatprep.subr.mxu0 0.0
      %1056 = vmatpush1.msra.mxu0 0.0
      %1057 = vmatprep.subr.mxu0 0.0
      %1058 = vmatpush1.msra.mxu0 0.0
      %1059 = vmatprep.subr.mxu0 0.0
      %1060 = vmatpush1.msra.mxu0 0.0
      %1061 = vmatprep.subr.mxu0 0.0
      %1062 = vmatpush1.msra.mxu0 0.0
      %1063 = vmatprep.subr.mxu0 0.0
      %1064 = vmatpush1.msra.mxu0 0.0
      %1065 = vmatprep.subr.mxu0 0.0
      %1066 = vmatpush1.msra.mxu0 0.0
      %1067 = vmatprep.subr.mxu0 0.0
      %1068 = vmatpush1.msra.mxu0 0.0
      %1069 = vmatprep.subr.mxu0 0.0
      %1070 = vmatpush1.msra.mxu0 0.0
      %1071 = vmatprep.subr.mxu0 0.0
      %1072 = vmatpush1.msra.mxu0 0.0
      %1073 = vmatprep.subr.mxu0 0.0
      %1074 = vmatpush1.msra.mxu0 0.0
      %1075 = vmatprep.subr.mxu0 0.0
      %1076 = vmatpush1.msra.mxu0 0.0
      %1077 = vmatprep.subr.mxu0 0.0
      %1078 = vmatpush1.msra.mxu0 0.0
      %1079 = vmatprep.subr.mxu0 0.0
      %1080 = vmatpush1.msra.mxu0 0.0
      %1081 = vmatprep.subr.mxu0 0.0
      %1082 = vmatpush1.msra.mxu0 0.0
      %1083 = vmatprep.subr.mxu0 0.0
      %1084 = vmatpush1.msra.mxu0 0.0
      %1085 = vmatprep.subr.mxu0 0.0
      %1086 = vmatpush1.msra.mxu0 0.0
      %1087 = vmatprep.subr.mxu0 0.0
      %1088 = vmatpush1.msra.mxu0 0.0
      %1089 = vmatprep.subr.mxu0 0.0
      %1090 = vmatpush1.msra.mxu0 0.0
      %1091 = vmatprep.subr.mxu0 0.0
      %1092 = vmatpush1.msra.mxu0 0.0
      %1093 = vmatprep.subr.mxu0 0.0
      %1094 = vmatpush1.msra.mxu0 0.0
      %1095 = vmatprep.subr.mxu0 0.0
      %1096 = vmatpush1.msra.mxu0 0.0
      %1097 = vmatprep.subr.mxu0 0.0
      %1098 = vmatpush1.msra.mxu0 0.0
      %1099 = vmatprep.subr.mxu0 0.0
      %1100 = vmatpush1.msra.mxu0 0.0
      %1101 = vmatprep.subr.mxu0 0.0
      %1102 = vmatpush1.msra.mxu0 0.0
      %1103 = vmatprep.subr.mxu0 0.0
      %1104 = vmatpush1.msra.mxu0 0.0
      %1105 = vmatprep.subr.mxu0 0.0
      %1106 = vmatpush1.msra.mxu0 0.0
      %1107 = vmatprep.subr.mxu0 0.0
      %1108 = vmatpush1.msra.mxu0 0.0
      %1109 = vmatprep.subr.mxu0 0.0
      %1110 = vmatpush1.msra.mxu0 0.0
      %1111 = vmatprep.mubr.f32.mxu0 0.0
      %1112 = vmatmul.mubr.f32.gmra.mrb[0].mxu0 %v1045
      %v1113 = vpop.f32.mrb[0].mxu0
      %v1114 = vadd.f32 0.0, %v1113
      %v1115 = vpop.f32.mrb[0].mxu0
      %1116 = vdwg.mxu0
      %v1117 = vadd.f32 %v1044, %v1114
      %v1118 = vxor.u32 %v1117, 2147483648
      %v1119 = vmul.f32 %v1118, 1.442695
      %v1120 = vpow.pop %v1119
      %v1121 = vadd.f32 %v1120, 1.0
      %v1122 = vrcp.pop %v1121
      %v1123 = vmul.f32 1.0, %v1122
      %v1124 = vtanh.pop %v1117
      %v1125 = vmul.f32 %v1123, %v926
      %1127 = vrot.lane.b32.xlu0 %v1124, 32
      %v1128 = vpop.permute.xlu0 %1127
      %v1130 = vmul.f32 %v1123, %v1128
      %1132 = vrot.lane.b32.xlu0 %v1130, 32
      %v1133 = vpop.permute.xlu0 %1132
      %v1135 = vadd.f32 %v1125, %v1133
      %v1136 = vtanh.pop %v1135
      %1138 = vrot.lane.b32.xlu0 %v1136, 32
      %v1139 = vpop.permute.xlu0 %1138
      %v1141 = vmul.f32 %v1123, %v1139
      %1143 = vrot.lane.b32.xlu0 %v1043, 64
      %v1144 = vpop.permute.xlu0 %1143
      %s1146 = scalar_lea.vmem %s213, 6
      %1147 = vst.msk [vmem:[%s1146] sm:$0x3] %vm517, %v1144
      %1149 = vrot.lane.b32.xlu0 %v1141, 64
      %v1150 = vpop.permute.xlu0 %1149
      %1152 = vst.msk [vmem:[%s220] sm:$0x3] %vm517, %v1150
      %1153 = vst.msk [vmem:[#allocation3] sm:$0x3] %vm517, %v1144
      %1155 = vrot.lane.b32.xlu0 %v1037, 96
      %v1156 = vpop.permute.xlu0 %1155
      %1158 = vst.msk [vmem:[#allocation4] sm:$0x3] %vm517, %v1156
      %1159 = vst.msk [vmem:[#allocation5] sm:$0x3] %vm517, %v1150
      %1161 = vrot.lane.b32.xlu0 %v1135, 96
      %v1162 = vpop.permute.xlu0 %1161
      %1164 = vst.msk [vmem:[#allocation6] sm:$0x3] %vm517, %v1162
      %s1165 = smul.u32 4, %s16
      %p1166 = scmp.lt.s32.totalorder %s1165, 7
      %s1167 = scalar_select %p1166, %s1165, 7
      %s1168 = smul.addr %s1167, 2
      %s1169 = scalar_lea.vmem %s3, %s1168
      %s1170 = ssub.s32 1, %s16
      %s1171 = smul.u32 4, %s1170
      %p1172 = scmp.lt.s32.totalorder %s1171, 7
      %s1173 = scalar_select %p1172, %s1171, 7
      %s1174 = smul.addr %s1173, 2
      %s1175 = scalar_lea.vmem %s4, %s1174
      // Predicated region
      $region67: #{birnn_forward.5} parent=27 // pred_check
        %p1176 = pneg %p88
      $region68: #{birnn_forward.5} parent=27 // pred_check_branch
        %1178 = sbr.rel (%p1176) target = $region70
      $region69: #{birnn_forward.5} parent=27 // pred_region
        %s1179 = smul.u32 4, %s16
      $region70: #{birnn_forward.5} parent=27 // pred_fallthru
        _
      // Predicated region
      $region71: #{birnn_forward.5} parent=27 // pred_check
        %p1180 = pneg %p116
      $region72: #{birnn_forward.5} parent=27 // pred_check_branch
        %1182 = sbr.rel (%p1180) target = $region74
      $region73: #{birnn_forward.5} parent=27 // pred_region
        %s1183 = ssub.s32 1, %s16
        %s1184 = smul.u32 4, %s1183
      $region74: #{birnn_forward.5} parent=27 // pred_fallthru
        _
    $region28: #{birnn_forward.5} parent=5 // pred_fallthru
      _
    %p1185 = scmp.le.s32.totalorder 2, %s11
    // Predicated region
    $region75: #{birnn_forward.5} parent=5 // pred_check
      %p1186 = pneg %p1185
    $region76: #{birnn_forward.5} parent=5 // pred_check_branch
      %1188 = sbr.rel (%p1186) target = $region78
    $region77: #{birnn_forward.5} parent=5 // pred_region
      %s1189 = ssub.s32 %s11, 2
      // Predicated region
      $region79: #{birnn_forward.5} parent=77 // pred_check
        %p1190 = pneg %p94
      $region80: #{birnn_forward.5} parent=77 // pred_check_branch
        %1192 = sbr.rel (%p1190) target = $region82
      $region81: #{birnn_forward.5} parent=77 // pred_region
        %s1193 = smul.u32 4, %s17
        %p1194 = scmp.lt.s32.totalorder %s1193, 7
        %s1195 = scalar_select %p1194, %s1193, 7
        %s1196 = smul.addr %s1195, 2
        %s1197 = scalar_lea.vmem %s3, %s1196
      $region82: #{birnn_forward.5} parent=77 // pred_fallthru
        _
      // Predicated region
      $region83: #{birnn_forward.5} parent=77 // pred_check
        %p1198 = pneg %p122
      $region84: #{birnn_forward.5} parent=77 // pred_check_branch
        %1200 = sbr.rel (%p1198) target = $region86
      $region85: #{birnn_forward.5} parent=77 // pred_region
        %s1201 = ssub.s32 1, %s17
        %s1202 = smul.u32 4, %s1201
        %p1203 = scmp.lt.s32.totalorder %s1202, 7
        %s1204 = scalar_select %p1203, %s1202, 7
        %s1205 = smul.addr %s1204, 2
        %s1206 = scalar_lea.vmem %s4, %s1205
      $region86: #{birnn_forward.5} parent=77 // pred_fallthru
        _
    $region78: #{birnn_forward.5} parent=5 // pred_fallthru
      _
  $region6: #{birnn_forward.5} parent=0 // loop_footer
    %s15 = sadd.s32 1, %s11
  $region7: #{birnn_forward.5} parent=0 // loop_footer_branch
    %10 = sbr.rel target = $region3
  $region8: #{birnn_forward.5} parent=0 // loop_exit
    _
  %1207 = vsyncmov [#allocation7]
  %s1208 = vpop.sfrf %1207
  %p1209 = scmp.eq.s32.totalorder %s1208, 0
  %p1210 = pneg %p1209
  %1212 = shalt.err (%p1210)

</llo_original>
